<compile_context>
chip_gen: v6e
topology: v6e:2x2x1
jax: 0.10.0
libtpu: 0.0.40
codegen_flags: <defaults>
</compile_context>

<pallas_src>
import functools

import jax
import jax.numpy as jnp
from jax.experimental import pallas as pl
from jax.experimental.pallas import tpu as pltpu


def supcon_kernel(feat_ref, featT_ref, zT_ref, fs_ref, zs_ref, anchor_ref,
                  loss_ref, pos_ref, neg_ref, *,
                  prop_iter, crit_pos, crit_amb, inv_sigma_pos, inv_sigma_amb,
                  inv_temp, temp_ratio, mini_iters):
    mi = pl.program_id(0)

    @pl.when(mi == 0)
    def _init():
        loss_ref[...] = jnp.zeros_like(loss_ref)
        pos_ref[...] = jnp.zeros_like(pos_ref)
        neg_ref[...] = jnp.zeros_like(neg_ref)

    feat = feat_ref[...]            # (N, D)  L2-normalized feature bank (VMEM-resident)
    featT = featT_ref[...]          # (D, N)
    fs = fs_ref[...]                # (S, D)  sampled anchor features for this mini-iter
    anchor = anchor_ref[...]        # (S, 1)  global row index of each anchor (int32)

    S, D = fs.shape
    N = feat.shape[0]
    inv_n = 1.0 / N

    # (1) anchors vs. all features: one batched lane-dense MXU matmul -> (S, N)
    cos0 = jnp.dot(fs, featT, preferred_element_type=jnp.float32)
    mask_new = (cos0 > crit_pos).astype(jnp.float32)

    proxy_before = fs
    Psi = jnp.zeros((S, 1), jnp.float32) + crit_amb
    Phi = jnp.zeros((S, 1), jnp.float32) + crit_pos
    cosp = cos0

    # (2) proxy propagation: each step = two batched MXU matmuls over all S anchors.
    for _ in range(prop_iter):      # static unroll, prop_iter is small
        proxy = jnp.dot(mask_new, feat, preferred_element_type=jnp.float32) * inv_n   # (S, D)
        pn = jnp.sqrt(jnp.sum(proxy * proxy, axis=1, keepdims=True))
        proxy = proxy / jnp.maximum(pn, 1e-12)                                         # F.normalize
        cosp = jnp.dot(proxy, featT, preferred_element_type=jnp.float32)               # (S, N)
        pbn = jnp.sqrt(jnp.sum(proxy_before * proxy_before, axis=1, keepdims=True))
        pn2 = jnp.sqrt(jnp.sum(proxy * proxy, axis=1, keepdims=True))
        moving_sim = (jnp.sum(proxy_before * proxy, axis=1, keepdims=True)
                      / jnp.maximum(pbn * pn2, 1e-8))                                  # nn.CosineSimilarity
        Psi = Psi + (1.0 - moving_sim) * inv_sigma_amb
        Phi = Phi - (1.0 - moving_sim) * inv_sigma_pos
        mask_new = (cosp > Phi).astype(jnp.float32)
        proxy_before = proxy

    neglect_base = (Psi > cosp).astype(jnp.float32)                                    # (S, N)

    # (3) "exclude self" mask (== the scatter+roll logits_mask of the PyTorch code)
    col = jax.lax.broadcasted_iota(jnp.int32, (S, N), 1)
    not_self = (col != anchor).astype(jnp.float32)                                     # (S, N)
    mask = mask_new * not_self
    neglect_logits_mask = jnp.maximum(mask, neglect_base) * not_self

    # (4) contrastive logits: one (S, Dz) @ (Dz, N) MXU matmul, softmax math lane-dense.
    logits = jnp.dot(zs_ref[...], zT_ref[...], preferred_element_type=jnp.float32) * inv_temp
    logits = logits - jnp.max(logits, axis=1, keepdims=True)
    denom = jnp.maximum(
        jnp.sum(jnp.exp(logits) * neglect_logits_mask, axis=1, keepdims=True), 1e-30)
    log_prob = logits - jnp.log(denom)

    mask_sum = jnp.sum(mask, axis=1, keepdims=True)                                    # (S, 1)
    valid = (mask_sum > 0.0).astype(jnp.float32)
    mean_log_prob = jnp.where(mask_sum > 0.0,
                              jnp.sum(mask * log_prob, axis=1, keepdims=True)
                              / jnp.maximum(mask_sum, 1.0),
                              0.0)
    n_valid = jnp.maximum(jnp.sum(valid, keepdims=True), 1.0)                          # (1, 1)

    loss_ref[...] += -temp_ratio * jnp.sum(mean_log_prob, keepdims=True) / n_valid
    pos_ref[...] += jnp.sum(mask, keepdims=True) * (1.0 / S)
    neg_ref[...] += jnp.sum(neglect_base, keepdims=True) * (1.0 / S)

    @pl.when(mi == mini_iters - 1)
    def _finalize():
        scale = 1.0 / mini_iters
        loss_ref[...] *= scale
        pos_ref[...] *= scale
        neg_ref[...] *= scale


def supcon_loss_pallas(z, feat, samp_idx, *, split, temperature, base_temperature,
                       initialcrit_pos, initialcrit_amb, prop_iter, sigma_pos, sigma_amb,
                       trainpatchsplit):
    """z: (N, Dz) projections, feat: (B, dim, H, W) features, samp_idx: (mini_iters, S)."""
    B, dim, H, W = feat.shape
    featf = jnp.transpose(feat, (0, 2, 3, 1)).reshape(-1, dim).astype(jnp.float32)
    featf = featf / jnp.maximum(jnp.sqrt(jnp.sum(featf * featf, -1, keepdims=True)), 1e-12)
    N = featf.shape[0]
    Dz = z.shape[1]
    assert z.shape[0] == N and N % split == 0
    mini_iters = N // split
    S = split // trainpatchsplit
    assert samp_idx.shape == (mini_iters, S)

    anchor = samp_idx.astype(jnp.int32) + (jnp.arange(mini_iters, dtype=jnp.int32) * split)[:, None]
    z32 = z.astype(jnp.float32)
    feat_split = jnp.take(featf, anchor.reshape(-1), axis=0).reshape(mini_iters, S, dim)
    z_split = jnp.take(z32, anchor.reshape(-1), axis=0).reshape(mini_iters, S, Dz)
    featT = featf.T
    zT = z32.T
    anchor3 = anchor[:, :, None]                                   # (mini_iters, S, 1)

    kernel = functools.partial(
        supcon_kernel,
        prop_iter=int(prop_iter),
        crit_pos=float(initialcrit_pos),
        crit_amb=float(initialcrit_amb),
        inv_sigma_pos=1.0 / float(sigma_pos),
        inv_sigma_amb=1.0 / float(sigma_amb),
        inv_temp=1.0 / float(temperature),
        temp_ratio=float(temperature) / float(base_temperature),
        mini_iters=mini_iters,
    )

    loss, pos_num, neg_num = pl.pallas_call(
        kernel,
        grid=(mini_iters,),
        in_specs=[
            pl.BlockSpec((N, dim), lambda mi: (0, 0)),             # feat   (resident, DMA'd once)
            pl.BlockSpec((dim, N), lambda mi: (0, 0)),             # feat^T (resident)
            pl.BlockSpec((Dz, N), lambda mi: (0, 0)),              # z^T    (resident)
            pl.BlockSpec((None, S, dim), lambda mi: (mi, 0, 0)),   # sampled anchor feats (pipelined)
            pl.BlockSpec((None, S, Dz), lambda mi: (mi, 0, 0)),    # sampled anchor z     (pipelined)
            pl.BlockSpec((None, S, 1), lambda mi: (mi, 0, 0)),     # anchor global indices
        ],
        out_specs=(pl.BlockSpec((1, 1), lambda mi: (0, 0)),
                   pl.BlockSpec((1, 1), lambda mi: (0, 0)),
                   pl.BlockSpec((1, 1), lambda mi: (0, 0))),
        out_shape=(jax.ShapeDtypeStruct((1, 1), jnp.float32),
                   jax.ShapeDtypeStruct((1, 1), jnp.float32),
                   jax.ShapeDtypeStruct((1, 1), jnp.float32)),
        compiler_params=pltpu.CompilerParams(dimension_semantics=("arbitrary",)),
    )(featf, featT, zT, feat_split, z_split, anchor3)

    # Device scalars are returned (no host float() sync, per the review).
    return loss[0, 0], pos_num[0, 0], neg_num[0, 0]


def supcon_loss_reference(z, feat, samp_idx, *, split, temperature, base_temperature,
                          initialcrit_pos, initialcrit_amb, prop_iter, sigma_pos, sigma_amb,
                          trainpatchsplit):
    """Pure-JAX reference mirroring the PyTorch forward (same sampled indices)."""
    hp = jax.lax.Precision.HIGHEST
    B, dim, H, W = feat.shape
    featf = jnp.transpose(feat, (0, 2, 3, 1)).reshape(-1, dim).astype(jnp.float32)
    featf = featf / jnp.maximum(jnp.sqrt(jnp.sum(featf * featf, -1, keepdims=True)), 1e-12)
    N = featf.shape[0]
    mini_iters = N // split
    S = split // trainpatchsplit
    z32 = z.astype(jnp.float32)
    ratio = temperature / base_temperature

    loss = jnp.float32(0.0)
    pos_all = jnp.float32(0.0)
    neg_all = jnp.float32(0.0)
    for mi in range(mini_iters):
        g = samp_idx[mi].astype(jnp.int32) + mi * split
        fs = featf[g]
        zs = z32[g]
        cos0 = jnp.dot(fs, featf.T, precision=hp)
        mask_new = (cos0 > initialcrit_pos).astype(jnp.float32)
        proxy_before = fs
        Psi = jnp.zeros((S, 1), jnp.float32) + initialcrit_amb
        Phi = jnp.zeros((S, 1), jnp.float32) + initialcrit_pos
        cosp = cos0
        for _ in range(prop_iter):
            proxy = jnp.dot(mask_new, featf, precision=hp) / N
            proxy = proxy / jnp.maximum(jnp.sqrt(jnp.sum(proxy * proxy, 1, keepdims=True)), 1e-12)
            cosp = jnp.dot(proxy, featf.T, precision=hp)
            pbn = jnp.sqrt(jnp.sum(proxy_before * proxy_before, 1, keepdims=True))
            pn = jnp.sqrt(jnp.sum(proxy * proxy, 1, keepdims=True))
            ms = jnp.sum(proxy_before * proxy, 1, keepdims=True) / jnp.maximum(pbn * pn, 1e-8)
            Psi = Psi + (1.0 - ms) / sigma_amb
            Phi = Phi - (1.0 - ms) / sigma_pos
            mask_new = (cosp > Phi).astype(jnp.float32)
            proxy_before = proxy
        neglect_base = (Psi > cosp).astype(jnp.float32)
        not_self = (jnp.arange(N, dtype=jnp.int32)[None, :] != g[:, None]).astype(jnp.float32)
        mask = mask_new * not_self
        neglect_logits_mask = jnp.maximum(mask, neglect_base) * not_self
        logits = jnp.dot(zs, z32.T, precision=hp) / temperature
        logits = logits - jnp.max(logits, axis=1, keepdims=True)
        denom = jnp.maximum(jnp.sum(jnp.exp(logits) * neglect_logits_mask, 1, keepdims=True), 1e-30)
        log_prob = logits - jnp.log(denom)
        mask_sum = jnp.sum(mask, axis=1, keepdims=True)
        valid = (mask_sum > 0.0).astype(jnp.float32)
        mean_log_prob = jnp.where(mask_sum > 0.0,
                                  jnp.sum(mask * log_prob, 1, keepdims=True)
                                  / jnp.maximum(mask_sum, 1.0), 0.0)
        n_valid = jnp.maximum(jnp.sum(valid), 1.0)
        loss = loss - ratio * jnp.sum(mean_log_prob) / n_valid
        pos_all = pos_all + jnp.sum(mask) / S
        neg_all = neg_all + jnp.sum(neglect_base) / S
    return loss / mini_iters, pos_all / mini_iters, neg_all / mini_iters


if __name__ == "__main__":
    key = jax.random.PRNGKey(0)
    # feat: (B, dim, H, W) -> N = B*H*W flattened patches; z: (N, Dz) projections.
    B, dim, H, W = 2, 32, 16, 16
    Dz = 64
    N = B * H * W                        # 512
    split = 256                          # module hard-codes 784; smaller here so the demo stays tiny
    opt = dict(initialcrit_pos=0.15, initialcrit_amb=0.05, prop_iter=2,
               sigma_pos=10.0, sigma_amb=5.0, trainpatchsplit=4)
    temperature = 0.07
    base_temperature = 0.07

    kf, kz, ks = jax.random.split(key, 3)
    feat = jax.random.normal(kf, (B, dim, H, W), jnp.float32)
    z = jax.random.normal(kz, (N, Dz), jnp.float32)
    z = z / jnp.sqrt(jnp.sum(z * z, -1, keepdims=True))   # projections are L2-normalized (SupCon usage)

    mini_iters = N // split
    S = split // opt['trainpatchsplit']
    skeys = jax.random.split(ks, mini_iters)
    samp_idx = jnp.stack([jax.random.permutation(skeys[mi], split)[:S]
                          for mi in range(mini_iters)]).astype(jnp.int32)

    loss, pos_num, neg_num = supcon_loss_pallas(
        z, feat, samp_idx, split=split, temperature=temperature,
        base_temperature=base_temperature, **opt)
    jax.block_until_ready(loss)

    ref_loss, ref_pos, ref_neg = supcon_loss_reference(
        z, feat, samp_idx, split=split, temperature=temperature,
        base_temperature=base_temperature, **opt)

    assert jnp.isfinite(loss), loss
    assert jnp.allclose(loss, ref_loss, rtol=5e-2, atol=5e-2), (loss, ref_loss)
    assert jnp.allclose(pos_num, ref_pos, rtol=5e-2, atol=2.0), (pos_num, ref_pos)
    assert jnp.allclose(neg_num, ref_neg, rtol=5e-2, atol=2.0), (neg_num, ref_neg)

    print("KERNEL_OK")
</pallas_src>

<mosaic_0001>
module attributes {stable_mosaic.version = 11 : i64} {
  func.func @supcon_kernel(%arg0: i32, %arg1: memref<512x32xf32, #tpu.memory_space<vmem>>, %arg2: memref<32x512xf32, #tpu.memory_space<vmem>>, %arg3: memref<64x512xf32, #tpu.memory_space<vmem>>, %arg4: memref<1x64x32xf32, #tpu.memory_space<vmem>>, %arg5: memref<1x64x64xf32, #tpu.memory_space<vmem>>, %arg6: memref<1x64x1xi32, #tpu.memory_space<vmem>>, %arg7: memref<1x1xf32, #tpu.memory_space<vmem>>, %arg8: memref<1x1xf32, #tpu.memory_space<vmem>>, %arg9: memref<1x1xf32, #tpu.memory_space<vmem>>) attributes {dimension_semantics = [#tpu.dimension_semantics<arbitrary>], iteration_bounds = array<i64: 2>, scalar_prefetch = 0 : i64, scratch_operands = 0 : i64, tpu.core_type = #tpu.core_type<tc>, window_params = [{pipeline_mode = #tpu.pipeline_mode<synchronous>, transform_indices = @transform_0, window_bounds = array<i64: 512, 32>}, {pipeline_mode = #tpu.pipeline_mode<synchronous>, transform_indices = @transform_1, window_bounds = array<i64: 32, 512>}, {pipeline_mode = #tpu.pipeline_mode<synchronous>, transform_indices = @transform_2, window_bounds = array<i64: 64, 512>}, {transform_indices = @transform_3, window_bounds = array<i64: 1, 64, 32>}, {transform_indices = @transform_4, window_bounds = array<i64: 1, 64, 64>}, {transform_indices = @transform_5, window_bounds = array<i64: 1, 64, 1>}, {pipeline_mode = #tpu.pipeline_mode<synchronous>, transform_indices = @transform_6, window_bounds = array<i64: 1, 1>}, {pipeline_mode = #tpu.pipeline_mode<synchronous>, transform_indices = @transform_7, window_bounds = array<i64: 1, 1>}, {pipeline_mode = #tpu.pipeline_mode<synchronous>, transform_indices = @transform_8, window_bounds = array<i64: 1, 1>}]} {
    %c0_i32 = arith.constant 0 : i32
    %0 = arith.cmpi eq, %arg0, %c0_i32 : i32
    %1 = arith.extui %0 : i1 to i32
    %c0_i32_0 = arith.constant 0 : i32
    %2 = arith.cmpi ne, %1, %c0_i32_0 : i32
    scf.if %2 {
      %cst_78 = arith.constant 0.000000e+00 : f32
      %190 = vector.broadcast %cst_78 : f32 to vector<1x1xf32>
      %c0_79 = arith.constant 0 : index
      %c0_80 = arith.constant 0 : index
      %191 = vector.load %arg7[%c0_79, %c0_80] : memref<1x1xf32, #tpu.memory_space<vmem>>, vector<1x1xf32>
      tpu.vector_store %arg7[%c0_79, %c0_80], %190 {strides = array<i32>} : memref<1x1xf32, #tpu.memory_space<vmem>>, vector<1x1xf32>,
      %cst_81 = arith.constant 0.000000e+00 : f32
      %192 = vector.broadcast %cst_81 : f32 to vector<1x1xf32>
      %c0_82 = arith.constant 0 : index
      %c0_83 = arith.constant 0 : index
      %193 = vector.load %arg8[%c0_82, %c0_83] : memref<1x1xf32, #tpu.memory_space<vmem>>, vector<1x1xf32>
      tpu.vector_store %arg8[%c0_82, %c0_83], %192 {strides = array<i32>} : memref<1x1xf32, #tpu.memory_space<vmem>>, vector<1x1xf32>,
      %cst_84 = arith.constant 0.000000e+00 : f32
      %194 = vector.broadcast %cst_84 : f32 to vector<1x1xf32>
      %c0_85 = arith.constant 0 : index
      %c0_86 = arith.constant 0 : index
      %195 = vector.load %arg9[%c0_85, %c0_86] : memref<1x1xf32, #tpu.memory_space<vmem>>, vector<1x1xf32>
      tpu.vector_store %arg9[%c0_85, %c0_86], %194 {strides = array<i32>} : memref<1x1xf32, #tpu.memory_space<vmem>>, vector<1x1xf32>,
    } else {
    }
    %c0 = arith.constant 0 : index
    %c0_1 = arith.constant 0 : index
    %3 = vector.load %arg1[%c0, %c0_1] : memref<512x32xf32, #tpu.memory_space<vmem>>, vector<512x32xf32>
    %c0_2 = arith.constant 0 : index
    %c0_3 = arith.constant 0 : index
    %4 = vector.load %arg2[%c0_2, %c0_3] : memref<32x512xf32, #tpu.memory_space<vmem>>, vector<32x512xf32>
    %c0_4 = arith.constant 0 : index
    %c0_5 = arith.constant 0 : index
    %c0_6 = arith.constant 0 : index
    %5 = vector.load %arg4[%c0_4, %c0_5, %c0_6] : memref<1x64x32xf32, #tpu.memory_space<vmem>>, vector<1x64x32xf32>
    %6 = vector.shape_cast %5 : vector<1x64x32xf32> to vector<64x32xf32>
    %c0_7 = arith.constant 0 : index
    %c0_8 = arith.constant 0 : index
    %c0_9 = arith.constant 0 : index
    %7 = vector.load %arg6[%c0_7, %c0_8, %c0_9] : memref<1x64x1xi32, #tpu.memory_space<vmem>>, vector<1x64x1xi32>
    %8 = vector.shape_cast %7 : vector<1x64x1xi32> to vector<64x1xi32>
    %cst = arith.constant dense<0.000000e+00> : vector<64x512xf32>
    %9 = tpu.matmul %6, %4, %cst {dimension_numbers = #tpu.dot_dimension_numbers<[1], [0], [0], [1], [0, 0, 1, 1], [], []>} : vector<64x32xf32>, vector<32x512xf32>, vector<64x512xf32> -> vector<64x512xf32>
    %cst_10 = arith.constant 1.500000e-01 : f32
    %10 = vector.broadcast %cst_10 : f32 to vector<64x512xf32>
    %11 = arith.cmpf ogt, %9, %10 : vector<64x512xf32>
    %12 = arith.extui %11 : vector<64x512xi1> to vector<64x512xi32>
    %13 = arith.sitofp %12 : vector<64x512xi32> to vector<64x512xf32>
    %cst_11 = arith.constant 0.000000e+00 : f32
    %14 = vector.broadcast %cst_11 : f32 to vector<64x1xf32>
    %cst_12 = arith.constant 5.000000e-02 : f32
    %15 = vector.broadcast %cst_12 : f32 to vector<64x1xf32>
    %16 = arith.addf %14, %15 : vector<64x1xf32>
    %cst_13 = arith.constant 0.000000e+00 : f32
    %17 = vector.broadcast %cst_13 : f32 to vector<64x1xf32>
    %cst_14 = arith.constant 1.500000e-01 : f32
    %18 = vector.broadcast %cst_14 : f32 to vector<64x1xf32>
    %19 = arith.addf %17, %18 : vector<64x1xf32>
    %cst_15 = arith.constant dense<0.000000e+00> : vector<64x32xf32>
    %20 = tpu.matmul %13, %3, %cst_15 {dimension_numbers = #tpu.dot_dimension_numbers<[1], [0], [0], [1], [0, 0, 1, 1], [], []>} : vector<64x512xf32>, vector<512x32xf32>, vector<64x32xf32> -> vector<64x32xf32>
    %cst_16 = arith.constant 0.001953125 : f32
    %21 = vector.broadcast %cst_16 : f32 to vector<64x32xf32>
    %22 = arith.mulf %20, %21 : vector<64x32xf32>
    %23 = arith.mulf %22, %22 : vector<64x32xf32>
    %cst_17 = arith.constant dense<0.000000e+00> : vector<64xf32>
    %24 = vector.multi_reduction <add>, %23, %cst_17 [1] : vector<64x32xf32> to vector<64xf32>
    %25 = vector.shape_cast %24 : vector<64xf32> to vector<64x1xf32>
    %26 = math.sqrt %25 : vector<64x1xf32>
    %cst_18 = arith.constant 9.99999996E-13 : f32
    %27 = vector.broadcast %cst_18 : f32 to vector<64x1xf32>
    %28 = arith.maximumf %26, %27 : vector<64x1xf32>
    %29 = vector.broadcast %28 : vector<64x1xf32> to vector<64x32xf32>
    %30 = arith.divf %22, %29 : vector<64x32xf32>
    %cst_19 = arith.constant dense<0.000000e+00> : vector<64x512xf32>
    %31 = tpu.matmul %30, %4, %cst_19 {dimension_numbers = #tpu.dot_dimension_numbers<[1], [0], [0], [1], [0, 0, 1, 1], [], []>} : vector<64x32xf32>, vector<32x512xf32>, vector<64x512xf32> -> vector<64x512xf32>
    %32 = arith.mulf %6, %6 : vector<64x32xf32>
    %cst_20 = arith.constant dense<0.000000e+00> : vector<64xf32>
    %33 = vector.multi_reduction <add>, %32, %cst_20 [1] : vector<64x32xf32> to vector<64xf32>
    %34 = vector.shape_cast %33 : vector<64xf32> to vector<64x1xf32>
    %35 = math.sqrt %34 : vector<64x1xf32>
    %36 = arith.mulf %30, %30 : vector<64x32xf32>
    %cst_21 = arith.constant dense<0.000000e+00> : vector<64xf32>
    %37 = vector.multi_reduction <add>, %36, %cst_21 [1] : vector<64x32xf32> to vector<64xf32>
    %38 = vector.shape_cast %37 : vector<64xf32> to vector<64x1xf32>
    %39 = math.sqrt %38 : vector<64x1xf32>
    %40 = arith.mulf %6, %30 : vector<64x32xf32>
    %cst_22 = arith.constant dense<0.000000e+00> : vector<64xf32>
    %41 = vector.multi_reduction <add>, %40, %cst_22 [1] : vector<64x32xf32> to vector<64xf32>
    %42 = vector.shape_cast %41 : vector<64xf32> to vector<64x1xf32>
    %43 = arith.mulf %35, %39 : vector<64x1xf32>
    %cst_23 = arith.constant 9.99999993E-9 : f32
    %44 = vector.broadcast %cst_23 : f32 to vector<64x1xf32>
    %45 = arith.maximumf %43, %44 : vector<64x1xf32>
    %46 = arith.divf %42, %45 : vector<64x1xf32>
    %cst_24 = arith.constant 1.000000e+00 : f32
    %47 = vector.broadcast %cst_24 : f32 to vector<64x1xf32>
    %48 = arith.subf %47, %46 : vector<64x1xf32>
    %cst_25 = arith.constant 2.000000e-01 : f32
    %49 = vector.broadcast %cst_25 : f32 to vector<64x1xf32>
    %50 = arith.mulf %48, %49 : vector<64x1xf32>
    %51 = arith.addf %16, %50 : vector<64x1xf32>
    %cst_26 = arith.constant 1.000000e+00 : f32
    %52 = vector.broadcast %cst_26 : f32 to vector<64x1xf32>
    %53 = arith.subf %52, %46 : vector<64x1xf32>
    %cst_27 = arith.constant 1.000000e-01 : f32
    %54 = vector.broadcast %cst_27 : f32 to vector<64x1xf32>
    %55 = arith.mulf %53, %54 : vector<64x1xf32>
    %56 = arith.subf %19, %55 : vector<64x1xf32>
    %57 = vector.broadcast %56 : vector<64x1xf32> to vector<64x512xf32>
    %58 = arith.cmpf ogt, %31, %57 : vector<64x512xf32>
    %59 = arith.extui %58 : vector<64x512xi1> to vector<64x512xi32>
    %60 = arith.sitofp %59 : vector<64x512xi32> to vector<64x512xf32>
    %cst_28 = arith.constant dense<0.000000e+00> : vector<64x32xf32>
    %61 = tpu.matmul %60, %3, %cst_28 {dimension_numbers = #tpu.dot_dimension_numbers<[1], [0], [0], [1], [0, 0, 1, 1], [], []>} : vector<64x512xf32>, vector<512x32xf32>, vector<64x32xf32> -> vector<64x32xf32>
    %cst_29 = arith.constant 0.001953125 : f32
    %62 = vector.broadcast %cst_29 : f32 to vector<64x32xf32>
    %63 = arith.mulf %61, %62 : vector<64x32xf32>
    %64 = arith.mulf %63, %63 : vector<64x32xf32>
    %cst_30 = arith.constant dense<0.000000e+00> : vector<64xf32>
    %65 = vector.multi_reduction <add>, %64, %cst_30 [1] : vector<64x32xf32> to vector<64xf32>
    %66 = vector.shape_cast %65 : vector<64xf32> to vector<64x1xf32>
    %67 = math.sqrt %66 : vector<64x1xf32>
    %cst_31 = arith.constant 9.99999996E-13 : f32
    %68 = vector.broadcast %cst_31 : f32 to vector<64x1xf32>
    %69 = arith.maximumf %67, %68 : vector<64x1xf32>
    %70 = vector.broadcast %69 : vector<64x1xf32> to vector<64x32xf32>
    %71 = arith.divf %63, %70 : vector<64x32xf32>
    %cst_32 = arith.constant dense<0.000000e+00> : vector<64x512xf32>
    %72 = tpu.matmul %71, %4, %cst_32 {dimension_numbers = #tpu.dot_dimension_numbers<[1], [0], [0], [1], [0, 0, 1, 1], [], []>} : vector<64x32xf32>, vector<32x512xf32>, vector<64x512xf32> -> vector<64x512xf32>
    %73 = arith.mulf %30, %30 : vector<64x32xf32>
    %cst_33 = arith.constant dense<0.000000e+00> : vector<64xf32>
    %74 = vector.multi_reduction <add>, %73, %cst_33 [1] : vector<64x32xf32> to vector<64xf32>
    %75 = vector.shape_cast %74 : vector<64xf32> to vector<64x1xf32>
    %76 = math.sqrt %75 : vector<64x1xf32>
    %77 = arith.mulf %71, %71 : vector<64x32xf32>
    %cst_34 = arith.constant dense<0.000000e+00> : vector<64xf32>
    %78 = vector.multi_reduction <add>, %77, %cst_34 [1] : vector<64x32xf32> to vector<64xf32>
    %79 = vector.shape_cast %78 : vector<64xf32> to vector<64x1xf32>
    %80 = math.sqrt %79 : vector<64x1xf32>
    %81 = arith.mulf %30, %71 : vector<64x32xf32>
    %cst_35 = arith.constant dense<0.000000e+00> : vector<64xf32>
    %82 = vector.multi_reduction <add>, %81, %cst_35 [1] : vector<64x32xf32> to vector<64xf32>
    %83 = vector.shape_cast %82 : vector<64xf32> to vector<64x1xf32>
    %84 = arith.mulf %76, %80 : vector<64x1xf32>
    %cst_36 = arith.constant 9.99999993E-9 : f32
    %85 = vector.broadcast %cst_36 : f32 to vector<64x1xf32>
    %86 = arith.maximumf %84, %85 : vector<64x1xf32>
    %87 = arith.divf %83, %86 : vector<64x1xf32>
    %cst_37 = arith.constant 1.000000e+00 : f32
    %88 = vector.broadcast %cst_37 : f32 to vector<64x1xf32>
    %89 = arith.subf %88, %87 : vector<64x1xf32>
    %cst_38 = arith.constant 2.000000e-01 : f32
    %90 = vector.broadcast %cst_38 : f32 to vector<64x1xf32>
    %91 = arith.mulf %89, %90 : vector<64x1xf32>
    %92 = arith.addf %51, %91 : vector<64x1xf32>
    %cst_39 = arith.constant 1.000000e+00 : f32
    %93 = vector.broadcast %cst_39 : f32 to vector<64x1xf32>
    %94 = arith.subf %93, %87 : vector<64x1xf32>
    %cst_40 = arith.constant 1.000000e-01 : f32
    %95 = vector.broadcast %cst_40 : f32 to vector<64x1xf32>
    %96 = arith.mulf %94, %95 : vector<64x1xf32>
    %97 = arith.subf %56, %96 : vector<64x1xf32>
    %98 = vector.broadcast %97 : vector<64x1xf32> to vector<64x512xf32>
    %99 = arith.cmpf ogt, %72, %98 : vector<64x512xf32>
    %100 = arith.extui %99 : vector<64x512xi1> to vector<64x512xi32>
    %101 = arith.sitofp %100 : vector<64x512xi32> to vector<64x512xf32>
    %102 = vector.broadcast %92 : vector<64x1xf32> to vector<64x512xf32>
    %103 = arith.cmpf ogt, %102, %72 : vector<64x512xf32>
    %104 = arith.extui %103 : vector<64x512xi1> to vector<64x512xi32>
    %105 = arith.sitofp %104 : vector<64x512xi32> to vector<64x512xf32>
    %106 = tpu.iota {dimensions = array<i32: 1>} : vector<64x512xi32>
    %107 = vector.broadcast %8 : vector<64x1xi32> to vector<64x512xi32>
    %108 = arith.cmpi ne, %106, %107 : vector<64x512xi32>
    %109 = arith.extui %108 : vector<64x512xi1> to vector<64x512xi32>
    %110 = arith.sitofp %109 : vector<64x512xi32> to vector<64x512xf32>
    %111 = arith.mulf %101, %110 : vector<64x512xf32>
    %112 = arith.maximumf %111, %105 : vector<64x512xf32>
    %113 = arith.mulf %112, %110 : vector<64x512xf32>
    %c0_41 = arith.constant 0 : index
    %c0_42 = arith.constant 0 : index
    %c0_43 = arith.constant 0 : index
    %114 = vector.load %arg5[%c0_41, %c0_42, %c0_43] : memref<1x64x64xf32, #tpu.memory_space<vmem>>, vector<1x64x64xf32>
    %115 = vector.shape_cast %114 : vector<1x64x64xf32> to vector<64x64xf32>
    %c0_44 = arith.constant 0 : index
    %c0_45 = arith.constant 0 : index
    %116 = vector.load %arg3[%c0_44, %c0_45] : memref<64x512xf32, #tpu.memory_space<vmem>>, vector<64x512xf32>
    %cst_46 = arith.constant dense<0.000000e+00> : vector<64x512xf32>
    %117 = tpu.matmul %115, %116, %cst_46 {dimension_numbers = #tpu.dot_dimension_numbers<[1], [0], [0], [1], [0, 0, 1, 1], [], []>} : vector<64x64xf32>, vector<64x512xf32>, vector<64x512xf32> -> vector<64x512xf32>
    %cst_47 = arith.constant 14.2857141 : f32
    %118 = vector.broadcast %cst_47 : f32 to vector<64x512xf32>
    %119 = arith.mulf %117, %118 : vector<64x512xf32>
    %cst_48 = arith.constant dense<0xFF800000> : vector<64xf32>
    %120 = vector.multi_reduction <maximumf>, %119, %cst_48 [1] : vector<64x512xf32> to vector<64xf32>
    %121 = vector.shape_cast %120 : vector<64xf32> to vector<64x1xf32>
    %122 = vector.broadcast %121 : vector<64x1xf32> to vector<64x512xf32>
    %123 = arith.subf %119, %122 : vector<64x512xf32>
    %124 = math.exp %123 : vector<64x512xf32>
    %125 = arith.mulf %124, %113 : vector<64x512xf32>
    %cst_49 = arith.constant dense<0.000000e+00> : vector<64xf32>
    %126 = vector.multi_reduction <add>, %125, %cst_49 [1] : vector<64x512xf32> to vector<64xf32>
    %127 = vector.shape_cast %126 : vector<64xf32> to vector<64x1xf32>
    %cst_50 = arith.constant 1.000000e-30 : f32
    %128 = vector.broadcast %cst_50 : f32 to vector<64x1xf32>
    %129 = arith.maximumf %127, %128 : vector<64x1xf32>
    %130 = math.log %129 : vector<64x1xf32>
    %131 = vector.broadcast %130 : vector<64x1xf32> to vector<64x512xf32>
    %132 = arith.subf %123, %131 : vector<64x512xf32>
    %cst_51 = arith.constant dense<0.000000e+00> : vector<64xf32>
    %133 = vector.multi_reduction <add>, %111, %cst_51 [1] : vector<64x512xf32> to vector<64xf32>
    %134 = vector.shape_cast %133 : vector<64xf32> to vector<64x1xf32>
    %cst_52 = arith.constant 0.000000e+00 : f32
    %135 = vector.broadcast %cst_52 : f32 to vector<64x1xf32>
    %136 = arith.cmpf ogt, %134, %135 : vector<64x1xf32>
    %137 = arith.extui %136 : vector<64x1xi1> to vector<64x1xi32>
    %138 = arith.sitofp %137 : vector<64x1xi32> to vector<64x1xf32>
    %cst_53 = arith.constant 0.000000e+00 : f32
    %139 = vector.broadcast %cst_53 : f32 to vector<64x1xf32>
    %140 = arith.cmpf ogt, %134, %139 : vector<64x1xf32>
    %141 = arith.mulf %111, %132 : vector<64x512xf32>
    %cst_54 = arith.constant dense<0.000000e+00> : vector<64xf32>
    %142 = vector.multi_reduction <add>, %141, %cst_54 [1] : vector<64x512xf32> to vector<64xf32>
    %143 = vector.shape_cast %142 : vector<64xf32> to vector<64x1xf32>
    %cst_55 = arith.constant 1.000000e+00 : f32
    %144 = vector.broadcast %cst_55 : f32 to vector<64x1xf32>
    %145 = arith.maximumf %134, %144 : vector<64x1xf32>
    %146 = arith.divf %143, %145 : vector<64x1xf32>
    %cst_56 = arith.constant 0.000000e+00 : f32
    %147 = vector.broadcast %cst_56 : f32 to vector<64x1xf32>
    %148 = arith.select %140, %146, %147 : vector<64x1xi1>, vector<64x1xf32>
    %149 = vector.shape_cast %138 : vector<64x1xf32> to vector<1x64x1xf32>
    %cst_57 = arith.constant dense<0.000000e+00> : vector<1xf32>
    %150 = vector.multi_reduction <add>, %149, %cst_57 [1, 2] : vector<1x64x1xf32> to vector<1xf32>
    %151 = vector.shape_cast %150 : vector<1xf32> to vector<1x1x1xf32>
    %152 = vector.extract %151[0, 0, 0] : f32 from vector<1x1x1xf32>
    %153 = vector.broadcast %152 : f32 to vector<1x1xf32>
    %cst_58 = arith.constant 1.000000e+00 : f32
    %154 = vector.broadcast %cst_58 : f32 to vector<1x1xf32>
    %155 = arith.maximumf %153, %154 : vector<1x1xf32>
    %c0_59 = arith.constant 0 : index
    %c0_60 = arith.constant 0 : index
    %156 = vector.load %arg7[%c0_59, %c0_60] : memref<1x1xf32, #tpu.memory_space<vmem>>, vector<1x1xf32>
    %157 = vector.shape_cast %148 : vector<64x1xf32> to vector<1x64x1xf32>
    %cst_61 = arith.constant dense<0.000000e+00> : vector<1xf32>
    %158 = vector.multi_reduction <add>, %157, %cst_61 [1, 2] : vector<1x64x1xf32> to vector<1xf32>
    %159 = vector.shape_cast %158 : vector<1xf32> to vector<1x1x1xf32>
    %160 = vector.extract %159[0, 0, 0] : f32 from vector<1x1x1xf32>
    %161 = vector.broadcast %160 : f32 to vector<1x1xf32>
    %cst_62 = arith.constant -1.000000e+00 : f32
    %162 = vector.broadcast %cst_62 : f32 to vector<1x1xf32>
    %163 = arith.mulf %162, %161 : vector<1x1xf32>
    %164 = arith.divf %163, %155 : vector<1x1xf32>
    %165 = arith.addf %156, %164 : vector<1x1xf32>
    %c0_63 = arith.constant 0 : index
    %c0_64 = arith.constant 0 : index
    %166 = vector.load %arg7[%c0_63, %c0_64] : memref<1x1xf32, #tpu.memory_space<vmem>>, vector<1x1xf32>
    tpu.vector_store %arg7[%c0_63, %c0_64], %165 {strides = array<i32>} : memref<1x1xf32, #tpu.memory_space<vmem>>, vector<1x1xf32>,
    %c0_65 = arith.constant 0 : index
    %c0_66 = arith.constant 0 : index
    %167 = vector.load %arg8[%c0_65, %c0_66] : memref<1x1xf32, #tpu.memory_space<vmem>>, vector<1x1xf32>
    %168 = vector.shape_cast %111 : vector<64x512xf32> to vector<1x64x512xf32>
    %cst_67 = arith.constant dense<0.000000e+00> : vector<1xf32>
    %169 = vector.multi_reduction <add>, %168, %cst_67 [1, 2] : vector<1x64x512xf32> to vector<1xf32>
    %170 = vector.shape_cast %169 : vector<1xf32> to vector<1x1x1xf32>
    %171 = vector.extract %170[0, 0, 0] : f32 from vector<1x1x1xf32>
    %172 = vector.broadcast %171 : f32 to vector<1x1xf32>
    %cst_68 = arith.constant 1.562500e-02 : f32
    %173 = vector.broadcast %cst_68 : f32 to vector<1x1xf32>
    %174 = arith.mulf %172, %173 : vector<1x1xf32>
    %175 = arith.addf %167, %174 : vector<1x1xf32>
    %c0_69 = arith.constant 0 : index
    %c0_70 = arith.constant 0 : index
    %176 = vector.load %arg8[%c0_69, %c0_70] : memref<1x1xf32, #tpu.memory_space<vmem>>, vector<1x1xf32>
    tpu.vector_store %arg8[%c0_69, %c0_70], %175 {strides = array<i32>} : memref<1x1xf32, #tpu.memory_space<vmem>>, vector<1x1xf32>,
    %c0_71 = arith.constant 0 : index
    %c0_72 = arith.constant 0 : index
    %177 = vector.load %arg9[%c0_71, %c0_72] : memref<1x1xf32, #tpu.memory_space<vmem>>, vector<1x1xf32>
    %178 = vector.shape_cast %105 : vector<64x512xf32> to vector<1x64x512xf32>
    %cst_73 = arith.constant dense<0.000000e+00> : vector<1xf32>
    %179 = vector.multi_reduction <add>, %178, %cst_73 [1, 2] : vector<1x64x512xf32> to vector<1xf32>
    %180 = vector.shape_cast %179 : vector<1xf32> to vector<1x1x1xf32>
    %181 = vector.extract %180[0, 0, 0] : f32 from vector<1x1x1xf32>
    %182 = vector.broadcast %181 : f32 to vector<1x1xf32>
    %cst_74 = arith.constant 1.562500e-02 : f32
    %183 = vector.broadcast %cst_74 : f32 to vector<1x1xf32>
    %184 = arith.mulf %182, %183 : vector<1x1xf32>
    %185 = arith.addf %177, %184 : vector<1x1xf32>
    %c0_75 = arith.constant 0 : index
    %c0_76 = arith.constant 0 : index
    %186 = vector.load %arg9[%c0_75, %c0_76] : memref<1x1xf32, #tpu.memory_space<vmem>>, vector<1x1xf32>
    tpu.vector_store %arg9[%c0_75, %c0_76], %185 {strides = array<i32>} : memref<1x1xf32, #tpu.memory_space<vmem>>, vector<1x1xf32>,
    %c1_i32 = arith.constant 1 : i32
    %187 = arith.cmpi eq, %arg0, %c1_i32 : i32
    %188 = arith.extui %187 : i1 to i32
    %c0_i32_77 = arith.constant 0 : i32
    %189 = arith.cmpi ne, %188, %c0_i32_77 : i32
    scf.if %189 {
      %c0_78 = arith.constant 0 : index
      %c0_79 = arith.constant 0 : index
      %190 = vector.load %arg7[%c0_78, %c0_79] : memref<1x1xf32, #tpu.memory_space<vmem>>, vector<1x1xf32>
      %cst_80 = arith.constant 5.000000e-01 : f32
      %191 = vector.broadcast %cst_80 : f32 to vector<1x1xf32>
      %192 = arith.mulf %190, %191 : vector<1x1xf32>
      %c0_81 = arith.constant 0 : index
      %c0_82 = arith.constant 0 : index
      %193 = vector.load %arg7[%c0_81, %c0_82] : memref<1x1xf32, #tpu.memory_space<vmem>>, vector<1x1xf32>
      tpu.vector_store %arg7[%c0_81, %c0_82], %192 {strides = array<i32>} : memref<1x1xf32, #tpu.memory_space<vmem>>, vector<1x1xf32>,
      %c0_83 = arith.constant 0 : index
      %c0_84 = arith.constant 0 : index
      %194 = vector.load %arg8[%c0_83, %c0_84] : memref<1x1xf32, #tpu.memory_space<vmem>>, vector<1x1xf32>
      %cst_85 = arith.constant 5.000000e-01 : f32
      %195 = vector.broadcast %cst_85 : f32 to vector<1x1xf32>
      %196 = arith.mulf %194, %195 : vector<1x1xf32>
      %c0_86 = arith.constant 0 : index
      %c0_87 = arith.constant 0 : index
      %197 = vector.load %arg8[%c0_86, %c0_87] : memref<1x1xf32, #tpu.memory_space<vmem>>, vector<1x1xf32>
      tpu.vector_store %arg8[%c0_86, %c0_87], %196 {strides = array<i32>} : memref<1x1xf32, #tpu.memory_space<vmem>>, vector<1x1xf32>,
      %c0_88 = arith.constant 0 : index
      %c0_89 = arith.constant 0 : index
      %198 = vector.load %arg9[%c0_88, %c0_89] : memref<1x1xf32, #tpu.memory_space<vmem>>, vector<1x1xf32>
      %cst_90 = arith.constant 5.000000e-01 : f32
      %199 = vector.broadcast %cst_90 : f32 to vector<1x1xf32>
      %200 = arith.mulf %198, %199 : vector<1x1xf32>
      %c0_91 = arith.constant 0 : index
      %c0_92 = arith.constant 0 : index
      %201 = vector.load %arg9[%c0_91, %c0_92] : memref<1x1xf32, #tpu.memory_space<vmem>>, vector<1x1xf32>
      tpu.vector_store %arg9[%c0_91, %c0_92], %200 {strides = array<i32>} : memref<1x1xf32, #tpu.memory_space<vmem>>, vector<1x1xf32>,
    } else {
    }
    return
  }
  func.func @transform_0(%arg0: i32) -> (i32, i32) {
    %c0_i32 = arith.constant 0 : i32
    %c0_i32_0 = arith.constant 0 : i32
    %c0_i32_1 = arith.constant 0 : i32
    return %c0_i32, %c0_i32_0 : i32, i32
  }
  func.func @transform_1(%arg0: i32) -> (i32, i32) {
    %c0_i32 = arith.constant 0 : i32
    %c0_i32_0 = arith.constant 0 : i32
    %c0_i32_1 = arith.constant 0 : i32
    return %c0_i32, %c0_i32_0 : i32, i32
  }
  func.func @transform_2(%arg0: i32) -> (i32, i32) {
    %c0_i32 = arith.constant 0 : i32
    %c0_i32_0 = arith.constant 0 : i32
    %c0_i32_1 = arith.constant 0 : i32
    return %c0_i32, %c0_i32_0 : i32, i32
  }
  func.func @transform_3(%arg0: i32) -> (i32, i32, i32) {
    %c0_i32 = arith.constant 0 : i32
    %c0_i32_0 = arith.constant 0 : i32
    %c0_i32_1 = arith.constant 0 : i32
    return %arg0, %c0_i32, %c0_i32_0 : i32, i32, i32
  }
  func.func @transform_4(%arg0: i32) -> (i32, i32, i32) {
    %c0_i32 = arith.constant 0 : i32
    %c0_i32_0 = arith.constant 0 : i32
    %c0_i32_1 = arith.constant 0 : i32
    return %arg0, %c0_i32, %c0_i32_0 : i32, i32, i32
  }
  func.func @transform_5(%arg0: i32) -> (i32, i32, i32) {
    %c0_i32 = arith.constant 0 : i32
    %c0_i32_0 = arith.constant 0 : i32
    %c0_i32_1 = arith.constant 0 : i32
    return %arg0, %c0_i32, %c0_i32_0 : i32, i32, i32
  }
  func.func @transform_6(%arg0: i32) -> (i32, i32) {
    %c0_i32 = arith.constant 0 : i32
    %c0_i32_0 = arith.constant 0 : i32
    %c0_i32_1 = arith.constant 0 : i32
    return %c0_i32, %c0_i32_0 : i32, i32
  }
  func.func @transform_7(%arg0: i32) -> (i32, i32) {
    %c0_i32 = arith.constant 0 : i32
    %c0_i32_0 = arith.constant 0 : i32
    %c0_i32_1 = arith.constant 0 : i32
    return %c0_i32, %c0_i32_0 : i32, i32
  }
  func.func @transform_8(%arg0: i32) -> (i32, i32) {
    %c0_i32 = arith.constant 0 : i32
    %c0_i32_0 = arith.constant 0 : i32
    %c0_i32_1 = arith.constant 0 : i32
    return %c0_i32, %c0_i32_0 : i32, i32
  }
}

</mosaic_0001>

<llo_original>
// kernel: tpu_custom_call.1
$region0: #{tpu_custom_call.1}
  #allocation0 [shape = 'u32[]', space=smem, size = 0x4, offset = 0x4, fixed_abs, tag = 'smem constant byte address 0x4 - core index']
  #allocation1 [shape = 'u32[144,128]{1,0:T(1,128)}', space=vmem, size = 0x12000, scoped, tag = 'internal scratch']
  %s0 = inlined_call_operand.vmem [shape: f32[512,32], index: 0, kind: input, shape index: {}]
  %s1 = inlined_call_operand.vmem [shape: f32[32,512], index: 1, kind: input, shape index: {}]
  %s2 = inlined_call_operand.vmem [shape: f32[64,512], index: 2, kind: input, shape index: {}]
  %s3 = inlined_call_operand.vmem [shape: f32[2,64,32], index: 3, kind: input, shape index: {}]
  %s4 = inlined_call_operand.vmem [shape: f32[2,64,64], index: 4, kind: input, shape index: {}]
  %s5 = inlined_call_operand.vmem [shape: s32[2,64,1], index: 5, kind: input, shape index: {}]
  %s6 = inlined_call_operand.hbm [shape: f32[1,1], index: 6, kind: output, shape index: {0}]
  %s7 = inlined_call_operand.hbm [shape: f32[1,1], index: 7, kind: output, shape index: {1}]
  %s8 = inlined_call_operand.hbm [shape: f32[1,1], index: 8, kind: output, shape index: {2}]
  %9 = xla_tuple %s6, %s7, %s8
  %s10 = sld [smem:[#allocation0]]
  $region81: #{tpu_custom_call.1} parent=0
    _
  %s12 = ssub.s32 1, %s10
  %s13 = scalar_select 0, %s12, %s10
  $region1: #{tpu_custom_call.1} parent=0
    #allocation2 [shape = 'u8[512]{0}', space=vmem, size = 0x400, scoped, tag = 'output window, operand 0, single buffered']
    #allocation3 [shape = 's32[2]{0}', space=sflag, size = 0x8, scoped, tag = 'scoped memory for tpu_custom_call.1']
    #allocation4 [shape = 'u8[512]{0}', space=vmem, size = 0x400, scoped, tag = 'output window, operand 1, single buffered']
    #allocation5 [shape = 's32[1]{0}', space=sflag, size = 0x4, scoped, tag = 'scoped memory for tpu_custom_call.1']
    #allocation6 [shape = 'u8[512]{0}', space=vmem, size = 0x400, scoped, tag = 'output window, operand 2, single buffered']
    %14 = vsyncpa [#allocation3], 0
    %15 = vsyncpa [#allocation5], 0
    loop: start=0, step=1, limit=4
    $region2: #{tpu_custom_call.1} parent=1 // loop_pre_header
      _
    $region3: #{tpu_custom_call.1} parent=1 // loop_header
      %s17 = sphi 0, %s21
      %p18 = scmp.ge.s32.totalorder %s17, 4
      %s25 = sphi 0, %s25
      %s27 = sphi 0, %s25
      %s28 = sphi 0, %s27
      %s42 = sphi 0, %s28
      %s46 = sphi 0, %s46
      %s48 = sphi 0, %s46
      %s49 = sphi 0, %s48
      %s63 = sphi 0, %s49
      %s67 = sphi 0, %s67
      %s69 = sphi 0, %s67
      %s70 = sphi 0, %s69
      %s84 = sphi 0, %s70
      %s90 = sphi 0, %s92
      %s93 = sphi 0, %s90
      %s94 = sphi 0, %s93
      %s110 = sphi 0, %s94
      %s116 = sphi 0, %s118
      %s119 = sphi 0, %s116
      %s120 = sphi 0, %s119
      %s136 = sphi 0, %s120
      %s142 = sphi 0, %s144
      %s145 = sphi 0, %s142
      %s146 = sphi 0, %s145
      %s162 = sphi 0, %s146
      %s166 = sphi 0, %s166
      %s168 = sphi 0, %s166
      %s169 = sphi 0, %s168
      %s183 = sphi 0, %s169
      %s187 = sphi 0, %s187
      %s189 = sphi 0, %s187
      %s190 = sphi 0, %s189
      %s204 = sphi 0, %s190
      %s208 = sphi 0, %s208
      %s210 = sphi 0, %s208
      %s211 = sphi 0, %s210
      %s225 = sphi 0, %s211
    $region4: #{tpu_custom_call.1} parent=1 // loop_header_branch
      %20 = sbr.rel (%p18) target = $region8
    $region5: #{tpu_custom_call.1} parent=1 // loop_body
      %s22 = ssub.s32 %s17, 1
      %s23 = ssub.s32 %s17, 2
      %s24 = sadd.s32 %s17, 1
      %s26 = sadd.s32 %s25, 1
      %p29 = scmp.eq.s32.totalorder %s17, 1
      %p30 = scmp.ne.s32.totalorder %s25, %s27
      %p31 = scmp.eq.s32.totalorder %s17, 0
      %p32 = por %p30, %p31
      %p33 = scmp.ne.s32.totalorder %s25, %s27
      %p34 = scmp.eq.s32.totalorder %s22, 1
      %p35 = por %p33, %p34
      %p36 = scmp.ne.s32.totalorder %s27, %s28
      %p37 = scmp.eq.s32.totalorder %s22, 0
      %p38 = por %p36, %p37
      %p39 = scmp.ne.s32.totalorder %s27, %s28
      %p40 = scmp.eq.s32.totalorder %s23, 1
      %p41 = por %p39, %p40
      %p43 = scmp.ne.s32.totalorder %s28, %s42
      %p44 = scmp.eq.s32.totalorder %s23, 0
      %p45 = por %p43, %p44
      %s47 = sadd.s32 %s46, 1
      %p50 = scmp.eq.s32.totalorder %s17, 1
      %p51 = scmp.ne.s32.totalorder %s46, %s48
      %p52 = scmp.eq.s32.totalorder %s17, 0
      %p53 = por %p51, %p52
      %p54 = scmp.ne.s32.totalorder %s46, %s48
      %p55 = scmp.eq.s32.totalorder %s22, 1
      %p56 = por %p54, %p55
      %p57 = scmp.ne.s32.totalorder %s48, %s49
      %p58 = scmp.eq.s32.totalorder %s22, 0
      %p59 = por %p57, %p58
      %p60 = scmp.ne.s32.totalorder %s48, %s49
      %p61 = scmp.eq.s32.totalorder %s23, 1
      %p62 = por %p60, %p61
      %p64 = scmp.ne.s32.totalorder %s49, %s63
      %p65 = scmp.eq.s32.totalorder %s23, 0
      %p66 = por %p64, %p65
      %s68 = sadd.s32 %s67, 1
      %p71 = scmp.eq.s32.totalorder %s17, 1
      %p72 = scmp.ne.s32.totalorder %s67, %s69
      %p73 = scmp.eq.s32.totalorder %s17, 0
      %p74 = por %p72, %p73
      %p75 = scmp.ne.s32.totalorder %s67, %s69
      %p76 = scmp.eq.s32.totalorder %s22, 1
      %p77 = por %p75, %p76
      %p78 = scmp.ne.s32.totalorder %s69, %s70
      %p79 = scmp.eq.s32.totalorder %s22, 0
      %p80 = por %p78, %p79
      %p81 = scmp.ne.s32.totalorder %s69, %s70
      %p82 = scmp.eq.s32.totalorder %s23, 1
      %p83 = por %p81, %p82
      %p85 = scmp.ne.s32.totalorder %s70, %s84
      %p86 = scmp.eq.s32.totalorder %s23, 0
      %p87 = por %p85, %p86
      %s88 = ssub.s32 %s17, %s24
      %p89 = scmp.eq.s32.totalorder %s88, 0
      %s91 = sadd.s32 %s90, 1
      %s92 = scalar_select %p89, %s90, %s91
      %p95 = pneg %p89
      %p96 = scmp.eq.s32.totalorder %s17, 1
      %p97 = por %p95, %p96
      %p98 = scmp.ne.s32.totalorder %s90, %s93
      %p99 = scmp.eq.s32.totalorder %s17, 0
      %p100 = por %p98, %p99
      %p101 = scmp.ne.s32.totalorder %s90, %s93
      %p102 = scmp.eq.s32.totalorder %s22, 1
      %p103 = por %p101, %p102
      %p104 = scmp.ne.s32.totalorder %s93, %s94
      %p105 = scmp.eq.s32.totalorder %s22, 0
      %p106 = por %p104, %p105
      %p107 = scmp.ne.s32.totalorder %s93, %s94
      %p108 = scmp.eq.s32.totalorder %s23, 1
      %p109 = por %p107, %p108
      %p111 = scmp.ne.s32.totalorder %s94, %s110
      %p112 = scmp.eq.s32.totalorder %s23, 0
      %p113 = por %p111, %p112
      %s114 = ssub.s32 %s17, %s24
      %p115 = scmp.eq.s32.totalorder %s114, 0
      %s117 = sadd.s32 %s116, 1
      %s118 = scalar_select %p115, %s116, %s117
      %p121 = pneg %p115
      %p122 = scmp.eq.s32.totalorder %s17, 1
      %p123 = por %p121, %p122
      %p124 = scmp.ne.s32.totalorder %s116, %s119
      %p125 = scmp.eq.s32.totalorder %s17, 0
      %p126 = por %p124, %p125
      %p127 = scmp.ne.s32.totalorder %s116, %s119
      %p128 = scmp.eq.s32.totalorder %s22, 1
      %p129 = por %p127, %p128
      %p130 = scmp.ne.s32.totalorder %s119, %s120
      %p131 = scmp.eq.s32.totalorder %s22, 0
      %p132 = por %p130, %p131
      %p133 = scmp.ne.s32.totalorder %s119, %s120
      %p134 = scmp.eq.s32.totalorder %s23, 1
      %p135 = por %p133, %p134
      %p137 = scmp.ne.s32.totalorder %s120, %s136
      %p138 = scmp.eq.s32.totalorder %s23, 0
      %p139 = por %p137, %p138
      %s140 = ssub.s32 %s17, %s24
      %p141 = scmp.eq.s32.totalorder %s140, 0
      %s143 = sadd.s32 %s142, 1
      %s144 = scalar_select %p141, %s142, %s143
      %p147 = pneg %p141
      %p148 = scmp.eq.s32.totalorder %s17, 1
      %p149 = por %p147, %p148
      %p150 = scmp.ne.s32.totalorder %s142, %s145
      %p151 = scmp.eq.s32.totalorder %s17, 0
      %p152 = por %p150, %p151
      %p153 = scmp.ne.s32.totalorder %s142, %s145
      %p154 = scmp.eq.s32.totalorder %s22, 1
      %p155 = por %p153, %p154
      %p156 = scmp.ne.s32.totalorder %s145, %s146
      %p157 = scmp.eq.s32.totalorder %s22, 0
      %p158 = por %p156, %p157
      %p159 = scmp.ne.s32.totalorder %s145, %s146
      %p160 = scmp.eq.s32.totalorder %s23, 1
      %p161 = por %p159, %p160
      %p163 = scmp.ne.s32.totalorder %s146, %s162
      %p164 = scmp.eq.s32.totalorder %s23, 0
      %p165 = por %p163, %p164
      %s167 = sadd.s32 %s166, 1
      %p170 = scmp.eq.s32.totalorder %s17, 1
      %p171 = scmp.ne.s32.totalorder %s166, %s168
      %p172 = scmp.eq.s32.totalorder %s17, 0
      %p173 = por %p171, %p172
      %p174 = scmp.ne.s32.totalorder %s166, %s168
      %p175 = scmp.eq.s32.totalorder %s22, 1
      %p176 = por %p174, %p175
      %p177 = scmp.ne.s32.totalorder %s168, %s169
      %p178 = scmp.eq.s32.totalorder %s22, 0
      %p179 = por %p177, %p178
      %p180 = scmp.ne.s32.totalorder %s168, %s169
      %p181 = scmp.eq.s32.totalorder %s23, 1
      %p182 = por %p180, %p181
      %p184 = scmp.ne.s32.totalorder %s169, %s183
      %p185 = scmp.eq.s32.totalorder %s23, 0
      %p186 = por %p184, %p185
      %s188 = sadd.s32 %s187, 1
      %p191 = scmp.eq.s32.totalorder %s17, 1
      %p192 = scmp.ne.s32.totalorder %s187, %s189
      %p193 = scmp.eq.s32.totalorder %s17, 0
      %p194 = por %p192, %p193
      %p195 = scmp.ne.s32.totalorder %s187, %s189
      %p196 = scmp.eq.s32.totalorder %s22, 1
      %p197 = por %p195, %p196
      %p198 = scmp.ne.s32.totalorder %s189, %s190
      %p199 = scmp.eq.s32.totalorder %s22, 0
      %p200 = por %p198, %p199
      %p201 = scmp.ne.s32.totalorder %s189, %s190
      %p202 = scmp.eq.s32.totalorder %s23, 1
      %p203 = por %p201, %p202
      %p205 = scmp.ne.s32.totalorder %s190, %s204
      %p206 = scmp.eq.s32.totalorder %s23, 0
      %p207 = por %p205, %p206
      %s209 = sadd.s32 %s208, 1
      %p212 = scmp.eq.s32.totalorder %s17, 1
      %p213 = scmp.ne.s32.totalorder %s208, %s210
      %p214 = scmp.eq.s32.totalorder %s17, 0
      %p215 = por %p213, %p214
      %p216 = scmp.ne.s32.totalorder %s208, %s210
      %p217 = scmp.eq.s32.totalorder %s22, 1
      %p218 = por %p216, %p217
      %p219 = scmp.ne.s32.totalorder %s210, %s211
      %p220 = scmp.eq.s32.totalorder %s22, 0
      %p221 = por %p219, %p220
      %p222 = scmp.ne.s32.totalorder %s210, %s211
      %p223 = scmp.eq.s32.totalorder %s23, 1
      %p224 = por %p222, %p223
      %p226 = scmp.ne.s32.totalorder %s211, %s225
      %p227 = scmp.eq.s32.totalorder %s23, 0
      %p228 = por %p226, %p227
      %p229 = scmp.le.s32.totalorder 1, %s17
      %p230 = scmp.lt.s32.totalorder %s17, 3
      %p231 = pnand %p229, %p230
      %p232 = pneg %p231
      // Predicated region
      $region9: #{tpu_custom_call.1} parent=5 // pred_check
        _
      $region10: #{tpu_custom_call.1} parent=5 // pred_check_branch
        %234 = sbr.rel (%p231) target = $region12
      $region11: #{tpu_custom_call.1} parent=5 // pred_region
        %s235 = ssub.s32 %s17, 1
        // Predicated region
        $region13: #{tpu_custom_call.1} parent=11 // pred_check
          %p236 = pneg %p38
        $region14: #{tpu_custom_call.1} parent=11 // pred_check_branch
          %238 = sbr.rel (%p236) target = $region16
        $region15: #{tpu_custom_call.1} parent=11 // pred_region
          _
        $region16: #{tpu_custom_call.1} parent=11 // pred_fallthru
          _
        // Predicated region
        $region17: #{tpu_custom_call.1} parent=11 // pred_check
          %p239 = pneg %p59
        $region18: #{tpu_custom_call.1} parent=11 // pred_check_branch
          %241 = sbr.rel (%p239) target = $region20
        $region19: #{tpu_custom_call.1} parent=11 // pred_region
          _
        $region20: #{tpu_custom_call.1} parent=11 // pred_fallthru
          _
        // Predicated region
        $region21: #{tpu_custom_call.1} parent=11 // pred_check
          %p242 = pneg %p80
        $region22: #{tpu_custom_call.1} parent=11 // pred_check_branch
          %244 = sbr.rel (%p242) target = $region24
        $region23: #{tpu_custom_call.1} parent=11 // pred_region
          _
        $region24: #{tpu_custom_call.1} parent=11 // pred_fallthru
          _
      $region12: #{tpu_custom_call.1} parent=5 // pred_fallthru
        _
      %p245 = scmp.lt.s32.totalorder %s17, 2
      // Predicated region
      $region25: #{tpu_custom_call.1} parent=5 // pred_check
        %p246 = pneg %p245
      $region26: #{tpu_custom_call.1} parent=5 // pred_check_branch
        %248 = sbr.rel (%p246) target = $region28
      $region27: #{tpu_custom_call.1} parent=5 // pred_region
        // Predicated region
        $region29: #{tpu_custom_call.1} parent=27 // pred_check
          %p249 = pneg %p100
        $region30: #{tpu_custom_call.1} parent=27 // pred_check_branch
          %251 = sbr.rel (%p249) target = $region32
        $region31: #{tpu_custom_call.1} parent=27 // pred_region
          %p252 = scmp.lt.s32.totalorder %s17, 1
          %s253 = scalar_select %p252, %s17, 1
          %s254 = smul.addr %s253, 8
          %s255 = smul.addr %s254, 8
          %s256 = scalar_lea.vmem %s3, %s255
        $region32: #{tpu_custom_call.1} parent=27 // pred_fallthru
          _
        // Predicated region
        $region33: #{tpu_custom_call.1} parent=27 // pred_check
          %p257 = pneg %p126
        $region34: #{tpu_custom_call.1} parent=27 // pred_check_branch
          %259 = sbr.rel (%p257) target = $region36
        $region35: #{tpu_custom_call.1} parent=27 // pred_region
          %p260 = scmp.lt.s32.totalorder %s17, 1
          %s261 = scalar_select %p260, %s17, 1
          %s262 = smul.addr %s261, 8
          %s263 = smul.addr %s262, 8
          %s264 = scalar_lea.vmem %s4, %s263
        $region36: #{tpu_custom_call.1} parent=27 // pred_fallthru
          _
        // Predicated region
        $region37: #{tpu_custom_call.1} parent=27 // pred_check
          %p265 = pneg %p152
        $region38: #{tpu_custom_call.1} parent=27 // pred_check_branch
          %267 = sbr.rel (%p265) target = $region40
        $region39: #{tpu_custom_call.1} parent=27 // pred_region
          %p268 = scmp.lt.s32.totalorder %s17, 1
          %s269 = scalar_select %p268, %s17, 1
          %s270 = smul.addr %s269, 8
          %s271 = smul.addr %s270, 8
          %s272 = scalar_lea.vmem %s5, %s271
        $region40: #{tpu_custom_call.1} parent=27 // pred_fallthru
          _
      $region28: #{tpu_custom_call.1} parent=5 // pred_fallthru
        _
      %p273 = scmp.le.s32.totalorder 1, %s17
      %p274 = scmp.lt.s32.totalorder %s17, 3
      %p275 = pnand %p273, %p274
      %p276 = pneg %p275
      // Predicated region
      $region41: #{tpu_custom_call.1} parent=5 // pred_check
        _
      $region42: #{tpu_custom_call.1} parent=5 // pred_check_branch
        %278 = sbr.rel (%p275) target = $region44
      $region43: #{tpu_custom_call.1} parent=5 // pred_region
        %s279 = ssub.s32 %s17, 1
        %p280 = pneg %p38
        %p281 = pneg %p35
        %p282 = pneg %p59
        %p283 = pneg %p56
        %p284 = pneg %p80
        %p285 = pneg %p77
        %p286 = scmp.lt.s32.totalorder %s22, 1
        %s287 = scalar_select %p286, %s22, 1
        %s288 = smul.addr %s287, 8
        %s289 = smul.addr %s288, 8
        %s290 = scalar_lea.vmem %s3, %s289
        %p291 = pneg %p106
        %p292 = pneg %p103
        %p293 = scmp.lt.s32.totalorder %s22, 1
        %s294 = scalar_select %p293, %s22, 1
        %s295 = smul.addr %s294, 8
        %s296 = smul.addr %s295, 8
        %s297 = scalar_lea.vmem %s4, %s296
        %p298 = pneg %p132
        %p299 = pneg %p129
        %p300 = scmp.lt.s32.totalorder %s22, 1
        %s301 = scalar_select %p300, %s22, 1
        %s302 = smul.addr %s301, 8
        %s303 = smul.addr %s302, 8
        %s304 = scalar_lea.vmem %s5, %s303
        %p305 = pneg %p158
        %p306 = pneg %p155
        %p307 = pneg %p179
        %p308 = pneg %p176
        %p309 = pneg %p200
        %p310 = pneg %p197
        %p311 = pneg %p221
        %p312 = pneg %p218
        %p313 = scmp.lt.s32.totalorder %s22, 1
        %s314 = scalar_select %p313, %s22, 1
        %s315 = smul.addr %s314, 8
        %s316 = smul.addr %s315, 8
        %s317 = scalar_lea.vmem %s3, %s316
        %p318 = scmp.lt.s32.totalorder %s22, 1
        %s319 = scalar_select %p318, %s22, 1
        %s320 = smul.addr %s319, 8
        %s321 = smul.addr %s320, 8
        %s322 = scalar_lea.vmem %s4, %s321
        %p323 = scmp.lt.s32.totalorder %s22, 1
        %s324 = scalar_select %p323, %s22, 1
        %s325 = smul.addr %s324, 8
        %s326 = smul.addr %s325, 8
        %s327 = scalar_lea.vmem %s5, %s326
        %p328 = scmp.eq.s32.totalorder %s22, 0
        // Predicated region
        $region45: #{tpu_custom_call.1} parent=43 // pred_check
          %p329 = pneg %p328
        $region46: #{tpu_custom_call.1} parent=43 // pred_check_branch
          %331 = sbr.rel (%p329) target = $region48
        $region47: #{tpu_custom_call.1} parent=43 // pred_region
          %vm332 = vcmask 0
          %333 = vst.msk [vmem:[#allocation2] sm:$0x1] %vm332, 0.0
          %334 = vst.msk [vmem:[#allocation4] sm:$0x1] %vm332, 0.0
          %335 = vst.msk [vmem:[#allocation6] sm:$0x1] %vm332, 0.0
        $region48: #{tpu_custom_call.1} parent=43 // pred_fallthru
          _
        %v336 = vld [vmem:[%s0] sm:$0xff]
        %v337 = vld [vmem:[%s0 + $0x8] sm:$0xff]
        %v338 = vld [vmem:[%s0 + $0x10] sm:$0xff]
        %v339 = vld [vmem:[%s0 + $0x18] sm:$0xff]
        %v340 = vld [vmem:[%s0 + $0x20] sm:$0xff]
        %v341 = vld [vmem:[%s0 + $0x28] sm:$0xff]
        %v342 = vld [vmem:[%s0 + $0x30] sm:$0xff]
        %v343 = vld [vmem:[%s0 + $0x38] sm:$0xff]
        %v344 = vld [vmem:[%s0 + $0x40] sm:$0xff]
        %v345 = vld [vmem:[%s0 + $0x48] sm:$0xff]
        %v346 = vld [vmem:[%s0 + $0x50] sm:$0xff]
        %v347 = vld [vmem:[%s0 + $0x58] sm:$0xff]
        %v348 = vld [vmem:[%s0 + $0x60] sm:$0xff]
        %v349 = vld [vmem:[%s0 + $0x68] sm:$0xff]
        %v350 = vld [vmem:[%s0 + $0x70] sm:$0xff]
        %v351 = vld [vmem:[%s0 + $0x78] sm:$0xff]
        %v352 = vld [vmem:[%s0 + $0x80] sm:$0xff]
        %v353 = vld [vmem:[%s0 + $0x88] sm:$0xff]
        %v354 = vld [vmem:[%s0 + $0x90] sm:$0xff]
        %v355 = vld [vmem:[%s0 + $0x98] sm:$0xff]
        %v356 = vld [vmem:[%s0 + $0xa0] sm:$0xff]
        %v357 = vld [vmem:[%s0 + $0xa8] sm:$0xff]
        %v358 = vld [vmem:[%s0 + $0xb0] sm:$0xff]
        %v359 = vld [vmem:[%s0 + $0xb8] sm:$0xff]
        %v360 = vld [vmem:[%s0 + $0xc0] sm:$0xff]
        %v361 = vld [vmem:[%s0 + $0xc8] sm:$0xff]
        %v362 = vld [vmem:[%s0 + $0xd0] sm:$0xff]
        %v363 = vld [vmem:[%s0 + $0xd8] sm:$0xff]
        %v364 = vld [vmem:[%s0 + $0xe0] sm:$0xff]
        %v365 = vld [vmem:[%s0 + $0xe8] sm:$0xff]
        %v366 = vld [vmem:[%s0 + $0xf0] sm:$0xff]
        %v367 = vld [vmem:[%s0 + $0xf8] sm:$0xff]
        %v368 = vld [vmem:[%s0 + $0x100] sm:$0xff]
        %v369 = vld [vmem:[%s0 + $0x108] sm:$0xff]
        %v370 = vld [vmem:[%s0 + $0x110] sm:$0xff]
        %v371 = vld [vmem:[%s0 + $0x118] sm:$0xff]
        %v372 = vld [vmem:[%s0 + $0x120] sm:$0xff]
        %v373 = vld [vmem:[%s0 + $0x128] sm:$0xff]
        %v374 = vld [vmem:[%s0 + $0x130] sm:$0xff]
        %v375 = vld [vmem:[%s0 + $0x138] sm:$0xff]
        %v376 = vld [vmem:[%s0 + $0x140] sm:$0xff]
        %v377 = vld [vmem:[%s0 + $0x148] sm:$0xff]
        %v378 = vld [vmem:[%s0 + $0x150] sm:$0xff]
        %v379 = vld [vmem:[%s0 + $0x158] sm:$0xff]
        %v380 = vld [vmem:[%s0 + $0x160] sm:$0xff]
        %v381 = vld [vmem:[%s0 + $0x168] sm:$0xff]
        %v382 = vld [vmem:[%s0 + $0x170] sm:$0xff]
        %v383 = vld [vmem:[%s0 + $0x178] sm:$0xff]
        %v384 = vld [vmem:[%s0 + $0x180] sm:$0xff]
        %v385 = vld [vmem:[%s0 + $0x188] sm:$0xff]
        %v386 = vld [vmem:[%s0 + $0x190] sm:$0xff]
        %v387 = vld [vmem:[%s0 + $0x198] sm:$0xff]
        %v388 = vld [vmem:[%s0 + $0x1a0] sm:$0xff]
        %v389 = vld [vmem:[%s0 + $0x1a8] sm:$0xff]
        %v390 = vld [vmem:[%s0 + $0x1b0] sm:$0xff]
        %v391 = vld [vmem:[%s0 + $0x1b8] sm:$0xff]
        %v392 = vld [vmem:[%s0 + $0x1c0] sm:$0xff]
        %v393 = vld [vmem:[%s0 + $0x1c8] sm:$0xff]
        %v394 = vld [vmem:[%s0 + $0x1d0] sm:$0xff]
        %v395 = vld [vmem:[%s0 + $0x1d8] sm:$0xff]
        %v396 = vld [vmem:[%s0 + $0x1e0] sm:$0xff]
        %v397 = vld [vmem:[%s0 + $0x1e8] sm:$0xff]
        %v398 = vld [vmem:[%s0 + $0x1f0] sm:$0xff]
        %v399 = vld [vmem:[%s0 + $0x1f8] sm:$0xff]
        %v400 = vld [vmem:[%s1] sm:$0xff]
        %v401 = vld [vmem:[%s1 + $0x8] sm:$0xff]
        %v402 = vld [vmem:[%s1 + $0x10] sm:$0xff]
        %v403 = vld [vmem:[%s1 + $0x18] sm:$0xff]
        %v404 = vld [vmem:[%s1 + $0x20] sm:$0xff]
        %v405 = vld [vmem:[%s1 + $0x28] sm:$0xff]
        %v406 = vld [vmem:[%s1 + $0x30] sm:$0xff]
        %v407 = vld [vmem:[%s1 + $0x38] sm:$0xff]
        %v408 = vld [vmem:[%s1 + $0x40] sm:$0xff]
        %v409 = vld [vmem:[%s1 + $0x48] sm:$0xff]
        %v410 = vld [vmem:[%s1 + $0x50] sm:$0xff]
        %v411 = vld [vmem:[%s1 + $0x58] sm:$0xff]
        %v412 = vld [vmem:[%s1 + $0x60] sm:$0xff]
        %v413 = vld [vmem:[%s1 + $0x68] sm:$0xff]
        %v414 = vld [vmem:[%s1 + $0x70] sm:$0xff]
        %v415 = vld [vmem:[%s1 + $0x78] sm:$0xff]
        %v416 = vld [vmem:[%s317] sm:$0xff]
        %v417 = vld [vmem:[%s317 + $0x8] sm:$0xff]
        %v418 = vld [vmem:[%s317 + $0x10] sm:$0xff]
        %v419 = vld [vmem:[%s317 + $0x18] sm:$0xff]
        %v420 = vld [vmem:[%s317 + $0x20] sm:$0xff]
        %v421 = vld [vmem:[%s317 + $0x28] sm:$0xff]
        %v422 = vld [vmem:[%s317 + $0x30] sm:$0xff]
        %v423 = vld [vmem:[%s317 + $0x38] sm:$0xff]
        %v424 = vld [vmem:[%s327] sm:$0xff]
        %v425 = vld [vmem:[%s327 + $0x8] sm:$0xff]
        %v426 = vld [vmem:[%s327 + $0x10] sm:$0xff]
        %v427 = vld [vmem:[%s327 + $0x18] sm:$0xff]
        %v428 = vld [vmem:[%s327 + $0x20] sm:$0xff]
        %v429 = vld [vmem:[%s327 + $0x28] sm:$0xff]
        %v430 = vld [vmem:[%s327 + $0x30] sm:$0xff]
        %v431 = vld [vmem:[%s327 + $0x38] sm:$0xff]
        %vm432 = vcmask 261120
        %v434 = vsel %vm432, %v416, 0
        %v437 = vsel %vm432, %v417, 0
        %v440 = vsel %vm432, %v418, 0
        %v443 = vsel %vm432, %v419, 0
        %v446 = vsel %vm432, %v420, 0
        %v449 = vsel %vm432, %v421, 0
        %v452 = vsel %vm432, %v422, 0
        %v455 = vsel %vm432, %v423, 0
        %457 = vmatprep.subr.mxu0 0.0
        %458 = vmatpush1.msra.mxu0 0.0
        %459 = vmatprep.subr.mxu0 0.0
        %460 = vmatpush1.msra.mxu0 0.0
        %461 = vmatprep.subr.mxu0 0.0
        %462 = vmatpush1.msra.mxu0 0.0
        %463 = vmatprep.subr.mxu0 0.0
        %464 = vmatpush1.msra.mxu0 0.0
        %465 = vmatprep.subr.mxu0 0.0
        %466 = vmatpush1.msra.mxu0 0.0
        %467 = vmatprep.subr.mxu0 0.0
        %468 = vmatpush1.msra.mxu0 0.0
        %469 = vmatprep.subr.mxu0 0.0
        %470 = vmatpush1.msra.mxu0 0.0
        %471 = vmatprep.subr.mxu0 0.0
        %472 = vmatpush1.msra.mxu0 0.0
        %473 = vmatprep.subr.mxu0 0.0
        %474 = vmatpush1.msra.mxu0 0.0
        %475 = vmatprep.subr.mxu0 0.0
        %476 = vmatpush1.msra.mxu0 0.0
        %477 = vmatprep.subr.mxu0 0.0
        %478 = vmatpush1.msra.mxu0 0.0
        %479 = vmatprep.subr.mxu0 0.0
        %480 = vmatpush1.msra.mxu0 0.0
        %481 = vmatprep.subr.mxu0 %v413
        %482 = vmatpush1.msra.mxu0 %v412
        %483 = vmatprep.subr.mxu0 %v409
        %484 = vmatpush1.msra.mxu0 %v408
        %485 = vmatprep.subr.mxu0 %v405
        %486 = vmatpush1.msra.mxu0 %v404
        %487 = vmatprep.subr.mxu0 %v401
        %488 = vmatpush1.msra.mxu0 %v400
        %489 = vmatprep.subr.mxu0 0.0
        %490 = vmatpush2.msra.mxu0 0.0
        %491 = vmatprep.subr.mxu0 0.0
        %492 = vmatpush2.msra.mxu0 0.0
        %493 = vmatprep.subr.mxu0 0.0
        %494 = vmatpush2.msra.mxu0 0.0
        %495 = vmatprep.subr.mxu0 0.0
        %496 = vmatpush2.msra.mxu0 0.0
        %497 = vmatprep.subr.mxu0 0.0
        %498 = vmatpush2.msra.mxu0 0.0
        %499 = vmatprep.subr.mxu0 0.0
        %500 = vmatpush2.msra.mxu0 0.0
        %501 = vmatprep.subr.mxu0 0.0
        %502 = vmatpush2.msra.mxu0 0.0
        %503 = vmatprep.subr.mxu0 0.0
        %504 = vmatpush2.msra.mxu0 0.0
        %505 = vmatprep.subr.mxu0 0.0
        %506 = vmatpush2.msra.mxu0 0.0
        %507 = vmatprep.subr.mxu0 0.0
        %508 = vmatpush2.msra.mxu0 0.0
        %509 = vmatprep.subr.mxu0 0.0
        %510 = vmatpush2.msra.mxu0 0.0
        %511 = vmatprep.subr.mxu0 0.0
        %512 = vmatpush2.msra.mxu0 0.0
        %513 = vmatprep.subr.mxu0 0.0
        %514 = vmatpush2.msra.mxu0 0.0
        %515 = vmatprep.subr.mxu0 0.0
        %516 = vmatpush2.msra.mxu0 0.0
        %517 = vmatprep.subr.mxu0 0.0
        %518 = vmatpush2.msra.mxu0 0.0
        %519 = vmatprep.subr.mxu0 0.0
        %520 = vmatpush2.msra.mxu0 0.0
        %521 = vmatprep.mubr.f32.mxu0 0.0
        %522 = vmatmul.mubr.f32.gmra.mxu0 %v434
        %v523 = vpop.f32.mrf.mxu0
        %v524 = vadd.f32 0.0, %v523
        %v525 = vpop.f32.mrf.mxu0
        %v526 = vadd.f32 0.0, %v525
        %527 = vmatprep.mubr.f32.mxu0 0.0
        %528 = vmatmul.mubr.f32.gmra.mxu0 %v437
        %v529 = vpop.f32.mrf.mxu0
        %v530 = vadd.f32 0.0, %v529
        %v531 = vpop.f32.mrf.mxu0
        %v532 = vadd.f32 0.0, %v531
        %533 = vmatprep.mubr.f32.mxu0 0.0
        %534 = vmatmul.mubr.f32.gmra.mxu0 %v440
        %v535 = vpop.f32.mrf.mxu0
        %v536 = vadd.f32 0.0, %v535
        %v537 = vpop.f32.mrf.mxu0
        %v538 = vadd.f32 0.0, %v537
        %539 = vmatprep.mubr.f32.mxu0 0.0
        %540 = vmatmul.mubr.f32.gmra.mxu0 %v443
        %v541 = vpop.f32.mrf.mxu0
        %v542 = vadd.f32 0.0, %v541
        %v543 = vpop.f32.mrf.mxu0
        %v544 = vadd.f32 0.0, %v543
        %545 = vmatprep.mubr.f32.mxu0 0.0
        %546 = vmatmul.mubr.f32.gmra.mxu0 %v446
        %v547 = vpop.f32.mrf.mxu0
        %v548 = vadd.f32 0.0, %v547
        %v549 = vpop.f32.mrf.mxu0
        %v550 = vadd.f32 0.0, %v549
        %551 = vmatprep.mubr.f32.mxu0 0.0
        %552 = vmatmul.mubr.f32.gmra.mxu0 %v449
        %v553 = vpop.f32.mrf.mxu0
        %v554 = vadd.f32 0.0, %v553
        %v555 = vpop.f32.mrf.mxu0
        %v556 = vadd.f32 0.0, %v555
        %557 = vmatprep.mubr.f32.mxu0 0.0
        %558 = vmatmul.mubr.f32.gmra.mxu0 %v452
        %v559 = vpop.f32.mrf.mxu0
        %v560 = vadd.f32 0.0, %v559
        %v561 = vpop.f32.mrf.mxu0
        %v562 = vadd.f32 0.0, %v561
        %563 = vmatprep.mubr.f32.mxu0 0.0
        %564 = vmatmul.mubr.f32.gmra.mxu0 %v455
        %v565 = vpop.f32.mrf.mxu0
        %v566 = vadd.f32 0.0, %v565
        %v567 = vpop.f32.mrf.mxu0
        %v568 = vadd.f32 0.0, %v567
        %569 = vdwg.mxu0
        %570 = vmatprep.subr.mxu0 0.0
        %571 = vmatpush1.msra.mxu0 0.0
        %572 = vmatprep.subr.mxu0 0.0
        %573 = vmatpush1.msra.mxu0 0.0
        %574 = vmatprep.subr.mxu0 0.0
        %575 = vmatpush1.msra.mxu0 0.0
        %576 = vmatprep.subr.mxu0 0.0
        %577 = vmatpush1.msra.mxu0 0.0
        %578 = vmatprep.subr.mxu0 0.0
        %579 = vmatpush1.msra.mxu0 0.0
        %580 = vmatprep.subr.mxu0 0.0
        %581 = vmatpush1.msra.mxu0 0.0
        %582 = vmatprep.subr.mxu0 0.0
        %583 = vmatpush1.msra.mxu0 0.0
        %584 = vmatprep.subr.mxu0 0.0
        %585 = vmatpush1.msra.mxu0 0.0
        %586 = vmatprep.subr.mxu0 0.0
        %587 = vmatpush1.msra.mxu0 0.0
        %588 = vmatprep.subr.mxu0 0.0
        %589 = vmatpush1.msra.mxu0 0.0
        %590 = vmatprep.subr.mxu0 0.0
        %591 = vmatpush1.msra.mxu0 0.0
        %592 = vmatprep.subr.mxu0 0.0
        %593 = vmatpush1.msra.mxu0 0.0
        %594 = vmatprep.subr.mxu0 %v415
        %595 = vmatpush1.msra.mxu0 %v414
        %596 = vmatprep.subr.mxu0 %v411
        %597 = vmatpush1.msra.mxu0 %v410
        %598 = vmatprep.subr.mxu0 %v407
        %599 = vmatpush1.msra.mxu0 %v406
        %600 = vmatprep.subr.mxu0 %v403
        %601 = vmatpush1.msra.mxu0 %v402
        %602 = vmatprep.subr.mxu0 0.0
        %603 = vmatpush2.msra.mxu0 0.0
        %604 = vmatprep.subr.mxu0 0.0
        %605 = vmatpush2.msra.mxu0 0.0
        %606 = vmatprep.subr.mxu0 0.0
        %607 = vmatpush2.msra.mxu0 0.0
        %608 = vmatprep.subr.mxu0 0.0
        %609 = vmatpush2.msra.mxu0 0.0
        %610 = vmatprep.subr.mxu0 0.0
        %611 = vmatpush2.msra.mxu0 0.0
        %612 = vmatprep.subr.mxu0 0.0
        %613 = vmatpush2.msra.mxu0 0.0
        %614 = vmatprep.subr.mxu0 0.0
        %615 = vmatpush2.msra.mxu0 0.0
        %616 = vmatprep.subr.mxu0 0.0
        %617 = vmatpush2.msra.mxu0 0.0
        %618 = vmatprep.subr.mxu0 0.0
        %619 = vmatpush2.msra.mxu0 0.0
        %620 = vmatprep.subr.mxu0 0.0
        %621 = vmatpush2.msra.mxu0 0.0
        %622 = vmatprep.subr.mxu0 0.0
        %623 = vmatpush2.msra.mxu0 0.0
        %624 = vmatprep.subr.mxu0 0.0
        %625 = vmatpush2.msra.mxu0 0.0
        %626 = vmatprep.subr.mxu0 0.0
        %627 = vmatpush2.msra.mxu0 0.0
        %628 = vmatprep.subr.mxu0 0.0
        %629 = vmatpush2.msra.mxu0 0.0
        %630 = vmatprep.subr.mxu0 0.0
        %631 = vmatpush2.msra.mxu0 0.0
        %632 = vmatprep.subr.mxu0 0.0
        %633 = vmatpush2.msra.mxu0 0.0
        %634 = vmatprep.mubr.f32.mxu0 0.0
        %635 = vmatmul.mubr.f32.gmra.mxu0 %v434
        %v636 = vpop.f32.mrf.mxu0
        %v637 = vadd.f32 0.0, %v636
        %v638 = vpop.f32.mrf.mxu0
        %v639 = vadd.f32 0.0, %v638
        %640 = vmatprep.mubr.f32.mxu0 0.0
        %641 = vmatmul.mubr.f32.gmra.mxu0 %v437
        %v642 = vpop.f32.mrf.mxu0
        %v643 = vadd.f32 0.0, %v642
        %v644 = vpop.f32.mrf.mxu0
        %v645 = vadd.f32 0.0, %v644
        %646 = vmatprep.mubr.f32.mxu0 0.0
        %647 = vmatmul.mubr.f32.gmra.mxu0 %v440
        %v648 = vpop.f32.mrf.mxu0
        %v649 = vadd.f32 0.0, %v648
        %v650 = vpop.f32.mrf.mxu0
        %v651 = vadd.f32 0.0, %v650
        %652 = vmatprep.mubr.f32.mxu0 0.0
        %653 = vmatmul.mubr.f32.gmra.mxu0 %v443
        %v654 = vpop.f32.mrf.mxu0
        %v655 = vadd.f32 0.0, %v654
        %v656 = vpop.f32.mrf.mxu0
        %v657 = vadd.f32 0.0, %v656
        %658 = vmatprep.mubr.f32.mxu0 0.0
        %659 = vmatmul.mubr.f32.gmra.mxu0 %v446
        %v660 = vpop.f32.mrf.mxu0
        %v661 = vadd.f32 0.0, %v660
        %v662 = vpop.f32.mrf.mxu0
        %v663 = vadd.f32 0.0, %v662
        %664 = vmatprep.mubr.f32.mxu0 0.0
        %665 = vmatmul.mubr.f32.gmra.mxu0 %v449
        %v666 = vpop.f32.mrf.mxu0
        %v667 = vadd.f32 0.0, %v666
        %v668 = vpop.f32.mrf.mxu0
        %v669 = vadd.f32 0.0, %v668
        %670 = vmatprep.mubr.f32.mxu0 0.0
        %671 = vmatmul.mubr.f32.gmra.mxu0 %v452
        %v672 = vpop.f32.mrf.mxu0
        %v673 = vadd.f32 0.0, %v672
        %v674 = vpop.f32.mrf.mxu0
        %v675 = vadd.f32 0.0, %v674
        %676 = vmatprep.mubr.f32.mxu0 0.0
        %677 = vmatmul.mubr.f32.gmra.mxu0 %v455
        %v678 = vpop.f32.mrf.mxu0
        %v679 = vadd.f32 0.0, %v678
        %v680 = vpop.f32.mrf.mxu0
        %v681 = vadd.f32 0.0, %v680
        %682 = vdwg.mxu0
        %vm683 = vcmp.gt.f32.partialorder %v524, 0.15
        %vm684 = vcmp.gt.f32.partialorder %v526, 0.15
        %vm685 = vcmp.gt.f32.partialorder %v637, 0.15
        %vm686 = vcmp.gt.f32.partialorder %v639, 0.15
        %vm687 = vcmp.gt.f32.partialorder %v530, 0.15
        %vm688 = vcmp.gt.f32.partialorder %v532, 0.15
        %vm689 = vcmp.gt.f32.partialorder %v643, 0.15
        %vm690 = vcmp.gt.f32.partialorder %v645, 0.15
        %vm691 = vcmp.gt.f32.partialorder %v536, 0.15
        %vm692 = vcmp.gt.f32.partialorder %v538, 0.15
        %vm693 = vcmp.gt.f32.partialorder %v649, 0.15
        %vm694 = vcmp.gt.f32.partialorder %v651, 0.15
        %vm695 = vcmp.gt.f32.partialorder %v542, 0.15
        %vm696 = vcmp.gt.f32.partialorder %v544, 0.15
        %vm697 = vcmp.gt.f32.partialorder %v655, 0.15
        %vm698 = vcmp.gt.f32.partialorder %v657, 0.15
        %vm699 = vcmp.gt.f32.partialorder %v548, 0.15
        %vm700 = vcmp.gt.f32.partialorder %v550, 0.15
        %vm701 = vcmp.gt.f32.partialorder %v661, 0.15
        %vm702 = vcmp.gt.f32.partialorder %v663, 0.15
        %vm703 = vcmp.gt.f32.partialorder %v554, 0.15
        %vm704 = vcmp.gt.f32.partialorder %v556, 0.15
        %vm705 = vcmp.gt.f32.partialorder %v667, 0.15
        %vm706 = vcmp.gt.f32.partialorder %v669, 0.15
        %vm707 = vcmp.gt.f32.partialorder %v560, 0.15
        %vm708 = vcmp.gt.f32.partialorder %v562, 0.15
        %vm709 = vcmp.gt.f32.partialorder %v673, 0.15
        %vm710 = vcmp.gt.f32.partialorder %v675, 0.15
        %vm711 = vcmp.gt.f32.partialorder %v566, 0.15
        %vm712 = vcmp.gt.f32.partialorder %v568, 0.15
        %vm713 = vcmp.gt.f32.partialorder %v679, 0.15
        %vm714 = vcmp.gt.f32.partialorder %v681, 0.15
        %v715 = vsel %vm683, 1, 0
        %v716 = vsel %vm684, 1, 0
        %v717 = vsel %vm685, 1, 0
        %v718 = vsel %vm686, 1, 0
        %v719 = vsel %vm687, 1, 0
        %v720 = vsel %vm688, 1, 0
        %v721 = vsel %vm689, 1, 0
        %v722 = vsel %vm690, 1, 0
        %v723 = vsel %vm691, 1, 0
        %v724 = vsel %vm692, 1, 0
        %v725 = vsel %vm693, 1, 0
        %v726 = vsel %vm694, 1, 0
        %v727 = vsel %vm695, 1, 0
        %v728 = vsel %vm696, 1, 0
        %v729 = vsel %vm697, 1, 0
        %v730 = vsel %vm698, 1, 0
        %v731 = vsel %vm699, 1, 0
        %v732 = vsel %vm700, 1, 0
        %v733 = vsel %vm701, 1, 0
        %v734 = vsel %vm702, 1, 0
        %v735 = vsel %vm703, 1, 0
        %v736 = vsel %vm704, 1, 0
        %v737 = vsel %vm705, 1, 0
        %v738 = vsel %vm706, 1, 0
        %v739 = vsel %vm707, 1, 0
        %v740 = vsel %vm708, 1, 0
        %v741 = vsel %vm709, 1, 0
        %v742 = vsel %vm710, 1, 0
        %v743 = vsel %vm711, 1, 0
        %v744 = vsel %vm712, 1, 0
        %v745 = vsel %vm713, 1, 0
        %v746 = vsel %vm714, 1, 0
        %v747 = vcvt.s32.f32 %v715
        %v748 = vcvt.s32.f32 %v716
        %v749 = vcvt.s32.f32 %v717
        %v750 = vcvt.s32.f32 %v718
        %v751 = vcvt.s32.f32 %v719
        %v752 = vcvt.s32.f32 %v720
        %v753 = vcvt.s32.f32 %v721
        %v754 = vcvt.s32.f32 %v722
        %v755 = vcvt.s32.f32 %v723
        %v756 = vcvt.s32.f32 %v724
        %v757 = vcvt.s32.f32 %v725
        %v758 = vcvt.s32.f32 %v726
        %v759 = vcvt.s32.f32 %v727
        %v760 = vcvt.s32.f32 %v728
        %v761 = vcvt.s32.f32 %v729
        %v762 = vcvt.s32.f32 %v730
        %v763 = vcvt.s32.f32 %v731
        %v764 = vcvt.s32.f32 %v732
        %v765 = vcvt.s32.f32 %v733
        %v766 = vcvt.s32.f32 %v734
        %v767 = vcvt.s32.f32 %v735
        %v768 = vcvt.s32.f32 %v736
        %v769 = vcvt.s32.f32 %v737
        %v770 = vcvt.s32.f32 %v738
        %v771 = vcvt.s32.f32 %v739
        %v772 = vcvt.s32.f32 %v740
        %v773 = vcvt.s32.f32 %v741
        %v774 = vcvt.s32.f32 %v742
        %v775 = vcvt.s32.f32 %v743
        %v776 = vcvt.s32.f32 %v744
        %v777 = vcvt.s32.f32 %v745
        %v778 = vcvt.s32.f32 %v746
        %779 = vmatprep.subr.mxu0 0.0
        %780 = vmatpush1.msra.mxu0 %v351
        %781 = vmatprep.subr.mxu0 0.0
        %782 = vmatpush1.msra.mxu0 %v350
        %783 = vmatprep.subr.mxu0 0.0
        %784 = vmatpush1.msra.mxu0 %v349
        %785 = vmatprep.subr.mxu0 0.0
        %786 = vmatpush1.msra.mxu0 %v348
        %787 = vmatprep.subr.mxu0 0.0
        %788 = vmatpush1.msra.mxu0 %v347
        %789 = vmatprep.subr.mxu0 0.0
        %790 = vmatpush1.msra.mxu0 %v346
        %791 = vmatprep.subr.mxu0 0.0
        %792 = vmatpush1.msra.mxu0 %v345
        %793 = vmatprep.subr.mxu0 0.0
        %794 = vmatpush1.msra.mxu0 %v344
        %795 = vmatprep.subr.mxu0 0.0
        %796 = vmatpush1.msra.mxu0 %v343
        %797 = vmatprep.subr.mxu0 0.0
        %798 = vmatpush1.msra.mxu0 %v342
        %799 = vmatprep.subr.mxu0 0.0
        %800 = vmatpush1.msra.mxu0 %v341
        %801 = vmatprep.subr.mxu0 0.0
        %802 = vmatpush1.msra.mxu0 %v340
        %803 = vmatprep.subr.mxu0 0.0
        %804 = vmatpush1.msra.mxu0 %v339
        %805 = vmatprep.subr.mxu0 0.0
        %806 = vmatpush1.msra.mxu0 %v338
        %807 = vmatprep.subr.mxu0 0.0
        %808 = vmatpush1.msra.mxu0 %v337
        %809 = vmatprep.subr.mxu0 0.0
        %810 = vmatpush1.msra.mxu0 %v336
        %811 = vmatprep.subr.mxu0 0.0
        %812 = vmatpush2.msra.mxu0 %v367
        %813 = vmatprep.subr.mxu0 0.0
        %814 = vmatpush2.msra.mxu0 %v366
        %815 = vmatprep.subr.mxu0 0.0
        %816 = vmatpush2.msra.mxu0 %v365
        %817 = vmatprep.subr.mxu0 0.0
        %818 = vmatpush2.msra.mxu0 %v364
        %819 = vmatprep.subr.mxu0 0.0
        %820 = vmatpush2.msra.mxu0 %v363
        %821 = vmatprep.subr.mxu0 0.0
        %822 = vmatpush2.msra.mxu0 %v362
        %823 = vmatprep.subr.mxu0 0.0
        %824 = vmatpush2.msra.mxu0 %v361
        %825 = vmatprep.subr.mxu0 0.0
        %826 = vmatpush2.msra.mxu0 %v360
        %827 = vmatprep.subr.mxu0 0.0
        %828 = vmatpush2.msra.mxu0 %v359
        %829 = vmatprep.subr.mxu0 0.0
        %830 = vmatpush2.msra.mxu0 %v358
        %831 = vmatprep.subr.mxu0 0.0
        %832 = vmatpush2.msra.mxu0 %v357
        %833 = vmatprep.subr.mxu0 0.0
        %834 = vmatpush2.msra.mxu0 %v356
        %835 = vmatprep.subr.mxu0 0.0
        %836 = vmatpush2.msra.mxu0 %v355
        %837 = vmatprep.subr.mxu0 0.0
        %838 = vmatpush2.msra.mxu0 %v354
        %839 = vmatprep.subr.mxu0 0.0
        %840 = vmatpush2.msra.mxu0 %v353
        %841 = vmatprep.subr.mxu0 0.0
        %842 = vmatpush2.msra.mxu0 %v352
        %843 = vmatprep.mubr.f32.mxu0 %v748
        %844 = vmatmul.mubr.f32.gmra.mxu0 %v747
        %v845 = vpop.f32.mrf.mxu0
        %v846 = vadd.f32 0.0, %v845
        %v847 = vpop.f32.mrf.mxu0
        %848 = vmatprep.mubr.f32.mxu0 %v752
        %849 = vmatmul.mubr.f32.gmra.mxu0 %v751
        %v850 = vpop.f32.mrf.mxu0
        %v851 = vadd.f32 0.0, %v850
        %v852 = vpop.f32.mrf.mxu0
        %853 = vmatprep.mubr.f32.mxu0 %v756
        %854 = vmatmul.mubr.f32.gmra.mxu0 %v755
        %v855 = vpop.f32.mrf.mxu0
        %v856 = vadd.f32 0.0, %v855
        %v857 = vpop.f32.mrf.mxu0
        %858 = vmatprep.mubr.f32.mxu0 %v760
        %859 = vmatmul.mubr.f32.gmra.mxu0 %v759
        %v860 = vpop.f32.mrf.mxu0
        %v861 = vadd.f32 0.0, %v860
        %v862 = vpop.f32.mrf.mxu0
        %863 = vmatprep.mubr.f32.mxu0 %v764
        %864 = vmatmul.mubr.f32.gmra.mxu0 %v763
        %v865 = vpop.f32.mrf.mxu0
        %v866 = vadd.f32 0.0, %v865
        %v867 = vpop.f32.mrf.mxu0
        %868 = vmatprep.mubr.f32.mxu0 %v768
        %869 = vmatmul.mubr.f32.gmra.mxu0 %v767
        %v870 = vpop.f32.mrf.mxu0
        %v871 = vadd.f32 0.0, %v870
        %v872 = vpop.f32.mrf.mxu0
        %873 = vmatprep.mubr.f32.mxu0 %v772
        %874 = vmatmul.mubr.f32.gmra.mxu0 %v771
        %v875 = vpop.f32.mrf.mxu0
        %v876 = vadd.f32 0.0, %v875
        %v877 = vpop.f32.mrf.mxu0
        %878 = vmatprep.mubr.f32.mxu0 %v776
        %879 = vmatmul.mubr.f32.gmra.mxu0 %v775
        %v880 = vpop.f32.mrf.mxu0
        %v881 = vadd.f32 0.0, %v880
        %v882 = vpop.f32.mrf.mxu0
        %883 = vdwg.mxu0
        %884 = vmatprep.subr.mxu0 0.0
        %885 = vmatpush1.msra.mxu0 %v383
        %886 = vmatprep.subr.mxu0 0.0
        %887 = vmatpush1.msra.mxu0 %v382
        %888 = vmatprep.subr.mxu0 0.0
        %889 = vmatpush1.msra.mxu0 %v381
        %890 = vmatprep.subr.mxu0 0.0
        %891 = vmatpush1.msra.mxu0 %v380
        %892 = vmatprep.subr.mxu0 0.0
        %893 = vmatpush1.msra.mxu0 %v379
        %894 = vmatprep.subr.mxu0 0.0
        %895 = vmatpush1.msra.mxu0 %v378
        %896 = vmatprep.subr.mxu0 0.0
        %897 = vmatpush1.msra.mxu0 %v377
        %898 = vmatprep.subr.mxu0 0.0
        %899 = vmatpush1.msra.mxu0 %v376
        %900 = vmatprep.subr.mxu0 0.0
        %901 = vmatpush1.msra.mxu0 %v375
        %902 = vmatprep.subr.mxu0 0.0
        %903 = vmatpush1.msra.mxu0 %v374
        %904 = vmatprep.subr.mxu0 0.0
        %905 = vmatpush1.msra.mxu0 %v373
        %906 = vmatprep.subr.mxu0 0.0
        %907 = vmatpush1.msra.mxu0 %v372
        %908 = vmatprep.subr.mxu0 0.0
        %909 = vmatpush1.msra.mxu0 %v371
        %910 = vmatprep.subr.mxu0 0.0
        %911 = vmatpush1.msra.mxu0 %v370
        %912 = vmatprep.subr.mxu0 0.0
        %913 = vmatpush1.msra.mxu0 %v369
        %914 = vmatprep.subr.mxu0 0.0
        %915 = vmatpush1.msra.mxu0 %v368
        %916 = vmatprep.subr.mxu0 0.0
        %917 = vmatpush2.msra.mxu0 %v399
        %918 = vmatprep.subr.mxu0 0.0
        %919 = vmatpush2.msra.mxu0 %v398
        %920 = vmatprep.subr.mxu0 0.0
        %921 = vmatpush2.msra.mxu0 %v397
        %922 = vmatprep.subr.mxu0 0.0
        %923 = vmatpush2.msra.mxu0 %v396
        %924 = vmatprep.subr.mxu0 0.0
        %925 = vmatpush2.msra.mxu0 %v395
        %926 = vmatprep.subr.mxu0 0.0
        %927 = vmatpush2.msra.mxu0 %v394
        %928 = vmatprep.subr.mxu0 0.0
        %929 = vmatpush2.msra.mxu0 %v393
        %930 = vmatprep.subr.mxu0 0.0
        %931 = vmatpush2.msra.mxu0 %v392
        %932 = vmatprep.subr.mxu0 0.0
        %933 = vmatpush2.msra.mxu0 %v391
        %934 = vmatprep.subr.mxu0 0.0
        %935 = vmatpush2.msra.mxu0 %v390
        %936 = vmatprep.subr.mxu0 0.0
        %937 = vmatpush2.msra.mxu0 %v389
        %938 = vmatprep.subr.mxu0 0.0
        %939 = vmatpush2.msra.mxu0 %v388
        %940 = vmatprep.subr.mxu0 0.0
        %941 = vmatpush2.msra.mxu0 %v387
        %942 = vmatprep.subr.mxu0 0.0
        %943 = vmatpush2.msra.mxu0 %v386
        %944 = vmatprep.subr.mxu0 0.0
        %945 = vmatpush2.msra.mxu0 %v385
        %946 = vmatprep.subr.mxu0 0.0
        %947 = vmatpush2.msra.mxu0 %v384
        %948 = vmatprep.mubr.f32.mxu0 %v750
        %949 = vmatmul.mubr.f32.gmra.mxu0 %v749
        %v950 = vpop.f32.mrf.mxu0
        %v951 = vadd.f32 %v846, %v950
        %v952 = vpop.f32.mrf.mxu0
        %953 = vmatprep.mubr.f32.mxu0 %v754
        %954 = vmatmul.mubr.f32.gmra.mxu0 %v753
        %v955 = vpop.f32.mrf.mxu0
        %v956 = vadd.f32 %v851, %v955
        %v957 = vpop.f32.mrf.mxu0
        %958 = vmatprep.mubr.f32.mxu0 %v758
        %959 = vmatmul.mubr.f32.gmra.mxu0 %v757
        %v960 = vpop.f32.mrf.mxu0
        %v961 = vadd.f32 %v856, %v960
        %v962 = vpop.f32.mrf.mxu0
        %963 = vmatprep.mubr.f32.mxu0 %v762
        %964 = vmatmul.mubr.f32.gmra.mxu0 %v761
        %v965 = vpop.f32.mrf.mxu0
        %v966 = vadd.f32 %v861, %v965
        %v967 = vpop.f32.mrf.mxu0
        %968 = vmatprep.mubr.f32.mxu0 %v766
        %969 = vmatmul.mubr.f32.gmra.mxu0 %v765
        %v970 = vpop.f32.mrf.mxu0
        %v971 = vadd.f32 %v866, %v970
        %v972 = vpop.f32.mrf.mxu0
        %973 = vmatprep.mubr.f32.mxu0 %v770
        %974 = vmatmul.mubr.f32.gmra.mxu0 %v769
        %v975 = vpop.f32.mrf.mxu0
        %v976 = vadd.f32 %v871, %v975
        %v977 = vpop.f32.mrf.mxu0
        %978 = vmatprep.mubr.f32.mxu0 %v774
        %979 = vmatmul.mubr.f32.gmra.mxu0 %v773
        %v980 = vpop.f32.mrf.mxu0
        %v981 = vadd.f32 %v876, %v980
        %v982 = vpop.f32.mrf.mxu0
        %983 = vmatprep.mubr.f32.mxu0 %v778
        %984 = vmatmul.mubr.f32.gmra.mxu0 %v777
        %v985 = vpop.f32.mrf.mxu0
        %v986 = vadd.f32 %v881, %v985
        %v987 = vpop.f32.mrf.mxu0
        %988 = vdwg.mxu0
        %v989 = vmul.f32 %v951, 0.001953125
        %v990 = vmul.f32 %v956, 0.001953125
        %v991 = vmul.f32 %v961, 0.001953125
        %v992 = vmul.f32 %v966, 0.001953125
        %v993 = vmul.f32 %v971, 0.001953125
        %v994 = vmul.f32 %v976, 0.001953125
        %v995 = vmul.f32 %v981, 0.001953125
        %v996 = vmul.f32 %v986, 0.001953125
        %v997 = vmul.f32 %v989, %v989
        %v998 = vmul.f32 %v990, %v990
        %v999 = vmul.f32 %v991, %v991
        %v1000 = vmul.f32 %v992, %v992
        %v1001 = vmul.f32 %v993, %v993
        %v1002 = vmul.f32 %v994, %v994
        %v1003 = vmul.f32 %v995, %v995
        %v1004 = vmul.f32 %v996, %v996
        %v1005 = vsel %vm432, %v997, 0.0
        %1006 = vadd.xlane.f32.xlu0 %v1005
        %v1007 = vpop.xlane.xlu0 %1006
        %v1008 = vsel %vm432, %v998, 0.0
        %1009 = vadd.xlane.f32.xlu0 %v1008
        %v1010 = vpop.xlane.xlu0 %1009
        %v1011 = vsel %vm432, %v999, 0.0
        %1012 = vadd.xlane.f32.xlu0 %v1011
        %v1013 = vpop.xlane.xlu0 %1012
        %v1014 = vsel %vm432, %v1000, 0.0
        %1015 = vadd.xlane.f32.xlu0 %v1014
        %v1016 = vpop.xlane.xlu0 %1015
        %v1017 = vsel %vm432, %v1001, 0.0
        %1018 = vadd.xlane.f32.xlu0 %v1017
        %v1019 = vpop.xlane.xlu0 %1018
        %v1020 = vsel %vm432, %v1002, 0.0
        %1021 = vadd.xlane.f32.xlu0 %v1020
        %v1022 = vpop.xlane.xlu0 %1021
        %v1023 = vsel %vm432, %v1003, 0.0
        %1024 = vadd.xlane.f32.xlu0 %v1023
        %v1025 = vpop.xlane.xlu0 %1024
        %v1026 = vsel %vm432, %v1004, 0.0
        %1027 = vadd.xlane.f32.xlu0 %v1026
        %v1028 = vpop.xlane.xlu0 %1027
        %v1029 = vrsqrt.pop %v1007
        %v1030 = vmul.f32 %v1007, %v1029
        %vm1031 = vcmp.eq.f32.partialorder %v1007, inf
        %v1032 = vsel %vm1031, %v1007, %v1030
        %vm1033 = vcmp.eq.f32.partialorder %v1007, 0.0
        %v1034 = vand.u32 %v1007, 2147483648
        %v1035 = vsel %vm1033, %v1034, %v1032
        %v1036 = vrsqrt.pop %v1010
        %v1037 = vmul.f32 %v1010, %v1036
        %vm1038 = vcmp.eq.f32.partialorder %v1010, inf
        %v1039 = vsel %vm1038, %v1010, %v1037
        %vm1040 = vcmp.eq.f32.partialorder %v1010, 0.0
        %v1041 = vand.u32 %v1010, 2147483648
        %v1042 = vsel %vm1040, %v1041, %v1039
        %v1043 = vrsqrt.pop %v1013
        %v1044 = vmul.f32 %v1013, %v1043
        %vm1045 = vcmp.eq.f32.partialorder %v1013, inf
        %v1046 = vsel %vm1045, %v1013, %v1044
        %vm1047 = vcmp.eq.f32.partialorder %v1013, 0.0
        %v1048 = vand.u32 %v1013, 2147483648
        %v1049 = vsel %vm1047, %v1048, %v1046
        %v1050 = vrsqrt.pop %v1016
        %v1051 = vmul.f32 %v1016, %v1050
        %vm1052 = vcmp.eq.f32.partialorder %v1016, inf
        %v1053 = vsel %vm1052, %v1016, %v1051
        %vm1054 = vcmp.eq.f32.partialorder %v1016, 0.0
        %v1055 = vand.u32 %v1016, 2147483648
        %v1056 = vsel %vm1054, %v1055, %v1053
        %v1057 = vrsqrt.pop %v1019
        %v1058 = vmul.f32 %v1019, %v1057
        %vm1059 = vcmp.eq.f32.partialorder %v1019, inf
        %v1060 = vsel %vm1059, %v1019, %v1058
        %vm1061 = vcmp.eq.f32.partialorder %v1019, 0.0
        %v1062 = vand.u32 %v1019, 2147483648
        %v1063 = vsel %vm1061, %v1062, %v1060
        %v1064 = vrsqrt.pop %v1022
        %v1065 = vmul.f32 %v1022, %v1064
        %vm1066 = vcmp.eq.f32.partialorder %v1022, inf
        %v1067 = vsel %vm1066, %v1022, %v1065
        %vm1068 = vcmp.eq.f32.partialorder %v1022, 0.0
        %v1069 = vand.u32 %v1022, 2147483648
        %v1070 = vsel %vm1068, %v1069, %v1067
        %v1071 = vrsqrt.pop %v1025
        %v1072 = vmul.f32 %v1025, %v1071
        %vm1073 = vcmp.eq.f32.partialorder %v1025, inf
        %v1074 = vsel %vm1073, %v1025, %v1072
        %vm1075 = vcmp.eq.f32.partialorder %v1025, 0.0
        %v1076 = vand.u32 %v1025, 2147483648
        %v1077 = vsel %vm1075, %v1076, %v1074
        %v1078 = vrsqrt.pop %v1028
        %v1079 = vmul.f32 %v1028, %v1078
        %vm1080 = vcmp.eq.f32.partialorder %v1028, inf
        %v1081 = vsel %vm1080, %v1028, %v1079
        %vm1082 = vcmp.eq.f32.partialorder %v1028, 0.0
        %v1083 = vand.u32 %v1028, 2147483648
        %v1084 = vsel %vm1082, %v1083, %v1081
        %v1085 = vmax.f32 %v1035, 1e-12
        %v1086 = vmax.f32 %v1042, 1e-12
        %v1087 = vmax.f32 %v1049, 1e-12
        %v1088 = vmax.f32 %v1056, 1e-12
        %v1089 = vmax.f32 %v1063, 1e-12
        %v1090 = vmax.f32 %v1070, 1e-12
        %v1091 = vmax.f32 %v1077, 1e-12
        %v1092 = vmax.f32 %v1084, 1e-12
        %v1093 = vrcp.pop %v1085
        %v1094 = vmul.f32 %v989, %v1093
        %v1095 = vrcp.pop %v1086
        %v1096 = vmul.f32 %v990, %v1095
        %v1097 = vrcp.pop %v1087
        %v1098 = vmul.f32 %v991, %v1097
        %v1099 = vrcp.pop %v1088
        %v1100 = vmul.f32 %v992, %v1099
        %v1101 = vrcp.pop %v1089
        %v1102 = vmul.f32 %v993, %v1101
        %v1103 = vrcp.pop %v1090
        %v1104 = vmul.f32 %v994, %v1103
        %v1105 = vrcp.pop %v1091
        %v1106 = vmul.f32 %v995, %v1105
        %v1107 = vrcp.pop %v1092
        %v1108 = vmul.f32 %v996, %v1107
        %v1110 = vsel %vm432, %v1094, 0
        %v1113 = vsel %vm432, %v1096, 0
        %v1116 = vsel %vm432, %v1098, 0
        %v1119 = vsel %vm432, %v1100, 0
        %v1122 = vsel %vm432, %v1102, 0
        %v1125 = vsel %vm432, %v1104, 0
        %v1128 = vsel %vm432, %v1106, 0
        %v1131 = vsel %vm432, %v1108, 0
        %1133 = vmatprep.subr.mxu0 0.0
        %1134 = vmatpush1.msra.mxu0 0.0
        %1135 = vmatprep.subr.mxu0 0.0
        %1136 = vmatpush1.msra.mxu0 0.0
        %1137 = vmatprep.subr.mxu0 0.0
        %1138 = vmatpush1.msra.mxu0 0.0
        %1139 = vmatprep.subr.mxu0 0.0
        %1140 = vmatpush1.msra.mxu0 0.0
        %1141 = vmatprep.subr.mxu0 0.0
        %1142 = vmatpush1.msra.mxu0 0.0
        %1143 = vmatprep.subr.mxu0 0.0
        %1144 = vmatpush1.msra.mxu0 0.0
        %1145 = vmatprep.subr.mxu0 0.0
        %1146 = vmatpush1.msra.mxu0 0.0
        %1147 = vmatprep.subr.mxu0 0.0
        %1148 = vmatpush1.msra.mxu0 0.0
        %1149 = vmatprep.subr.mxu0 0.0
        %1150 = vmatpush1.msra.mxu0 0.0
        %1151 = vmatprep.subr.mxu0 0.0
        %1152 = vmatpush1.msra.mxu0 0.0
        %1153 = vmatprep.subr.mxu0 0.0
        %1154 = vmatpush1.msra.mxu0 0.0
        %1155 = vmatprep.subr.mxu0 0.0
        %1156 = vmatpush1.msra.mxu0 0.0
        %1157 = vmatprep.subr.mxu0 %v413
        %1158 = vmatpush1.msra.mxu0 %v412
        %1159 = vmatprep.subr.mxu0 %v409
        %1160 = vmatpush1.msra.mxu0 %v408
        %1161 = vmatprep.subr.mxu0 %v405
        %1162 = vmatpush1.msra.mxu0 %v404
        %1163 = vmatprep.subr.mxu0 %v401
        %1164 = vmatpush1.msra.mxu0 %v400
        %1165 = vmatprep.subr.mxu0 0.0
        %1166 = vmatpush2.msra.mxu0 0.0
        %1167 = vmatprep.subr.mxu0 0.0
        %1168 = vmatpush2.msra.mxu0 0.0
        %1169 = vmatprep.subr.mxu0 0.0
        %1170 = vmatpush2.msra.mxu0 0.0
        %1171 = vmatprep.subr.mxu0 0.0
        %1172 = vmatpush2.msra.mxu0 0.0
        %1173 = vmatprep.subr.mxu0 0.0
        %1174 = vmatpush2.msra.mxu0 0.0
        %1175 = vmatprep.subr.mxu0 0.0
        %1176 = vmatpush2.msra.mxu0 0.0
        %1177 = vmatprep.subr.mxu0 0.0
        %1178 = vmatpush2.msra.mxu0 0.0
        %1179 = vmatprep.subr.mxu0 0.0
        %1180 = vmatpush2.msra.mxu0 0.0
        %1181 = vmatprep.subr.mxu0 0.0
        %1182 = vmatpush2.msra.mxu0 0.0
        %1183 = vmatprep.subr.mxu0 0.0
        %1184 = vmatpush2.msra.mxu0 0.0
        %1185 = vmatprep.subr.mxu0 0.0
        %1186 = vmatpush2.msra.mxu0 0.0
        %1187 = vmatprep.subr.mxu0 0.0
        %1188 = vmatpush2.msra.mxu0 0.0
        %1189 = vmatprep.subr.mxu0 0.0
        %1190 = vmatpush2.msra.mxu0 0.0
        %1191 = vmatprep.subr.mxu0 0.0
        %1192 = vmatpush2.msra.mxu0 0.0
        %1193 = vmatprep.subr.mxu0 0.0
        %1194 = vmatpush2.msra.mxu0 0.0
        %1195 = vmatprep.subr.mxu0 0.0
        %1196 = vmatpush2.msra.mxu0 0.0
        %1197 = vmatprep.mubr.f32.mxu0 0.0
        %1198 = vmatmul.mubr.f32.gmra.mxu0 %v1110
        %v1199 = vpop.f32.mrf.mxu0
        %v1200 = vadd.f32 0.0, %v1199
        %v1201 = vpop.f32.mrf.mxu0
        %v1202 = vadd.f32 0.0, %v1201
        %1203 = vmatprep.mubr.f32.mxu0 0.0
        %1204 = vmatmul.mubr.f32.gmra.mxu0 %v1113
        %v1205 = vpop.f32.mrf.mxu0
        %v1206 = vadd.f32 0.0, %v1205
        %v1207 = vpop.f32.mrf.mxu0
        %v1208 = vadd.f32 0.0, %v1207
        %1209 = vmatprep.mubr.f32.mxu0 0.0
        %1210 = vmatmul.mubr.f32.gmra.mxu0 %v1116
        %v1211 = vpop.f32.mrf.mxu0
        %v1212 = vadd.f32 0.0, %v1211
        %v1213 = vpop.f32.mrf.mxu0
        %v1214 = vadd.f32 0.0, %v1213
        %1215 = vmatprep.mubr.f32.mxu0 0.0
        %1216 = vmatmul.mubr.f32.gmra.mxu0 %v1119
        %v1217 = vpop.f32.mrf.mxu0
        %v1218 = vadd.f32 0.0, %v1217
        %v1219 = vpop.f32.mrf.mxu0
        %v1220 = vadd.f32 0.0, %v1219
        %1221 = vmatprep.mubr.f32.mxu0 0.0
        %1222 = vmatmul.mubr.f32.gmra.mxu0 %v1122
        %v1223 = vpop.f32.mrf.mxu0
        %v1224 = vadd.f32 0.0, %v1223
        %v1225 = vpop.f32.mrf.mxu0
        %v1226 = vadd.f32 0.0, %v1225
        %1227 = vmatprep.mubr.f32.mxu0 0.0
        %1228 = vmatmul.mubr.f32.gmra.mxu0 %v1125
        %v1229 = vpop.f32.mrf.mxu0
        %v1230 = vadd.f32 0.0, %v1229
        %v1231 = vpop.f32.mrf.mxu0
        %v1232 = vadd.f32 0.0, %v1231
        %1233 = vmatprep.mubr.f32.mxu0 0.0
        %1234 = vmatmul.mubr.f32.gmra.mxu0 %v1128
        %v1235 = vpop.f32.mrf.mxu0
        %v1236 = vadd.f32 0.0, %v1235
        %v1237 = vpop.f32.mrf.mxu0
        %v1238 = vadd.f32 0.0, %v1237
        %1239 = vmatprep.mubr.f32.mxu0 0.0
        %1240 = vmatmul.mubr.f32.gmra.mxu0 %v1131
        %v1241 = vpop.f32.mrf.mxu0
        %v1242 = vadd.f32 0.0, %v1241
        %v1243 = vpop.f32.mrf.mxu0
        %v1244 = vadd.f32 0.0, %v1243
        %1245 = vdwg.mxu0
        %1246 = vmatprep.subr.mxu0 0.0
        %1247 = vmatpush1.msra.mxu0 0.0
        %1248 = vmatprep.subr.mxu0 0.0
        %1249 = vmatpush1.msra.mxu0 0.0
        %1250 = vmatprep.subr.mxu0 0.0
        %1251 = vmatpush1.msra.mxu0 0.0
        %1252 = vmatprep.subr.mxu0 0.0
        %1253 = vmatpush1.msra.mxu0 0.0
        %1254 = vmatprep.subr.mxu0 0.0
        %1255 = vmatpush1.msra.mxu0 0.0
        %1256 = vmatprep.subr.mxu0 0.0
        %1257 = vmatpush1.msra.mxu0 0.0
        %1258 = vmatprep.subr.mxu0 0.0
        %1259 = vmatpush1.msra.mxu0 0.0
        %1260 = vmatprep.subr.mxu0 0.0
        %1261 = vmatpush1.msra.mxu0 0.0
        %1262 = vmatprep.subr.mxu0 0.0
        %1263 = vmatpush1.msra.mxu0 0.0
        %1264 = vmatprep.subr.mxu0 0.0
        %1265 = vmatpush1.msra.mxu0 0.0
        %1266 = vmatprep.subr.mxu0 0.0
        %1267 = vmatpush1.msra.mxu0 0.0
        %1268 = vmatprep.subr.mxu0 0.0
        %1269 = vmatpush1.msra.mxu0 0.0
        %1270 = vmatprep.subr.mxu0 %v415
        %1271 = vmatpush1.msra.mxu0 %v414
        %1272 = vmatprep.subr.mxu0 %v411
        %1273 = vmatpush1.msra.mxu0 %v410
        %1274 = vmatprep.subr.mxu0 %v407
        %1275 = vmatpush1.msra.mxu0 %v406
        %1276 = vmatprep.subr.mxu0 %v403
        %1277 = vmatpush1.msra.mxu0 %v402
        %1278 = vmatprep.subr.mxu0 0.0
        %1279 = vmatpush2.msra.mxu0 0.0
        %1280 = vmatprep.subr.mxu0 0.0
        %1281 = vmatpush2.msra.mxu0 0.0
        %1282 = vmatprep.subr.mxu0 0.0
        %1283 = vmatpush2.msra.mxu0 0.0
        %1284 = vmatprep.subr.mxu0 0.0
        %1285 = vmatpush2.msra.mxu0 0.0
        %1286 = vmatprep.subr.mxu0 0.0
        %1287 = vmatpush2.msra.mxu0 0.0
        %1288 = vmatprep.subr.mxu0 0.0
        %1289 = vmatpush2.msra.mxu0 0.0
        %1290 = vmatprep.subr.mxu0 0.0
        %1291 = vmatpush2.msra.mxu0 0.0
        %1292 = vmatprep.subr.mxu0 0.0
        %1293 = vmatpush2.msra.mxu0 0.0
        %1294 = vmatprep.subr.mxu0 0.0
        %1295 = vmatpush2.msra.mxu0 0.0
        %1296 = vmatprep.subr.mxu0 0.0
        %1297 = vmatpush2.msra.mxu0 0.0
        %1298 = vmatprep.subr.mxu0 0.0
        %1299 = vmatpush2.msra.mxu0 0.0
        %1300 = vmatprep.subr.mxu0 0.0
        %1301 = vmatpush2.msra.mxu0 0.0
        %1302 = vmatprep.subr.mxu0 0.0
        %1303 = vmatpush2.msra.mxu0 0.0
        %1304 = vmatprep.subr.mxu0 0.0
        %1305 = vmatpush2.msra.mxu0 0.0
        %1306 = vmatprep.subr.mxu0 0.0
        %1307 = vmatpush2.msra.mxu0 0.0
        %1308 = vmatprep.subr.mxu0 0.0
        %1309 = vmatpush2.msra.mxu0 0.0
        %1310 = vmatprep.mubr.f32.mxu0 0.0
        %1311 = vmatmul.mubr.f32.gmra.mxu0 %v1110
        %v1312 = vpop.f32.mrf.mxu0
        %v1313 = vadd.f32 0.0, %v1312
        %v1314 = vpop.f32.mrf.mxu0
        %v1315 = vadd.f32 0.0, %v1314
        %1316 = vmatprep.mubr.f32.mxu0 0.0
        %1317 = vmatmul.mubr.f32.gmra.mxu0 %v1113
        %v1318 = vpop.f32.mrf.mxu0
        %v1319 = vadd.f32 0.0, %v1318
        %v1320 = vpop.f32.mrf.mxu0
        %v1321 = vadd.f32 0.0, %v1320
        %1322 = vmatprep.mubr.f32.mxu0 0.0
        %1323 = vmatmul.mubr.f32.gmra.mxu0 %v1116
        %v1324 = vpop.f32.mrf.mxu0
        %v1325 = vadd.f32 0.0, %v1324
        %v1326 = vpop.f32.mrf.mxu0
        %v1327 = vadd.f32 0.0, %v1326
        %1328 = vmatprep.mubr.f32.mxu0 0.0
        %1329 = vmatmul.mubr.f32.gmra.mxu0 %v1119
        %v1330 = vpop.f32.mrf.mxu0
        %v1331 = vadd.f32 0.0, %v1330
        %v1332 = vpop.f32.mrf.mxu0
        %v1333 = vadd.f32 0.0, %v1332
        %1334 = vmatprep.mubr.f32.mxu0 0.0
        %1335 = vmatmul.mubr.f32.gmra.mxu0 %v1122
        %v1336 = vpop.f32.mrf.mxu0
        %v1337 = vadd.f32 0.0, %v1336
        %v1338 = vpop.f32.mrf.mxu0
        %v1339 = vadd.f32 0.0, %v1338
        %1340 = vmatprep.mubr.f32.mxu0 0.0
        %1341 = vmatmul.mubr.f32.gmra.mxu0 %v1125
        %v1342 = vpop.f32.mrf.mxu0
        %v1343 = vadd.f32 0.0, %v1342
        %v1344 = vpop.f32.mrf.mxu0
        %v1345 = vadd.f32 0.0, %v1344
        %1346 = vmatprep.mubr.f32.mxu0 0.0
        %1347 = vmatmul.mubr.f32.gmra.mxu0 %v1128
        %v1348 = vpop.f32.mrf.mxu0
        %v1349 = vadd.f32 0.0, %v1348
        %v1350 = vpop.f32.mrf.mxu0
        %v1351 = vadd.f32 0.0, %v1350
        %1352 = vmatprep.mubr.f32.mxu0 0.0
        %1353 = vmatmul.mubr.f32.gmra.mxu0 %v1131
        %v1354 = vpop.f32.mrf.mxu0
        %v1355 = vadd.f32 0.0, %v1354
        %v1356 = vpop.f32.mrf.mxu0
        %v1357 = vadd.f32 0.0, %v1356
        %1358 = vdwg.mxu0
        %v1359 = vmul.f32 %v416, %v416
        %v1360 = vmul.f32 %v417, %v417
        %v1361 = vmul.f32 %v418, %v418
        %v1362 = vmul.f32 %v419, %v419
        %v1363 = vmul.f32 %v420, %v420
        %v1364 = vmul.f32 %v421, %v421
        %v1365 = vmul.f32 %v422, %v422
        %v1366 = vmul.f32 %v423, %v423
        %v1367 = vsel %vm432, %v1359, 0.0
        %1368 = vadd.xlane.f32.xlu0 %v1367
        %v1369 = vpop.xlane.xlu0 %1368
        %v1370 = vsel %vm432, %v1360, 0.0
        %1371 = vadd.xlane.f32.xlu0 %v1370
        %v1372 = vpop.xlane.xlu0 %1371
        %v1373 = vsel %vm432, %v1361, 0.0
        %1374 = vadd.xlane.f32.xlu0 %v1373
        %v1375 = vpop.xlane.xlu0 %1374
        %v1376 = vsel %vm432, %v1362, 0.0
        %1377 = vadd.xlane.f32.xlu0 %v1376
        %v1378 = vpop.xlane.xlu0 %1377
        %v1379 = vsel %vm432, %v1363, 0.0
        %1380 = vadd.xlane.f32.xlu0 %v1379
        %v1381 = vpop.xlane.xlu0 %1380
        %v1382 = vsel %vm432, %v1364, 0.0
        %1383 = vadd.xlane.f32.xlu0 %v1382
        %v1384 = vpop.xlane.xlu0 %1383
        %v1385 = vsel %vm432, %v1365, 0.0
        %1386 = vadd.xlane.f32.xlu0 %v1385
        %v1387 = vpop.xlane.xlu0 %1386
        %v1388 = vsel %vm432, %v1366, 0.0
        %1389 = vadd.xlane.f32.xlu0 %v1388
        %v1390 = vpop.xlane.xlu0 %1389
        %v1391 = vrsqrt.pop %v1369
        %v1392 = vmul.f32 %v1369, %v1391
        %vm1393 = vcmp.eq.f32.partialorder %v1369, inf
        %v1394 = vsel %vm1393, %v1369, %v1392
        %vm1395 = vcmp.eq.f32.partialorder %v1369, 0.0
        %v1396 = vand.u32 %v1369, 2147483648
        %v1397 = vsel %vm1395, %v1396, %v1394
        %v1398 = vrsqrt.pop %v1372
        %v1399 = vmul.f32 %v1372, %v1398
        %vm1400 = vcmp.eq.f32.partialorder %v1372, inf
        %v1401 = vsel %vm1400, %v1372, %v1399
        %vm1402 = vcmp.eq.f32.partialorder %v1372, 0.0
        %v1403 = vand.u32 %v1372, 2147483648
        %v1404 = vsel %vm1402, %v1403, %v1401
        %v1405 = vrsqrt.pop %v1375
        %v1406 = vmul.f32 %v1375, %v1405
        %vm1407 = vcmp.eq.f32.partialorder %v1375, inf
        %v1408 = vsel %vm1407, %v1375, %v1406
        %vm1409 = vcmp.eq.f32.partialorder %v1375, 0.0
        %v1410 = vand.u32 %v1375, 2147483648
        %v1411 = vsel %vm1409, %v1410, %v1408
        %v1412 = vrsqrt.pop %v1378
        %v1413 = vmul.f32 %v1378, %v1412
        %vm1414 = vcmp.eq.f32.partialorder %v1378, inf
        %v1415 = vsel %vm1414, %v1378, %v1413
        %vm1416 = vcmp.eq.f32.partialorder %v1378, 0.0
        %v1417 = vand.u32 %v1378, 2147483648
        %v1418 = vsel %vm1416, %v1417, %v1415
        %v1419 = vrsqrt.pop %v1381
        %v1420 = vmul.f32 %v1381, %v1419
        %vm1421 = vcmp.eq.f32.partialorder %v1381, inf
        %v1422 = vsel %vm1421, %v1381, %v1420
        %vm1423 = vcmp.eq.f32.partialorder %v1381, 0.0
        %v1424 = vand.u32 %v1381, 2147483648
        %v1425 = vsel %vm1423, %v1424, %v1422
        %v1426 = vrsqrt.pop %v1384
        %v1427 = vmul.f32 %v1384, %v1426
        %vm1428 = vcmp.eq.f32.partialorder %v1384, inf
        %v1429 = vsel %vm1428, %v1384, %v1427
        %vm1430 = vcmp.eq.f32.partialorder %v1384, 0.0
        %v1431 = vand.u32 %v1384, 2147483648
        %v1432 = vsel %vm1430, %v1431, %v1429
        %v1433 = vrsqrt.pop %v1387
        %v1434 = vmul.f32 %v1387, %v1433
        %vm1435 = vcmp.eq.f32.partialorder %v1387, inf
        %v1436 = vsel %vm1435, %v1387, %v1434
        %vm1437 = vcmp.eq.f32.partialorder %v1387, 0.0
        %v1438 = vand.u32 %v1387, 2147483648
        %v1439 = vsel %vm1437, %v1438, %v1436
        %v1440 = vrsqrt.pop %v1390
        %v1441 = vmul.f32 %v1390, %v1440
        %vm1442 = vcmp.eq.f32.partialorder %v1390, inf
        %v1443 = vsel %vm1442, %v1390, %v1441
        %vm1444 = vcmp.eq.f32.partialorder %v1390, 0.0
        %v1445 = vand.u32 %v1390, 2147483648
        %v1446 = vsel %vm1444, %v1445, %v1443
        %v1447 = vmul.f32 %v1094, %v1094
        %v1448 = vmul.f32 %v1096, %v1096
        %v1449 = vmul.f32 %v1098, %v1098
        %v1450 = vmul.f32 %v1100, %v1100
        %v1451 = vmul.f32 %v1102, %v1102
        %v1452 = vmul.f32 %v1104, %v1104
        %v1453 = vmul.f32 %v1106, %v1106
        %v1454 = vmul.f32 %v1108, %v1108
        %v1455 = vsel %vm432, %v1447, 0.0
        %1456 = vadd.xlane.f32.xlu0 %v1455
        %v1457 = vpop.xlane.xlu0 %1456
        %v1458 = vsel %vm432, %v1448, 0.0
        %1459 = vadd.xlane.f32.xlu0 %v1458
        %v1460 = vpop.xlane.xlu0 %1459
        %v1461 = vsel %vm432, %v1449, 0.0
        %1462 = vadd.xlane.f32.xlu0 %v1461
        %v1463 = vpop.xlane.xlu0 %1462
        %v1464 = vsel %vm432, %v1450, 0.0
        %1465 = vadd.xlane.f32.xlu0 %v1464
        %v1466 = vpop.xlane.xlu0 %1465
        %v1467 = vsel %vm432, %v1451, 0.0
        %1468 = vadd.xlane.f32.xlu0 %v1467
        %v1469 = vpop.xlane.xlu0 %1468
        %v1470 = vsel %vm432, %v1452, 0.0
        %1471 = vadd.xlane.f32.xlu0 %v1470
        %v1472 = vpop.xlane.xlu0 %1471
        %v1473 = vsel %vm432, %v1453, 0.0
        %1474 = vadd.xlane.f32.xlu0 %v1473
        %v1475 = vpop.xlane.xlu0 %1474
        %v1476 = vsel %vm432, %v1454, 0.0
        %1477 = vadd.xlane.f32.xlu0 %v1476
        %v1478 = vpop.xlane.xlu0 %1477
        %v1479 = vrsqrt.pop %v1457
        %v1480 = vmul.f32 %v1457, %v1479
        %vm1481 = vcmp.eq.f32.partialorder %v1457, inf
        %v1482 = vsel %vm1481, %v1457, %v1480
        %vm1483 = vcmp.eq.f32.partialorder %v1457, 0.0
        %v1484 = vand.u32 %v1457, 2147483648
        %v1485 = vsel %vm1483, %v1484, %v1482
        %v1486 = vrsqrt.pop %v1460
        %v1487 = vmul.f32 %v1460, %v1486
        %vm1488 = vcmp.eq.f32.partialorder %v1460, inf
        %v1489 = vsel %vm1488, %v1460, %v1487
        %vm1490 = vcmp.eq.f32.partialorder %v1460, 0.0
        %v1491 = vand.u32 %v1460, 2147483648
        %v1492 = vsel %vm1490, %v1491, %v1489
        %v1493 = vrsqrt.pop %v1463
        %v1494 = vmul.f32 %v1463, %v1493
        %vm1495 = vcmp.eq.f32.partialorder %v1463, inf
        %v1496 = vsel %vm1495, %v1463, %v1494
        %vm1497 = vcmp.eq.f32.partialorder %v1463, 0.0
        %v1498 = vand.u32 %v1463, 2147483648
        %v1499 = vsel %vm1497, %v1498, %v1496
        %v1500 = vrsqrt.pop %v1466
        %v1501 = vmul.f32 %v1466, %v1500
        %vm1502 = vcmp.eq.f32.partialorder %v1466, inf
        %v1503 = vsel %vm1502, %v1466, %v1501
        %vm1504 = vcmp.eq.f32.partialorder %v1466, 0.0
        %v1505 = vand.u32 %v1466, 2147483648
        %v1506 = vsel %vm1504, %v1505, %v1503
        %v1507 = vrsqrt.pop %v1469
        %v1508 = vmul.f32 %v1469, %v1507
        %vm1509 = vcmp.eq.f32.partialorder %v1469, inf
        %v1510 = vsel %vm1509, %v1469, %v1508
        %vm1511 = vcmp.eq.f32.partialorder %v1469, 0.0
        %v1512 = vand.u32 %v1469, 2147483648
        %v1513 = vsel %vm1511, %v1512, %v1510
        %v1514 = vrsqrt.pop %v1472
        %v1515 = vmul.f32 %v1472, %v1514
        %vm1516 = vcmp.eq.f32.partialorder %v1472, inf
        %v1517 = vsel %vm1516, %v1472, %v1515
        %vm1518 = vcmp.eq.f32.partialorder %v1472, 0.0
        %v1519 = vand.u32 %v1472, 2147483648
        %v1520 = vsel %vm1518, %v1519, %v1517
        %v1521 = vrsqrt.pop %v1475
        %v1522 = vmul.f32 %v1475, %v1521
        %vm1523 = vcmp.eq.f32.partialorder %v1475, inf
        %v1524 = vsel %vm1523, %v1475, %v1522
        %vm1525 = vcmp.eq.f32.partialorder %v1475, 0.0
        %v1526 = vand.u32 %v1475, 2147483648
        %v1527 = vsel %vm1525, %v1526, %v1524
        %v1528 = vrsqrt.pop %v1478
        %v1529 = vmul.f32 %v1478, %v1528
        %vm1530 = vcmp.eq.f32.partialorder %v1478, inf
        %v1531 = vsel %vm1530, %v1478, %v1529
        %vm1532 = vcmp.eq.f32.partialorder %v1478, 0.0
        %v1533 = vand.u32 %v1478, 2147483648
        %v1534 = vsel %vm1532, %v1533, %v1531
        %v1535 = vmul.f32 %v416, %v1094
        %v1536 = vmul.f32 %v417, %v1096
        %v1537 = vmul.f32 %v418, %v1098
        %v1538 = vmul.f32 %v419, %v1100
        %v1539 = vmul.f32 %v420, %v1102
        %v1540 = vmul.f32 %v421, %v1104
        %v1541 = vmul.f32 %v422, %v1106
        %v1542 = vmul.f32 %v423, %v1108
        %v1543 = vsel %vm432, %v1535, 0.0
        %1544 = vadd.xlane.f32.xlu0 %v1543
        %v1545 = vpop.xlane.xlu0 %1544
        %v1546 = vsel %vm432, %v1536, 0.0
        %1547 = vadd.xlane.f32.xlu0 %v1546
        %v1548 = vpop.xlane.xlu0 %1547
        %v1549 = vsel %vm432, %v1537, 0.0
        %1550 = vadd.xlane.f32.xlu0 %v1549
        %v1551 = vpop.xlane.xlu0 %1550
        %v1552 = vsel %vm432, %v1538, 0.0
        %1553 = vadd.xlane.f32.xlu0 %v1552
        %v1554 = vpop.xlane.xlu0 %1553
        %v1555 = vsel %vm432, %v1539, 0.0
        %1556 = vadd.xlane.f32.xlu0 %v1555
        %v1557 = vpop.xlane.xlu0 %1556
        %v1558 = vsel %vm432, %v1540, 0.0
        %1559 = vadd.xlane.f32.xlu0 %v1558
        %v1560 = vpop.xlane.xlu0 %1559
        %v1561 = vsel %vm432, %v1541, 0.0
        %1562 = vadd.xlane.f32.xlu0 %v1561
        %v1563 = vpop.xlane.xlu0 %1562
        %v1564 = vsel %vm432, %v1542, 0.0
        %1565 = vadd.xlane.f32.xlu0 %v1564
        %v1566 = vpop.xlane.xlu0 %1565
        %v1567 = vmul.f32 %v1397, %v1485
        %v1568 = vmul.f32 %v1404, %v1492
        %v1569 = vmul.f32 %v1411, %v1499
        %v1570 = vmul.f32 %v1418, %v1506
        %v1571 = vmul.f32 %v1425, %v1513
        %v1572 = vmul.f32 %v1432, %v1520
        %v1573 = vmul.f32 %v1439, %v1527
        %v1574 = vmul.f32 %v1446, %v1534
        %v1575 = vmax.f32 %v1567, 1e-08
        %v1576 = vmax.f32 %v1568, 1e-08
        %v1577 = vmax.f32 %v1569, 1e-08
        %v1578 = vmax.f32 %v1570, 1e-08
        %v1579 = vmax.f32 %v1571, 1e-08
        %v1580 = vmax.f32 %v1572, 1e-08
        %v1581 = vmax.f32 %v1573, 1e-08
        %v1582 = vmax.f32 %v1574, 1e-08
        %v1583 = vrcp.pop %v1575
        %v1584 = vmul.f32 %v1545, %v1583
        %v1585 = vrcp.pop %v1576
        %v1586 = vmul.f32 %v1548, %v1585
        %v1587 = vrcp.pop %v1577
        %v1588 = vmul.f32 %v1551, %v1587
        %v1589 = vrcp.pop %v1578
        %v1590 = vmul.f32 %v1554, %v1589
        %v1591 = vrcp.pop %v1579
        %v1592 = vmul.f32 %v1557, %v1591
        %v1593 = vrcp.pop %v1580
        %v1594 = vmul.f32 %v1560, %v1593
        %v1595 = vrcp.pop %v1581
        %v1596 = vmul.f32 %v1563, %v1595
        %v1597 = vrcp.pop %v1582
        %v1598 = vmul.f32 %v1566, %v1597
        %v1599 = vsub.f32 1.0, %v1584
        %v1600 = vsub.f32 1.0, %v1586
        %v1601 = vsub.f32 1.0, %v1588
        %v1602 = vsub.f32 1.0, %v1590
        %v1603 = vsub.f32 1.0, %v1592
        %v1604 = vsub.f32 1.0, %v1594
        %v1605 = vsub.f32 1.0, %v1596
        %v1606 = vsub.f32 1.0, %v1598
        %v1607 = vmul.f32 %v1599, 0.2
        %v1608 = vmul.f32 %v1600, 0.2
        %v1609 = vmul.f32 %v1601, 0.2
        %v1610 = vmul.f32 %v1602, 0.2
        %v1611 = vmul.f32 %v1603, 0.2
        %v1612 = vmul.f32 %v1604, 0.2
        %v1613 = vmul.f32 %v1605, 0.2
        %v1614 = vmul.f32 %v1606, 0.2
        %v1615 = vadd.f32 %v1607, 0.05
        %v1616 = vadd.f32 %v1608, 0.05
        %v1617 = vadd.f32 %v1609, 0.05
        %v1618 = vadd.f32 %v1610, 0.05
        %v1619 = vadd.f32 %v1611, 0.05
        %v1620 = vadd.f32 %v1612, 0.05
        %v1621 = vadd.f32 %v1613, 0.05
        %v1622 = vadd.f32 %v1614, 0.05
        %v1623 = vmul.f32 %v1599, 0.1
        %v1624 = vmul.f32 %v1600, 0.1
        %v1625 = vmul.f32 %v1601, 0.1
        %v1626 = vmul.f32 %v1602, 0.1
        %v1627 = vmul.f32 %v1603, 0.1
        %v1628 = vmul.f32 %v1604, 0.1
        %v1629 = vmul.f32 %v1605, 0.1
        %v1630 = vmul.f32 %v1606, 0.1
        %v1631 = vsub.f32 0.15, %v1623
        %v1632 = vsub.f32 0.15, %v1624
        %v1633 = vsub.f32 0.15, %v1625
        %v1634 = vsub.f32 0.15, %v1626
        %v1635 = vsub.f32 0.15, %v1627
        %v1636 = vsub.f32 0.15, %v1628
        %v1637 = vsub.f32 0.15, %v1629
        %v1638 = vsub.f32 0.15, %v1630
        %vm1639 = vcmp.gt.f32.partialorder %v1200, %v1631
        %vm1640 = vcmp.gt.f32.partialorder %v1202, %v1631
        %vm1641 = vcmp.gt.f32.partialorder %v1313, %v1631
        %vm1642 = vcmp.gt.f32.partialorder %v1315, %v1631
        %vm1643 = vcmp.gt.f32.partialorder %v1206, %v1632
        %vm1644 = vcmp.gt.f32.partialorder %v1208, %v1632
        %vm1645 = vcmp.gt.f32.partialorder %v1319, %v1632
        %vm1646 = vcmp.gt.f32.partialorder %v1321, %v1632
        %vm1647 = vcmp.gt.f32.partialorder %v1212, %v1633
        %vm1648 = vcmp.gt.f32.partialorder %v1214, %v1633
        %vm1649 = vcmp.gt.f32.partialorder %v1325, %v1633
        %vm1650 = vcmp.gt.f32.partialorder %v1327, %v1633
        %vm1651 = vcmp.gt.f32.partialorder %v1218, %v1634
        %vm1652 = vcmp.gt.f32.partialorder %v1220, %v1634
        %vm1653 = vcmp.gt.f32.partialorder %v1331, %v1634
        %vm1654 = vcmp.gt.f32.partialorder %v1333, %v1634
        %vm1655 = vcmp.gt.f32.partialorder %v1224, %v1635
        %vm1656 = vcmp.gt.f32.partialorder %v1226, %v1635
        %vm1657 = vcmp.gt.f32.partialorder %v1337, %v1635
        %vm1658 = vcmp.gt.f32.partialorder %v1339, %v1635
        %vm1659 = vcmp.gt.f32.partialorder %v1230, %v1636
        %vm1660 = vcmp.gt.f32.partialorder %v1232, %v1636
        %vm1661 = vcmp.gt.f32.partialorder %v1343, %v1636
        %vm1662 = vcmp.gt.f32.partialorder %v1345, %v1636
        %vm1663 = vcmp.gt.f32.partialorder %v1236, %v1637
        %vm1664 = vcmp.gt.f32.partialorder %v1238, %v1637
        %vm1665 = vcmp.gt.f32.partialorder %v1349, %v1637
        %vm1666 = vcmp.gt.f32.partialorder %v1351, %v1637
        %vm1667 = vcmp.gt.f32.partialorder %v1242, %v1638
        %vm1668 = vcmp.gt.f32.partialorder %v1244, %v1638
        %vm1669 = vcmp.gt.f32.partialorder %v1355, %v1638
        %vm1670 = vcmp.gt.f32.partialorder %v1357, %v1638
        %v1671 = vsel %vm1639, 1, 0
        %v1672 = vsel %vm1640, 1, 0
        %v1673 = vsel %vm1641, 1, 0
        %v1674 = vsel %vm1642, 1, 0
        %v1675 = vsel %vm1643, 1, 0
        %v1676 = vsel %vm1644, 1, 0
        %v1677 = vsel %vm1645, 1, 0
        %v1678 = vsel %vm1646, 1, 0
        %v1679 = vsel %vm1647, 1, 0
        %v1680 = vsel %vm1648, 1, 0
        %v1681 = vsel %vm1649, 1, 0
        %v1682 = vsel %vm1650, 1, 0
        %v1683 = vsel %vm1651, 1, 0
        %v1684 = vsel %vm1652, 1, 0
        %v1685 = vsel %vm1653, 1, 0
        %v1686 = vsel %vm1654, 1, 0
        %v1687 = vsel %vm1655, 1, 0
        %v1688 = vsel %vm1656, 1, 0
        %v1689 = vsel %vm1657, 1, 0
        %v1690 = vsel %vm1658, 1, 0
        %v1691 = vsel %vm1659, 1, 0
        %v1692 = vsel %vm1660, 1, 0
        %v1693 = vsel %vm1661, 1, 0
        %v1694 = vsel %vm1662, 1, 0
        %v1695 = vsel %vm1663, 1, 0
        %v1696 = vsel %vm1664, 1, 0
        %v1697 = vsel %vm1665, 1, 0
        %v1698 = vsel %vm1666, 1, 0
        %v1699 = vsel %vm1667, 1, 0
        %v1700 = vsel %vm1668, 1, 0
        %v1701 = vsel %vm1669, 1, 0
        %v1702 = vsel %vm1670, 1, 0
        %v1703 = vcvt.s32.f32 %v1671
        %v1704 = vcvt.s32.f32 %v1672
        %v1705 = vcvt.s32.f32 %v1673
        %v1706 = vcvt.s32.f32 %v1674
        %v1707 = vcvt.s32.f32 %v1675
        %v1708 = vcvt.s32.f32 %v1676
        %v1709 = vcvt.s32.f32 %v1677
        %v1710 = vcvt.s32.f32 %v1678
        %v1711 = vcvt.s32.f32 %v1679
        %v1712 = vcvt.s32.f32 %v1680
        %v1713 = vcvt.s32.f32 %v1681
        %v1714 = vcvt.s32.f32 %v1682
        %v1715 = vcvt.s32.f32 %v1683
        %v1716 = vcvt.s32.f32 %v1684
        %v1717 = vcvt.s32.f32 %v1685
        %v1718 = vcvt.s32.f32 %v1686
        %v1719 = vcvt.s32.f32 %v1687
        %v1720 = vcvt.s32.f32 %v1688
        %v1721 = vcvt.s32.f32 %v1689
        %v1722 = vcvt.s32.f32 %v1690
        %v1723 = vcvt.s32.f32 %v1691
        %v1724 = vcvt.s32.f32 %v1692
        %v1725 = vcvt.s32.f32 %v1693
        %v1726 = vcvt.s32.f32 %v1694
        %v1727 = vcvt.s32.f32 %v1695
        %v1728 = vcvt.s32.f32 %v1696
        %v1729 = vcvt.s32.f32 %v1697
        %v1730 = vcvt.s32.f32 %v1698
        %v1731 = vcvt.s32.f32 %v1699
        %v1732 = vcvt.s32.f32 %v1700
        %v1733 = vcvt.s32.f32 %v1701
        %v1734 = vcvt.s32.f32 %v1702
        %1735 = vmatprep.subr.mxu0 0.0
        %1736 = vmatpush1.msra.mxu0 %v351
        %1737 = vmatprep.subr.mxu0 0.0
        %1738 = vmatpush1.msra.mxu0 %v350
        %1739 = vmatprep.subr.mxu0 0.0
        %1740 = vmatpush1.msra.mxu0 %v349
        %1741 = vmatprep.subr.mxu0 0.0
        %1742 = vmatpush1.msra.mxu0 %v348
        %1743 = vmatprep.subr.mxu0 0.0
        %1744 = vmatpush1.msra.mxu0 %v347
        %1745 = vmatprep.subr.mxu0 0.0
        %1746 = vmatpush1.msra.mxu0 %v346
        %1747 = vmatprep.subr.mxu0 0.0
        %1748 = vmatpush1.msra.mxu0 %v345
        %1749 = vmatprep.subr.mxu0 0.0
        %1750 = vmatpush1.msra.mxu0 %v344
        %1751 = vmatprep.subr.mxu0 0.0
        %1752 = vmatpush1.msra.mxu0 %v343
        %1753 = vmatprep.subr.mxu0 0.0
        %1754 = vmatpush1.msra.mxu0 %v342
        %1755 = vmatprep.subr.mxu0 0.0
        %1756 = vmatpush1.msra.mxu0 %v341
        %1757 = vmatprep.subr.mxu0 0.0
        %1758 = vmatpush1.msra.mxu0 %v340
        %1759 = vmatprep.subr.mxu0 0.0
        %1760 = vmatpush1.msra.mxu0 %v339
        %1761 = vmatprep.subr.mxu0 0.0
        %1762 = vmatpush1.msra.mxu0 %v338
        %1763 = vmatprep.subr.mxu0 0.0
        %1764 = vmatpush1.msra.mxu0 %v337
        %1765 = vmatprep.subr.mxu0 0.0
        %1766 = vmatpush1.msra.mxu0 %v336
        %1767 = vmatprep.subr.mxu0 0.0
        %1768 = vmatpush2.msra.mxu0 %v367
        %1769 = vmatprep.subr.mxu0 0.0
        %1770 = vmatpush2.msra.mxu0 %v366
        %1771 = vmatprep.subr.mxu0 0.0
        %1772 = vmatpush2.msra.mxu0 %v365
        %1773 = vmatprep.subr.mxu0 0.0
        %1774 = vmatpush2.msra.mxu0 %v364
        %1775 = vmatprep.subr.mxu0 0.0
        %1776 = vmatpush2.msra.mxu0 %v363
        %1777 = vmatprep.subr.mxu0 0.0
        %1778 = vmatpush2.msra.mxu0 %v362
        %1779 = vmatprep.subr.mxu0 0.0
        %1780 = vmatpush2.msra.mxu0 %v361
        %1781 = vmatprep.subr.mxu0 0.0
        %1782 = vmatpush2.msra.mxu0 %v360
        %1783 = vmatprep.subr.mxu0 0.0
        %1784 = vmatpush2.msra.mxu0 %v359
        %1785 = vmatprep.subr.mxu0 0.0
        %1786 = vmatpush2.msra.mxu0 %v358
        %1787 = vmatprep.subr.mxu0 0.0
        %1788 = vmatpush2.msra.mxu0 %v357
        %1789 = vmatprep.subr.mxu0 0.0
        %1790 = vmatpush2.msra.mxu0 %v356
        %1791 = vmatprep.subr.mxu0 0.0
        %1792 = vmatpush2.msra.mxu0 %v355
        %1793 = vmatprep.subr.mxu0 0.0
        %1794 = vmatpush2.msra.mxu0 %v354
        %1795 = vmatprep.subr.mxu0 0.0
        %1796 = vmatpush2.msra.mxu0 %v353
        %1797 = vmatprep.subr.mxu0 0.0
        %1798 = vmatpush2.msra.mxu0 %v352
        %1799 = vmatprep.mubr.f32.mxu0 %v1704
        %1800 = vmatmul.mubr.f32.gmra.mxu0 %v1703
        %v1801 = vpop.f32.mrf.mxu0
        %v1802 = vadd.f32 0.0, %v1801
        %v1803 = vpop.f32.mrf.mxu0
        %1804 = vmatprep.mubr.f32.mxu0 %v1708
        %1805 = vmatmul.mubr.f32.gmra.mxu0 %v1707
        %v1806 = vpop.f32.mrf.mxu0
        %v1807 = vadd.f32 0.0, %v1806
        %v1808 = vpop.f32.mrf.mxu0
        %1809 = vmatprep.mubr.f32.mxu0 %v1712
        %1810 = vmatmul.mubr.f32.gmra.mxu0 %v1711
        %v1811 = vpop.f32.mrf.mxu0
        %v1812 = vadd.f32 0.0, %v1811
        %v1813 = vpop.f32.mrf.mxu0
        %1814 = vmatprep.mubr.f32.mxu0 %v1716
        %1815 = vmatmul.mubr.f32.gmra.mxu0 %v1715
        %v1816 = vpop.f32.mrf.mxu0
        %v1817 = vadd.f32 0.0, %v1816
        %v1818 = vpop.f32.mrf.mxu0
        %1819 = vmatprep.mubr.f32.mxu0 %v1720
        %1820 = vmatmul.mubr.f32.gmra.mxu0 %v1719
        %v1821 = vpop.f32.mrf.mxu0
        %v1822 = vadd.f32 0.0, %v1821
        %v1823 = vpop.f32.mrf.mxu0
        %1824 = vmatprep.mubr.f32.mxu0 %v1724
        %1825 = vmatmul.mubr.f32.gmra.mxu0 %v1723
        %v1826 = vpop.f32.mrf.mxu0
        %v1827 = vadd.f32 0.0, %v1826
        %v1828 = vpop.f32.mrf.mxu0
        %1829 = vmatprep.mubr.f32.mxu0 %v1728
        %1830 = vmatmul.mubr.f32.gmra.mxu0 %v1727
        %v1831 = vpop.f32.mrf.mxu0
        %v1832 = vadd.f32 0.0, %v1831
        %v1833 = vpop.f32.mrf.mxu0
        %1834 = vmatprep.mubr.f32.mxu0 %v1732
        %1835 = vmatmul.mubr.f32.gmra.mxu0 %v1731
        %v1836 = vpop.f32.mrf.mxu0
        %v1837 = vadd.f32 0.0, %v1836
        %v1838 = vpop.f32.mrf.mxu0
        %1839 = vdwg.mxu0
        %1840 = vmatprep.subr.mxu0 0.0
        %1841 = vmatpush1.msra.mxu0 %v383
        %1842 = vmatprep.subr.mxu0 0.0
        %1843 = vmatpush1.msra.mxu0 %v382
        %1844 = vmatprep.subr.mxu0 0.0
        %1845 = vmatpush1.msra.mxu0 %v381
        %1846 = vmatprep.subr.mxu0 0.0
        %1847 = vmatpush1.msra.mxu0 %v380
        %1848 = vmatprep.subr.mxu0 0.0
        %1849 = vmatpush1.msra.mxu0 %v379
        %1850 = vmatprep.subr.mxu0 0.0
        %1851 = vmatpush1.msra.mxu0 %v378
        %1852 = vmatprep.subr.mxu0 0.0
        %1853 = vmatpush1.msra.mxu0 %v377
        %1854 = vmatprep.subr.mxu0 0.0
        %1855 = vmatpush1.msra.mxu0 %v376
        %1856 = vmatprep.subr.mxu0 0.0
        %1857 = vmatpush1.msra.mxu0 %v375
        %1858 = vmatprep.subr.mxu0 0.0
        %1859 = vmatpush1.msra.mxu0 %v374
        %1860 = vmatprep.subr.mxu0 0.0
        %1861 = vmatpush1.msra.mxu0 %v373
        %1862 = vmatprep.subr.mxu0 0.0
        %1863 = vmatpush1.msra.mxu0 %v372
        %1864 = vmatprep.subr.mxu0 0.0
        %1865 = vmatpush1.msra.mxu0 %v371
        %1866 = vmatprep.subr.mxu0 0.0
        %1867 = vmatpush1.msra.mxu0 %v370
        %1868 = vmatprep.subr.mxu0 0.0
        %1869 = vmatpush1.msra.mxu0 %v369
        %1870 = vmatprep.subr.mxu0 0.0
        %1871 = vmatpush1.msra.mxu0 %v368
        %1872 = vmatprep.subr.mxu0 0.0
        %1873 = vmatpush2.msra.mxu0 %v399
        %1874 = vmatprep.subr.mxu0 0.0
        %1875 = vmatpush2.msra.mxu0 %v398
        %1876 = vmatprep.subr.mxu0 0.0
        %1877 = vmatpush2.msra.mxu0 %v397
        %1878 = vmatprep.subr.mxu0 0.0
        %1879 = vmatpush2.msra.mxu0 %v396
        %1880 = vmatprep.subr.mxu0 0.0
        %1881 = vmatpush2.msra.mxu0 %v395
        %1882 = vmatprep.subr.mxu0 0.0
        %1883 = vmatpush2.msra.mxu0 %v394
        %1884 = vmatprep.subr.mxu0 0.0
        %1885 = vmatpush2.msra.mxu0 %v393
        %1886 = vmatprep.subr.mxu0 0.0
        %1887 = vmatpush2.msra.mxu0 %v392
        %1888 = vmatprep.subr.mxu0 0.0
        %1889 = vmatpush2.msra.mxu0 %v391
        %1890 = vmatprep.subr.mxu0 0.0
        %1891 = vmatpush2.msra.mxu0 %v390
        %1892 = vmatprep.subr.mxu0 0.0
        %1893 = vmatpush2.msra.mxu0 %v389
        %1894 = vmatprep.subr.mxu0 0.0
        %1895 = vmatpush2.msra.mxu0 %v388
        %1896 = vmatprep.subr.mxu0 0.0
        %1897 = vmatpush2.msra.mxu0 %v387
        %1898 = vmatprep.subr.mxu0 0.0
        %1899 = vmatpush2.msra.mxu0 %v386
        %1900 = vmatprep.subr.mxu0 0.0
        %1901 = vmatpush2.msra.mxu0 %v385
        %1902 = vmatprep.subr.mxu0 0.0
        %1903 = vmatpush2.msra.mxu0 %v384
        %1904 = vmatprep.mubr.f32.mxu0 %v1706
        %1905 = vmatmul.mubr.f32.gmra.mxu0 %v1705
        %v1906 = vpop.f32.mrf.mxu0
        %v1907 = vadd.f32 %v1802, %v1906
        %v1908 = vpop.f32.mrf.mxu0
        %1909 = vmatprep.mubr.f32.mxu0 %v1710
        %1910 = vmatmul.mubr.f32.gmra.mxu0 %v1709
        %v1911 = vpop.f32.mrf.mxu0
        %v1912 = vadd.f32 %v1807, %v1911
        %v1913 = vpop.f32.mrf.mxu0
        %1914 = vmatprep.mubr.f32.mxu0 %v1714
        %1915 = vmatmul.mubr.f32.gmra.mxu0 %v1713
        %v1916 = vpop.f32.mrf.mxu0
        %v1917 = vadd.f32 %v1812, %v1916
        %v1918 = vpop.f32.mrf.mxu0
        %1919 = vmatprep.mubr.f32.mxu0 %v1718
        %1920 = vmatmul.mubr.f32.gmra.mxu0 %v1717
        %v1921 = vpop.f32.mrf.mxu0
        %v1922 = vadd.f32 %v1817, %v1921
        %v1923 = vpop.f32.mrf.mxu0
        %1924 = vmatprep.mubr.f32.mxu0 %v1722
        %1925 = vmatmul.mubr.f32.gmra.mxu0 %v1721
        %v1926 = vpop.f32.mrf.mxu0
        %v1927 = vadd.f32 %v1822, %v1926
        %v1928 = vpop.f32.mrf.mxu0
        %1929 = vmatprep.mubr.f32.mxu0 %v1726
        %1930 = vmatmul.mubr.f32.gmra.mxu0 %v1725
        %v1931 = vpop.f32.mrf.mxu0
        %v1932 = vadd.f32 %v1827, %v1931
        %v1933 = vpop.f32.mrf.mxu0
        %1934 = vmatprep.mubr.f32.mxu0 %v1730
        %1935 = vmatmul.mubr.f32.gmra.mxu0 %v1729
        %v1936 = vpop.f32.mrf.mxu0
        %v1937 = vadd.f32 %v1832, %v1936
        %v1938 = vpop.f32.mrf.mxu0
        %1939 = vmatprep.mubr.f32.mxu0 %v1734
        %1940 = vmatmul.mubr.f32.gmra.mxu0 %v1733
        %v1941 = vpop.f32.mrf.mxu0
        %v1942 = vadd.f32 %v1837, %v1941
        %v1943 = vpop.f32.mrf.mxu0
        %1944 = vdwg.mxu0
        %v1945 = vmul.f32 %v1907, 0.001953125
        %v1946 = vmul.f32 %v1912, 0.001953125
        %v1947 = vmul.f32 %v1917, 0.001953125
        %v1948 = vmul.f32 %v1922, 0.001953125
        %v1949 = vmul.f32 %v1927, 0.001953125
        %v1950 = vmul.f32 %v1932, 0.001953125
        %v1951 = vmul.f32 %v1937, 0.001953125
        %v1952 = vmul.f32 %v1942, 0.001953125
        %v1953 = vmul.f32 %v1945, %v1945
        %v1954 = vmul.f32 %v1946, %v1946
        %v1955 = vmul.f32 %v1947, %v1947
        %v1956 = vmul.f32 %v1948, %v1948
        %v1957 = vmul.f32 %v1949, %v1949
        %v1958 = vmul.f32 %v1950, %v1950
        %v1959 = vmul.f32 %v1951, %v1951
        %v1960 = vmul.f32 %v1952, %v1952
        %v1961 = vsel %vm432, %v1953, 0.0
        %1962 = vadd.xlane.f32.xlu0 %v1961
        %v1963 = vpop.xlane.xlu0 %1962
        %v1964 = vsel %vm432, %v1954, 0.0
        %1965 = vadd.xlane.f32.xlu0 %v1964
        %v1966 = vpop.xlane.xlu0 %1965
        %v1967 = vsel %vm432, %v1955, 0.0
        %1968 = vadd.xlane.f32.xlu0 %v1967
        %v1969 = vpop.xlane.xlu0 %1968
        %v1970 = vsel %vm432, %v1956, 0.0
        %1971 = vadd.xlane.f32.xlu0 %v1970
        %v1972 = vpop.xlane.xlu0 %1971
        %v1973 = vsel %vm432, %v1957, 0.0
        %1974 = vadd.xlane.f32.xlu0 %v1973
        %v1975 = vpop.xlane.xlu0 %1974
        %v1976 = vsel %vm432, %v1958, 0.0
        %1977 = vadd.xlane.f32.xlu0 %v1976
        %v1978 = vpop.xlane.xlu0 %1977
        %v1979 = vsel %vm432, %v1959, 0.0
        %1980 = vadd.xlane.f32.xlu0 %v1979
        %v1981 = vpop.xlane.xlu0 %1980
        %v1982 = vsel %vm432, %v1960, 0.0
        %1983 = vadd.xlane.f32.xlu0 %v1982
        %v1984 = vpop.xlane.xlu0 %1983
        %v1985 = vrsqrt.pop %v1963
        %v1986 = vmul.f32 %v1963, %v1985
        %vm1987 = vcmp.eq.f32.partialorder %v1963, inf
        %v1988 = vsel %vm1987, %v1963, %v1986
        %vm1989 = vcmp.eq.f32.partialorder %v1963, 0.0
        %v1990 = vand.u32 %v1963, 2147483648
        %v1991 = vsel %vm1989, %v1990, %v1988
        %v1992 = vrsqrt.pop %v1966
        %v1993 = vmul.f32 %v1966, %v1992
        %vm1994 = vcmp.eq.f32.partialorder %v1966, inf
        %v1995 = vsel %vm1994, %v1966, %v1993
        %vm1996 = vcmp.eq.f32.partialorder %v1966, 0.0
        %v1997 = vand.u32 %v1966, 2147483648
        %v1998 = vsel %vm1996, %v1997, %v1995
        %v1999 = vrsqrt.pop %v1969
        %v2000 = vmul.f32 %v1969, %v1999
        %vm2001 = vcmp.eq.f32.partialorder %v1969, inf
        %v2002 = vsel %vm2001, %v1969, %v2000
        %vm2003 = vcmp.eq.f32.partialorder %v1969, 0.0
        %v2004 = vand.u32 %v1969, 2147483648
        %v2005 = vsel %vm2003, %v2004, %v2002
        %v2006 = vrsqrt.pop %v1972
        %v2007 = vmul.f32 %v1972, %v2006
        %vm2008 = vcmp.eq.f32.partialorder %v1972, inf
        %v2009 = vsel %vm2008, %v1972, %v2007
        %vm2010 = vcmp.eq.f32.partialorder %v1972, 0.0
        %v2011 = vand.u32 %v1972, 2147483648
        %v2012 = vsel %vm2010, %v2011, %v2009
        %v2013 = vrsqrt.pop %v1975
        %v2014 = vmul.f32 %v1975, %v2013
        %vm2015 = vcmp.eq.f32.partialorder %v1975, inf
        %v2016 = vsel %vm2015, %v1975, %v2014
        %vm2017 = vcmp.eq.f32.partialorder %v1975, 0.0
        %v2018 = vand.u32 %v1975, 2147483648
        %v2019 = vsel %vm2017, %v2018, %v2016
        %v2020 = vrsqrt.pop %v1978
        %v2021 = vmul.f32 %v1978, %v2020
        %vm2022 = vcmp.eq.f32.partialorder %v1978, inf
        %v2023 = vsel %vm2022, %v1978, %v2021
        %vm2024 = vcmp.eq.f32.partialorder %v1978, 0.0
        %v2025 = vand.u32 %v1978, 2147483648
        %v2026 = vsel %vm2024, %v2025, %v2023
        %v2027 = vrsqrt.pop %v1981
        %v2028 = vmul.f32 %v1981, %v2027
        %vm2029 = vcmp.eq.f32.partialorder %v1981, inf
        %v2030 = vsel %vm2029, %v1981, %v2028
        %vm2031 = vcmp.eq.f32.partialorder %v1981, 0.0
        %v2032 = vand.u32 %v1981, 2147483648
        %v2033 = vsel %vm2031, %v2032, %v2030
        %v2034 = vrsqrt.pop %v1984
        %v2035 = vmul.f32 %v1984, %v2034
        %vm2036 = vcmp.eq.f32.partialorder %v1984, inf
        %v2037 = vsel %vm2036, %v1984, %v2035
        %vm2038 = vcmp.eq.f32.partialorder %v1984, 0.0
        %v2039 = vand.u32 %v1984, 2147483648
        %v2040 = vsel %vm2038, %v2039, %v2037
        %v2041 = vmax.f32 %v1991, 1e-12
        %v2042 = vmax.f32 %v1998, 1e-12
        %v2043 = vmax.f32 %v2005, 1e-12
        %v2044 = vmax.f32 %v2012, 1e-12
        %v2045 = vmax.f32 %v2019, 1e-12
        %v2046 = vmax.f32 %v2026, 1e-12
        %v2047 = vmax.f32 %v2033, 1e-12
        %v2048 = vmax.f32 %v2040, 1e-12
        %v2049 = vrcp.pop %v2041
        %v2050 = vmul.f32 %v1945, %v2049
        %v2051 = vrcp.pop %v2042
        %v2052 = vmul.f32 %v1946, %v2051
        %v2053 = vrcp.pop %v2043
        %v2054 = vmul.f32 %v1947, %v2053
        %v2055 = vrcp.pop %v2044
        %v2056 = vmul.f32 %v1948, %v2055
        %v2057 = vrcp.pop %v2045
        %v2058 = vmul.f32 %v1949, %v2057
        %v2059 = vrcp.pop %v2046
        %v2060 = vmul.f32 %v1950, %v2059
        %v2061 = vrcp.pop %v2047
        %v2062 = vmul.f32 %v1951, %v2061
        %v2063 = vrcp.pop %v2048
        %v2064 = vmul.f32 %v1952, %v2063
        %v2066 = vsel %vm432, %v2050, 0
        %v2069 = vsel %vm432, %v2052, 0
        %v2072 = vsel %vm432, %v2054, 0
        %v2075 = vsel %vm432, %v2056, 0
        %v2078 = vsel %vm432, %v2058, 0
        %v2081 = vsel %vm432, %v2060, 0
        %v2084 = vsel %vm432, %v2062, 0
        %v2087 = vsel %vm432, %v2064, 0
        %2089 = vmatprep.subr.mxu0 0.0
        %2090 = vmatpush1.msra.mxu0 0.0
        %2091 = vmatprep.subr.mxu0 0.0
        %2092 = vmatpush1.msra.mxu0 0.0
        %2093 = vmatprep.subr.mxu0 0.0
        %2094 = vmatpush1.msra.mxu0 0.0
        %2095 = vmatprep.subr.mxu0 0.0
        %2096 = vmatpush1.msra.mxu0 0.0
        %2097 = vmatprep.subr.mxu0 0.0
        %2098 = vmatpush1.msra.mxu0 0.0
        %2099 = vmatprep.subr.mxu0 0.0
        %2100 = vmatpush1.msra.mxu0 0.0
        %2101 = vmatprep.subr.mxu0 0.0
        %2102 = vmatpush1.msra.mxu0 0.0
        %2103 = vmatprep.subr.mxu0 0.0
        %2104 = vmatpush1.msra.mxu0 0.0
        %2105 = vmatprep.subr.mxu0 0.0
        %2106 = vmatpush1.msra.mxu0 0.0
        %2107 = vmatprep.subr.mxu0 0.0
        %2108 = vmatpush1.msra.mxu0 0.0
        %2109 = vmatprep.subr.mxu0 0.0
        %2110 = vmatpush1.msra.mxu0 0.0
        %2111 = vmatprep.subr.mxu0 0.0
        %2112 = vmatpush1.msra.mxu0 0.0
        %2113 = vmatprep.subr.mxu0 %v413
        %2114 = vmatpush1.msra.mxu0 %v412
        %2115 = vmatprep.subr.mxu0 %v409
        %2116 = vmatpush1.msra.mxu0 %v408
        %2117 = vmatprep.subr.mxu0 %v405
        %2118 = vmatpush1.msra.mxu0 %v404
        %2119 = vmatprep.subr.mxu0 %v401
        %2120 = vmatpush1.msra.mxu0 %v400
        %2121 = vmatprep.subr.mxu0 0.0
        %2122 = vmatpush2.msra.mxu0 0.0
        %2123 = vmatprep.subr.mxu0 0.0
        %2124 = vmatpush2.msra.mxu0 0.0
        %2125 = vmatprep.subr.mxu0 0.0
        %2126 = vmatpush2.msra.mxu0 0.0
        %2127 = vmatprep.subr.mxu0 0.0
        %2128 = vmatpush2.msra.mxu0 0.0
        %2129 = vmatprep.subr.mxu0 0.0
        %2130 = vmatpush2.msra.mxu0 0.0
        %2131 = vmatprep.subr.mxu0 0.0
        %2132 = vmatpush2.msra.mxu0 0.0
        %2133 = vmatprep.subr.mxu0 0.0
        %2134 = vmatpush2.msra.mxu0 0.0
        %2135 = vmatprep.subr.mxu0 0.0
        %2136 = vmatpush2.msra.mxu0 0.0
        %2137 = vmatprep.subr.mxu0 0.0
        %2138 = vmatpush2.msra.mxu0 0.0
        %2139 = vmatprep.subr.mxu0 0.0
        %2140 = vmatpush2.msra.mxu0 0.0
        %2141 = vmatprep.subr.mxu0 0.0
        %2142 = vmatpush2.msra.mxu0 0.0
        %2143 = vmatprep.subr.mxu0 0.0
        %2144 = vmatpush2.msra.mxu0 0.0
        %2145 = vmatprep.subr.mxu0 0.0
        %2146 = vmatpush2.msra.mxu0 0.0
        %2147 = vmatprep.subr.mxu0 0.0
        %2148 = vmatpush2.msra.mxu0 0.0
        %2149 = vmatprep.subr.mxu0 0.0
        %2150 = vmatpush2.msra.mxu0 0.0
        %2151 = vmatprep.subr.mxu0 0.0
        %2152 = vmatpush2.msra.mxu0 0.0
        %2153 = vmatprep.mubr.f32.mxu0 0.0
        %2154 = vmatmul.mubr.f32.gmra.mxu0 %v2066
        %v2155 = vpop.f32.mrf.mxu0
        %v2156 = vadd.f32 0.0, %v2155
        %v2157 = vpop.f32.mrf.mxu0
        %v2158 = vadd.f32 0.0, %v2157
        %2159 = vmatprep.mubr.f32.mxu0 0.0
        %2160 = vmatmul.mubr.f32.gmra.mxu0 %v2069
        %v2161 = vpop.f32.mrf.mxu0
        %v2162 = vadd.f32 0.0, %v2161
        %v2163 = vpop.f32.mrf.mxu0
        %v2164 = vadd.f32 0.0, %v2163
        %2165 = vmatprep.mubr.f32.mxu0 0.0
        %2166 = vmatmul.mubr.f32.gmra.mxu0 %v2072
        %v2167 = vpop.f32.mrf.mxu0
        %v2168 = vadd.f32 0.0, %v2167
        %v2169 = vpop.f32.mrf.mxu0
        %v2170 = vadd.f32 0.0, %v2169
        %2171 = vmatprep.mubr.f32.mxu0 0.0
        %2172 = vmatmul.mubr.f32.gmra.mxu0 %v2075
        %v2173 = vpop.f32.mrf.mxu0
        %v2174 = vadd.f32 0.0, %v2173
        %v2175 = vpop.f32.mrf.mxu0
        %v2176 = vadd.f32 0.0, %v2175
        %2177 = vmatprep.mubr.f32.mxu0 0.0
        %2178 = vmatmul.mubr.f32.gmra.mxu0 %v2078
        %v2179 = vpop.f32.mrf.mxu0
        %v2180 = vadd.f32 0.0, %v2179
        %v2181 = vpop.f32.mrf.mxu0
        %v2182 = vadd.f32 0.0, %v2181
        %2183 = vmatprep.mubr.f32.mxu0 0.0
        %2184 = vmatmul.mubr.f32.gmra.mxu0 %v2081
        %v2185 = vpop.f32.mrf.mxu0
        %v2186 = vadd.f32 0.0, %v2185
        %v2187 = vpop.f32.mrf.mxu0
        %v2188 = vadd.f32 0.0, %v2187
        %2189 = vmatprep.mubr.f32.mxu0 0.0
        %2190 = vmatmul.mubr.f32.gmra.mxu0 %v2084
        %v2191 = vpop.f32.mrf.mxu0
        %v2192 = vadd.f32 0.0, %v2191
        %v2193 = vpop.f32.mrf.mxu0
        %v2194 = vadd.f32 0.0, %v2193
        %2195 = vmatprep.mubr.f32.mxu0 0.0
        %2196 = vmatmul.mubr.f32.gmra.mxu0 %v2087
        %v2197 = vpop.f32.mrf.mxu0
        %v2198 = vadd.f32 0.0, %v2197
        %v2199 = vpop.f32.mrf.mxu0
        %v2200 = vadd.f32 0.0, %v2199
        %2201 = vdwg.mxu0
        %2202 = vmatprep.subr.mxu0 0.0
        %2203 = vmatpush1.msra.mxu0 0.0
        %2204 = vmatprep.subr.mxu0 0.0
        %2205 = vmatpush1.msra.mxu0 0.0
        %2206 = vmatprep.subr.mxu0 0.0
        %2207 = vmatpush1.msra.mxu0 0.0
        %2208 = vmatprep.subr.mxu0 0.0
        %2209 = vmatpush1.msra.mxu0 0.0
        %2210 = vmatprep.subr.mxu0 0.0
        %2211 = vmatpush1.msra.mxu0 0.0
        %2212 = vmatprep.subr.mxu0 0.0
        %2213 = vmatpush1.msra.mxu0 0.0
        %2214 = vmatprep.subr.mxu0 0.0
        %2215 = vmatpush1.msra.mxu0 0.0
        %2216 = vmatprep.subr.mxu0 0.0
        %2217 = vmatpush1.msra.mxu0 0.0
        %2218 = vmatprep.subr.mxu0 0.0
        %2219 = vmatpush1.msra.mxu0 0.0
        %2220 = vmatprep.subr.mxu0 0.0
        %2221 = vmatpush1.msra.mxu0 0.0
        %2222 = vmatprep.subr.mxu0 0.0
        %2223 = vmatpush1.msra.mxu0 0.0
        %2224 = vmatprep.subr.mxu0 0.0
        %2225 = vmatpush1.msra.mxu0 0.0
        %2226 = vmatprep.subr.mxu0 %v415
        %2227 = vmatpush1.msra.mxu0 %v414
        %2228 = vmatprep.subr.mxu0 %v411
        %2229 = vmatpush1.msra.mxu0 %v410
        %2230 = vmatprep.subr.mxu0 %v407
        %2231 = vmatpush1.msra.mxu0 %v406
        %2232 = vmatprep.subr.mxu0 %v403
        %2233 = vmatpush1.msra.mxu0 %v402
        %2234 = vmatprep.subr.mxu0 0.0
        %2235 = vmatpush2.msra.mxu0 0.0
        %2236 = vmatprep.subr.mxu0 0.0
        %2237 = vmatpush2.msra.mxu0 0.0
        %2238 = vmatprep.subr.mxu0 0.0
        %2239 = vmatpush2.msra.mxu0 0.0
        %2240 = vmatprep.subr.mxu0 0.0
        %2241 = vmatpush2.msra.mxu0 0.0
        %2242 = vmatprep.subr.mxu0 0.0
        %2243 = vmatpush2.msra.mxu0 0.0
        %2244 = vmatprep.subr.mxu0 0.0
        %2245 = vmatpush2.msra.mxu0 0.0
        %2246 = vmatprep.subr.mxu0 0.0
        %2247 = vmatpush2.msra.mxu0 0.0
        %2248 = vmatprep.subr.mxu0 0.0
        %2249 = vmatpush2.msra.mxu0 0.0
        %2250 = vmatprep.subr.mxu0 0.0
        %2251 = vmatpush2.msra.mxu0 0.0
        %2252 = vmatprep.subr.mxu0 0.0
        %2253 = vmatpush2.msra.mxu0 0.0
        %2254 = vmatprep.subr.mxu0 0.0
        %2255 = vmatpush2.msra.mxu0 0.0
        %2256 = vmatprep.subr.mxu0 0.0
        %2257 = vmatpush2.msra.mxu0 0.0
        %2258 = vmatprep.subr.mxu0 0.0
        %2259 = vmatpush2.msra.mxu0 0.0
        %2260 = vmatprep.subr.mxu0 0.0
        %2261 = vmatpush2.msra.mxu0 0.0
        %2262 = vmatprep.subr.mxu0 0.0
        %2263 = vmatpush2.msra.mxu0 0.0
        %2264 = vmatprep.subr.mxu0 0.0
        %2265 = vmatpush2.msra.mxu0 0.0
        %2266 = vmatprep.mubr.f32.mxu0 0.0
        %2267 = vmatmul.mubr.f32.gmra.mxu0 %v2066
        %v2268 = vpop.f32.mrf.mxu0
        %v2269 = vadd.f32 0.0, %v2268
        %v2270 = vpop.f32.mrf.mxu0
        %v2271 = vadd.f32 0.0, %v2270
        %2272 = vmatprep.mubr.f32.mxu0 0.0
        %2273 = vmatmul.mubr.f32.gmra.mxu0 %v2069
        %v2274 = vpop.f32.mrf.mxu0
        %v2275 = vadd.f32 0.0, %v2274
        %v2276 = vpop.f32.mrf.mxu0
        %v2277 = vadd.f32 0.0, %v2276
        %2278 = vmatprep.mubr.f32.mxu0 0.0
        %2279 = vmatmul.mubr.f32.gmra.mxu0 %v2072
        %v2280 = vpop.f32.mrf.mxu0
        %v2281 = vadd.f32 0.0, %v2280
        %v2282 = vpop.f32.mrf.mxu0
        %v2283 = vadd.f32 0.0, %v2282
        %2284 = vmatprep.mubr.f32.mxu0 0.0
        %2285 = vmatmul.mubr.f32.gmra.mxu0 %v2075
        %v2286 = vpop.f32.mrf.mxu0
        %v2287 = vadd.f32 0.0, %v2286
        %v2288 = vpop.f32.mrf.mxu0
        %v2289 = vadd.f32 0.0, %v2288
        %2290 = vmatprep.mubr.f32.mxu0 0.0
        %2291 = vmatmul.mubr.f32.gmra.mxu0 %v2078
        %v2292 = vpop.f32.mrf.mxu0
        %v2293 = vadd.f32 0.0, %v2292
        %v2294 = vpop.f32.mrf.mxu0
        %v2295 = vadd.f32 0.0, %v2294
        %2296 = vmatprep.mubr.f32.mxu0 0.0
        %2297 = vmatmul.mubr.f32.gmra.mxu0 %v2081
        %v2298 = vpop.f32.mrf.mxu0
        %v2299 = vadd.f32 0.0, %v2298
        %v2300 = vpop.f32.mrf.mxu0
        %v2301 = vadd.f32 0.0, %v2300
        %2302 = vmatprep.mubr.f32.mxu0 0.0
        %2303 = vmatmul.mubr.f32.gmra.mxu0 %v2084
        %v2304 = vpop.f32.mrf.mxu0
        %v2305 = vadd.f32 0.0, %v2304
        %v2306 = vpop.f32.mrf.mxu0
        %v2307 = vadd.f32 0.0, %v2306
        %2308 = vmatprep.mubr.f32.mxu0 0.0
        %2309 = vmatmul.mubr.f32.gmra.mxu0 %v2087
        %v2310 = vpop.f32.mrf.mxu0
        %v2311 = vadd.f32 0.0, %v2310
        %v2312 = vpop.f32.mrf.mxu0
        %v2313 = vadd.f32 0.0, %v2312
        %2314 = vdwg.mxu0
        %v2315 = vmul.f32 %v2050, %v2050
        %v2316 = vmul.f32 %v2052, %v2052
        %v2317 = vmul.f32 %v2054, %v2054
        %v2318 = vmul.f32 %v2056, %v2056
        %v2319 = vmul.f32 %v2058, %v2058
        %v2320 = vmul.f32 %v2060, %v2060
        %v2321 = vmul.f32 %v2062, %v2062
        %v2322 = vmul.f32 %v2064, %v2064
        %v2323 = vsel %vm432, %v2315, 0.0
        %2324 = vadd.xlane.f32.xlu0 %v2323
        %v2325 = vpop.xlane.xlu0 %2324
        %v2326 = vsel %vm432, %v2316, 0.0
        %2327 = vadd.xlane.f32.xlu0 %v2326
        %v2328 = vpop.xlane.xlu0 %2327
        %v2329 = vsel %vm432, %v2317, 0.0
        %2330 = vadd.xlane.f32.xlu0 %v2329
        %v2331 = vpop.xlane.xlu0 %2330
        %v2332 = vsel %vm432, %v2318, 0.0
        %2333 = vadd.xlane.f32.xlu0 %v2332
        %v2334 = vpop.xlane.xlu0 %2333
        %v2335 = vsel %vm432, %v2319, 0.0
        %2336 = vadd.xlane.f32.xlu0 %v2335
        %v2337 = vpop.xlane.xlu0 %2336
        %v2338 = vsel %vm432, %v2320, 0.0
        %2339 = vadd.xlane.f32.xlu0 %v2338
        %v2340 = vpop.xlane.xlu0 %2339
        %v2341 = vsel %vm432, %v2321, 0.0
        %2342 = vadd.xlane.f32.xlu0 %v2341
        %v2343 = vpop.xlane.xlu0 %2342
        %v2344 = vsel %vm432, %v2322, 0.0
        %2345 = vadd.xlane.f32.xlu0 %v2344
        %v2346 = vpop.xlane.xlu0 %2345
        %v2347 = vrsqrt.pop %v2325
        %v2348 = vmul.f32 %v2325, %v2347
        %vm2349 = vcmp.eq.f32.partialorder %v2325, inf
        %v2350 = vsel %vm2349, %v2325, %v2348
        %vm2351 = vcmp.eq.f32.partialorder %v2325, 0.0
        %v2352 = vand.u32 %v2325, 2147483648
        %v2353 = vsel %vm2351, %v2352, %v2350
        %v2354 = vrsqrt.pop %v2328
        %v2355 = vmul.f32 %v2328, %v2354
        %vm2356 = vcmp.eq.f32.partialorder %v2328, inf
        %v2357 = vsel %vm2356, %v2328, %v2355
        %vm2358 = vcmp.eq.f32.partialorder %v2328, 0.0
        %v2359 = vand.u32 %v2328, 2147483648
        %v2360 = vsel %vm2358, %v2359, %v2357
        %v2361 = vrsqrt.pop %v2331
        %v2362 = vmul.f32 %v2331, %v2361
        %vm2363 = vcmp.eq.f32.partialorder %v2331, inf
        %v2364 = vsel %vm2363, %v2331, %v2362
        %vm2365 = vcmp.eq.f32.partialorder %v2331, 0.0
        %v2366 = vand.u32 %v2331, 2147483648
        %v2367 = vsel %vm2365, %v2366, %v2364
        %v2368 = vrsqrt.pop %v2334
        %v2369 = vmul.f32 %v2334, %v2368
        %vm2370 = vcmp.eq.f32.partialorder %v2334, inf
        %v2371 = vsel %vm2370, %v2334, %v2369
        %vm2372 = vcmp.eq.f32.partialorder %v2334, 0.0
        %v2373 = vand.u32 %v2334, 2147483648
        %v2374 = vsel %vm2372, %v2373, %v2371
        %v2375 = vrsqrt.pop %v2337
        %v2376 = vmul.f32 %v2337, %v2375
        %vm2377 = vcmp.eq.f32.partialorder %v2337, inf
        %v2378 = vsel %vm2377, %v2337, %v2376
        %vm2379 = vcmp.eq.f32.partialorder %v2337, 0.0
        %v2380 = vand.u32 %v2337, 2147483648
        %v2381 = vsel %vm2379, %v2380, %v2378
        %v2382 = vrsqrt.pop %v2340
        %v2383 = vmul.f32 %v2340, %v2382
        %vm2384 = vcmp.eq.f32.partialorder %v2340, inf
        %v2385 = vsel %vm2384, %v2340, %v2383
        %vm2386 = vcmp.eq.f32.partialorder %v2340, 0.0
        %v2387 = vand.u32 %v2340, 2147483648
        %v2388 = vsel %vm2386, %v2387, %v2385
        %v2389 = vrsqrt.pop %v2343
        %v2390 = vmul.f32 %v2343, %v2389
        %vm2391 = vcmp.eq.f32.partialorder %v2343, inf
        %v2392 = vsel %vm2391, %v2343, %v2390
        %vm2393 = vcmp.eq.f32.partialorder %v2343, 0.0
        %v2394 = vand.u32 %v2343, 2147483648
        %v2395 = vsel %vm2393, %v2394, %v2392
        %v2396 = vrsqrt.pop %v2346
        %v2397 = vmul.f32 %v2346, %v2396
        %vm2398 = vcmp.eq.f32.partialorder %v2346, inf
        %v2399 = vsel %vm2398, %v2346, %v2397
        %vm2400 = vcmp.eq.f32.partialorder %v2346, 0.0
        %v2401 = vand.u32 %v2346, 2147483648
        %v2402 = vsel %vm2400, %v2401, %v2399
        %v2403 = vmul.f32 %v1094, %v2050
        %v2404 = vmul.f32 %v1096, %v2052
        %v2405 = vmul.f32 %v1098, %v2054
        %v2406 = vmul.f32 %v1100, %v2056
        %v2407 = vmul.f32 %v1102, %v2058
        %v2408 = vmul.f32 %v1104, %v2060
        %v2409 = vmul.f32 %v1106, %v2062
        %v2410 = vmul.f32 %v1108, %v2064
        %v2411 = vsel %vm432, %v2403, 0.0
        %2412 = vadd.xlane.f32.xlu0 %v2411
        %v2413 = vpop.xlane.xlu0 %2412
        %v2414 = vsel %vm432, %v2404, 0.0
        %2415 = vadd.xlane.f32.xlu0 %v2414
        %v2416 = vpop.xlane.xlu0 %2415
        %v2417 = vsel %vm432, %v2405, 0.0
        %2418 = vadd.xlane.f32.xlu0 %v2417
        %v2419 = vpop.xlane.xlu0 %2418
        %v2420 = vsel %vm432, %v2406, 0.0
        %2421 = vadd.xlane.f32.xlu0 %v2420
        %v2422 = vpop.xlane.xlu0 %2421
        %v2423 = vsel %vm432, %v2407, 0.0
        %2424 = vadd.xlane.f32.xlu0 %v2423
        %v2425 = vpop.xlane.xlu0 %2424
        %v2426 = vsel %vm432, %v2408, 0.0
        %2427 = vadd.xlane.f32.xlu0 %v2426
        %v2428 = vpop.xlane.xlu0 %2427
        %v2429 = vsel %vm432, %v2409, 0.0
        %2430 = vadd.xlane.f32.xlu0 %v2429
        %v2431 = vpop.xlane.xlu0 %2430
        %v2432 = vsel %vm432, %v2410, 0.0
        %2433 = vadd.xlane.f32.xlu0 %v2432
        %v2434 = vpop.xlane.xlu0 %2433
        %v2435 = vmul.f32 %v1485, %v2353
        %v2436 = vmul.f32 %v1492, %v2360
        %v2437 = vmul.f32 %v1499, %v2367
        %v2438 = vmul.f32 %v1506, %v2374
        %v2439 = vmul.f32 %v1513, %v2381
        %v2440 = vmul.f32 %v1520, %v2388
        %v2441 = vmul.f32 %v1527, %v2395
        %v2442 = vmul.f32 %v1534, %v2402
        %v2443 = vmax.f32 %v2435, 1e-08
        %v2444 = vmax.f32 %v2436, 1e-08
        %v2445 = vmax.f32 %v2437, 1e-08
        %v2446 = vmax.f32 %v2438, 1e-08
        %v2447 = vmax.f32 %v2439, 1e-08
        %v2448 = vmax.f32 %v2440, 1e-08
        %v2449 = vmax.f32 %v2441, 1e-08
        %v2450 = vmax.f32 %v2442, 1e-08
        %v2451 = vrcp.pop %v2443
        %v2452 = vmul.f32 %v2413, %v2451
        %v2453 = vrcp.pop %v2444
        %v2454 = vmul.f32 %v2416, %v2453
        %v2455 = vrcp.pop %v2445
        %v2456 = vmul.f32 %v2419, %v2455
        %v2457 = vrcp.pop %v2446
        %v2458 = vmul.f32 %v2422, %v2457
        %v2459 = vrcp.pop %v2447
        %v2460 = vmul.f32 %v2425, %v2459
        %v2461 = vrcp.pop %v2448
        %v2462 = vmul.f32 %v2428, %v2461
        %v2463 = vrcp.pop %v2449
        %v2464 = vmul.f32 %v2431, %v2463
        %v2465 = vrcp.pop %v2450
        %v2466 = vmul.f32 %v2434, %v2465
        %v2467 = vsub.f32 1.0, %v2452
        %v2468 = vsub.f32 1.0, %v2454
        %v2469 = vsub.f32 1.0, %v2456
        %v2470 = vsub.f32 1.0, %v2458
        %v2471 = vsub.f32 1.0, %v2460
        %v2472 = vsub.f32 1.0, %v2462
        %v2473 = vsub.f32 1.0, %v2464
        %v2474 = vsub.f32 1.0, %v2466
        %v2475 = vmul.f32 %v2467, 0.2
        %v2476 = vmul.f32 %v2468, 0.2
        %v2477 = vmul.f32 %v2469, 0.2
        %v2478 = vmul.f32 %v2470, 0.2
        %v2479 = vmul.f32 %v2471, 0.2
        %v2480 = vmul.f32 %v2472, 0.2
        %v2481 = vmul.f32 %v2473, 0.2
        %v2482 = vmul.f32 %v2474, 0.2
        %v2483 = vadd.f32 %v1615, %v2475
        %v2484 = vadd.f32 %v1616, %v2476
        %v2485 = vadd.f32 %v1617, %v2477
        %v2486 = vadd.f32 %v1618, %v2478
        %v2487 = vadd.f32 %v1619, %v2479
        %v2488 = vadd.f32 %v1620, %v2480
        %v2489 = vadd.f32 %v1621, %v2481
        %v2490 = vadd.f32 %v1622, %v2482
        %v2491 = vmul.f32 %v2467, 0.1
        %v2492 = vmul.f32 %v2468, 0.1
        %v2493 = vmul.f32 %v2469, 0.1
        %v2494 = vmul.f32 %v2470, 0.1
        %v2495 = vmul.f32 %v2471, 0.1
        %v2496 = vmul.f32 %v2472, 0.1
        %v2497 = vmul.f32 %v2473, 0.1
        %v2498 = vmul.f32 %v2474, 0.1
        %v2499 = vsub.f32 %v1631, %v2491
        %v2500 = vsub.f32 %v1632, %v2492
        %v2501 = vsub.f32 %v1633, %v2493
        %v2502 = vsub.f32 %v1634, %v2494
        %v2503 = vsub.f32 %v1635, %v2495
        %v2504 = vsub.f32 %v1636, %v2496
        %v2505 = vsub.f32 %v1637, %v2497
        %v2506 = vsub.f32 %v1638, %v2498
        %vm2507 = vcmp.gt.f32.partialorder %v2156, %v2499
        %vm2508 = vcmp.gt.f32.partialorder %v2158, %v2499
        %vm2509 = vcmp.gt.f32.partialorder %v2269, %v2499
        %vm2510 = vcmp.gt.f32.partialorder %v2271, %v2499
        %vm2511 = vcmp.gt.f32.partialorder %v2162, %v2500
        %vm2512 = vcmp.gt.f32.partialorder %v2164, %v2500
        %vm2513 = vcmp.gt.f32.partialorder %v2275, %v2500
        %vm2514 = vcmp.gt.f32.partialorder %v2277, %v2500
        %vm2515 = vcmp.gt.f32.partialorder %v2168, %v2501
        %vm2516 = vcmp.gt.f32.partialorder %v2170, %v2501
        %vm2517 = vcmp.gt.f32.partialorder %v2281, %v2501
        %vm2518 = vcmp.gt.f32.partialorder %v2283, %v2501
        %vm2519 = vcmp.gt.f32.partialorder %v2174, %v2502
        %vm2520 = vcmp.gt.f32.partialorder %v2176, %v2502
        %vm2521 = vcmp.gt.f32.partialorder %v2287, %v2502
        %vm2522 = vcmp.gt.f32.partialorder %v2289, %v2502
        %vm2523 = vcmp.gt.f32.partialorder %v2180, %v2503
        %vm2524 = vcmp.gt.f32.partialorder %v2182, %v2503
        %vm2525 = vcmp.gt.f32.partialorder %v2293, %v2503
        %vm2526 = vcmp.gt.f32.partialorder %v2295, %v2503
        %vm2527 = vcmp.gt.f32.partialorder %v2186, %v2504
        %vm2528 = vcmp.gt.f32.partialorder %v2188, %v2504
        %vm2529 = vcmp.gt.f32.partialorder %v2299, %v2504
        %vm2530 = vcmp.gt.f32.partialorder %v2301, %v2504
        %vm2531 = vcmp.gt.f32.partialorder %v2192, %v2505
        %vm2532 = vcmp.gt.f32.partialorder %v2194, %v2505
        %vm2533 = vcmp.gt.f32.partialorder %v2305, %v2505
        %vm2534 = vcmp.gt.f32.partialorder %v2307, %v2505
        %vm2535 = vcmp.gt.f32.partialorder %v2198, %v2506
        %vm2536 = vcmp.gt.f32.partialorder %v2200, %v2506
        %vm2537 = vcmp.gt.f32.partialorder %v2311, %v2506
        %vm2538 = vcmp.gt.f32.partialorder %v2313, %v2506
        %v2539 = vsel %vm2507, 1, 0
        %v2540 = vsel %vm2508, 1, 0
        %v2541 = vsel %vm2509, 1, 0
        %v2542 = vsel %vm2510, 1, 0
        %v2543 = vsel %vm2511, 1, 0
        %v2544 = vsel %vm2512, 1, 0
        %v2545 = vsel %vm2513, 1, 0
        %v2546 = vsel %vm2514, 1, 0
        %v2547 = vsel %vm2515, 1, 0
        %v2548 = vsel %vm2516, 1, 0
        %v2549 = vsel %vm2517, 1, 0
        %v2550 = vsel %vm2518, 1, 0
        %v2551 = vsel %vm2519, 1, 0
        %v2552 = vsel %vm2520, 1, 0
        %v2553 = vsel %vm2521, 1, 0
        %v2554 = vsel %vm2522, 1, 0
        %v2555 = vsel %vm2523, 1, 0
        %v2556 = vsel %vm2524, 1, 0
        %v2557 = vsel %vm2525, 1, 0
        %v2558 = vsel %vm2526, 1, 0
        %v2559 = vsel %vm2527, 1, 0
        %v2560 = vsel %vm2528, 1, 0
        %v2561 = vsel %vm2529, 1, 0
        %v2562 = vsel %vm2530, 1, 0
        %v2563 = vsel %vm2531, 1, 0
        %v2564 = vsel %vm2532, 1, 0
        %v2565 = vsel %vm2533, 1, 0
        %v2566 = vsel %vm2534, 1, 0
        %v2567 = vsel %vm2535, 1, 0
        %v2568 = vsel %vm2536, 1, 0
        %v2569 = vsel %vm2537, 1, 0
        %v2570 = vsel %vm2538, 1, 0
        %v2571 = vcvt.s32.f32 %v2539
        %v2572 = vcvt.s32.f32 %v2540
        %v2573 = vcvt.s32.f32 %v2541
        %v2574 = vcvt.s32.f32 %v2542
        %v2575 = vcvt.s32.f32 %v2543
        %v2576 = vcvt.s32.f32 %v2544
        %v2577 = vcvt.s32.f32 %v2545
        %v2578 = vcvt.s32.f32 %v2546
        %v2579 = vcvt.s32.f32 %v2547
        %v2580 = vcvt.s32.f32 %v2548
        %v2581 = vcvt.s32.f32 %v2549
        %v2582 = vcvt.s32.f32 %v2550
        %v2583 = vcvt.s32.f32 %v2551
        %v2584 = vcvt.s32.f32 %v2552
        %v2585 = vcvt.s32.f32 %v2553
        %v2586 = vcvt.s32.f32 %v2554
        %v2587 = vcvt.s32.f32 %v2555
        %v2588 = vcvt.s32.f32 %v2556
        %v2589 = vcvt.s32.f32 %v2557
        %v2590 = vcvt.s32.f32 %v2558
        %v2591 = vcvt.s32.f32 %v2559
        %v2592 = vcvt.s32.f32 %v2560
        %v2593 = vcvt.s32.f32 %v2561
        %v2594 = vcvt.s32.f32 %v2562
        %v2595 = vcvt.s32.f32 %v2563
        %v2596 = vcvt.s32.f32 %v2564
        %v2597 = vcvt.s32.f32 %v2565
        %v2598 = vcvt.s32.f32 %v2566
        %v2599 = vcvt.s32.f32 %v2567
        %v2600 = vcvt.s32.f32 %v2568
        %v2601 = vcvt.s32.f32 %v2569
        %v2602 = vcvt.s32.f32 %v2570
        %vm2603 = vcmp.gt.f32.partialorder %v2483, %v2156
        %vm2604 = vcmp.gt.f32.partialorder %v2483, %v2158
        %vm2605 = vcmp.gt.f32.partialorder %v2483, %v2269
        %vm2606 = vcmp.gt.f32.partialorder %v2483, %v2271
        %vm2607 = vcmp.gt.f32.partialorder %v2484, %v2162
        %vm2608 = vcmp.gt.f32.partialorder %v2484, %v2164
        %vm2609 = vcmp.gt.f32.partialorder %v2484, %v2275
        %vm2610 = vcmp.gt.f32.partialorder %v2484, %v2277
        %vm2611 = vcmp.gt.f32.partialorder %v2485, %v2168
        %vm2612 = vcmp.gt.f32.partialorder %v2485, %v2170
        %vm2613 = vcmp.gt.f32.partialorder %v2485, %v2281
        %vm2614 = vcmp.gt.f32.partialorder %v2485, %v2283
        %vm2615 = vcmp.gt.f32.partialorder %v2486, %v2174
        %vm2616 = vcmp.gt.f32.partialorder %v2486, %v2176
        %vm2617 = vcmp.gt.f32.partialorder %v2486, %v2287
        %vm2618 = vcmp.gt.f32.partialorder %v2486, %v2289
        %vm2619 = vcmp.gt.f32.partialorder %v2487, %v2180
        %vm2620 = vcmp.gt.f32.partialorder %v2487, %v2182
        %vm2621 = vcmp.gt.f32.partialorder %v2487, %v2293
        %vm2622 = vcmp.gt.f32.partialorder %v2487, %v2295
        %vm2623 = vcmp.gt.f32.partialorder %v2488, %v2186
        %vm2624 = vcmp.gt.f32.partialorder %v2488, %v2188
        %vm2625 = vcmp.gt.f32.partialorder %v2488, %v2299
        %vm2626 = vcmp.gt.f32.partialorder %v2488, %v2301
        %vm2627 = vcmp.gt.f32.partialorder %v2489, %v2192
        %vm2628 = vcmp.gt.f32.partialorder %v2489, %v2194
        %vm2629 = vcmp.gt.f32.partialorder %v2489, %v2305
        %vm2630 = vcmp.gt.f32.partialorder %v2489, %v2307
        %vm2631 = vcmp.gt.f32.partialorder %v2490, %v2198
        %vm2632 = vcmp.gt.f32.partialorder %v2490, %v2200
        %vm2633 = vcmp.gt.f32.partialorder %v2490, %v2311
        %vm2634 = vcmp.gt.f32.partialorder %v2490, %v2313
        %v2635 = vsel %vm2603, 1, 0
        %v2636 = vsel %vm2604, 1, 0
        %v2637 = vsel %vm2605, 1, 0
        %v2638 = vsel %vm2606, 1, 0
        %v2639 = vsel %vm2607, 1, 0
        %v2640 = vsel %vm2608, 1, 0
        %v2641 = vsel %vm2609, 1, 0
        %v2642 = vsel %vm2610, 1, 0
        %v2643 = vsel %vm2611, 1, 0
        %v2644 = vsel %vm2612, 1, 0
        %v2645 = vsel %vm2613, 1, 0
        %v2646 = vsel %vm2614, 1, 0
        %v2647 = vsel %vm2615, 1, 0
        %v2648 = vsel %vm2616, 1, 0
        %v2649 = vsel %vm2617, 1, 0
        %v2650 = vsel %vm2618, 1, 0
        %v2651 = vsel %vm2619, 1, 0
        %v2652 = vsel %vm2620, 1, 0
        %v2653 = vsel %vm2621, 1, 0
        %v2654 = vsel %vm2622, 1, 0
        %v2655 = vsel %vm2623, 1, 0
        %v2656 = vsel %vm2624, 1, 0
        %v2657 = vsel %vm2625, 1, 0
        %v2658 = vsel %vm2626, 1, 0
        %v2659 = vsel %vm2627, 1, 0
        %v2660 = vsel %vm2628, 1, 0
        %v2661 = vsel %vm2629, 1, 0
        %v2662 = vsel %vm2630, 1, 0
        %v2663 = vsel %vm2631, 1, 0
        %v2664 = vsel %vm2632, 1, 0
        %v2665 = vsel %vm2633, 1, 0
        %v2666 = vsel %vm2634, 1, 0
        %v2667 = vcvt.s32.f32 %v2635
        %v2668 = vcvt.s32.f32 %v2636
        %v2669 = vcvt.s32.f32 %v2637
        %v2670 = vcvt.s32.f32 %v2638
        %v2671 = vcvt.s32.f32 %v2639
        %v2672 = vcvt.s32.f32 %v2640
        %v2673 = vcvt.s32.f32 %v2641
        %v2674 = vcvt.s32.f32 %v2642
        %v2675 = vcvt.s32.f32 %v2643
        %v2676 = vcvt.s32.f32 %v2644
        %v2677 = vcvt.s32.f32 %v2645
        %v2678 = vcvt.s32.f32 %v2646
        %v2679 = vcvt.s32.f32 %v2647
        %v2680 = vcvt.s32.f32 %v2648
        %v2681 = vcvt.s32.f32 %v2649
        %v2682 = vcvt.s32.f32 %v2650
        %v2683 = vcvt.s32.f32 %v2651
        %v2684 = vcvt.s32.f32 %v2652
        %v2685 = vcvt.s32.f32 %v2653
        %v2686 = vcvt.s32.f32 %v2654
        %v2687 = vcvt.s32.f32 %v2655
        %v2688 = vcvt.s32.f32 %v2656
        %v2689 = vcvt.s32.f32 %v2657
        %v2690 = vcvt.s32.f32 %v2658
        %v2691 = vcvt.s32.f32 %v2659
        %v2692 = vcvt.s32.f32 %v2660
        %v2693 = vcvt.s32.f32 %v2661
        %v2694 = vcvt.s32.f32 %v2662
        %v2695 = vcvt.s32.f32 %v2663
        %v2696 = vcvt.s32.f32 %v2664
        %v2697 = vcvt.s32.f32 %v2665
        %v2698 = vcvt.s32.f32 %v2666
        %v2699 = vlaneseq
        %v2700 = vand.u32 %v2699, 127
        %v2701 = vadd.s32 %v2700, 128
        %v2702 = vadd.s32 %v2700, 256
        %v2703 = vadd.s32 %v2700, 384
        %2704 = vset.pattern.permute.xlu0 0
        %2705 = vperm.xlu0 %2704, %v424
        %v2706 = vpop.permute.xlu0 %2705
        %2707 = vset.pattern.permute.xlu0 0
        %2708 = vperm.xlu0 %2707, %v425
        %v2709 = vpop.permute.xlu0 %2708
        %2710 = vset.pattern.permute.xlu0 0
        %2711 = vperm.xlu0 %2710, %v426
        %v2712 = vpop.permute.xlu0 %2711
        %2713 = vset.pattern.permute.xlu0 0
        %2714 = vperm.xlu0 %2713, %v427
        %v2715 = vpop.permute.xlu0 %2714
        %2716 = vset.pattern.permute.xlu0 0
        %2717 = vperm.xlu0 %2716, %v428
        %v2718 = vpop.permute.xlu0 %2717
        %2719 = vset.pattern.permute.xlu0 0
        %2720 = vperm.xlu0 %2719, %v429
        %v2721 = vpop.permute.xlu0 %2720
        %2722 = vset.pattern.permute.xlu0 0
        %2723 = vperm.xlu0 %2722, %v430
        %v2724 = vpop.permute.xlu0 %2723
        %2725 = vset.pattern.permute.xlu0 0
        %2726 = vperm.xlu0 %2725, %v431
        %v2727 = vpop.permute.xlu0 %2726
        %vm2728 = vcmp.ne.s32.totalorder %v2700, %v2706
        %vm2729 = vcmp.ne.s32.totalorder %v2701, %v2706
        %vm2730 = vcmp.ne.s32.totalorder %v2702, %v2706
        %vm2731 = vcmp.ne.s32.totalorder %v2703, %v2706
        %vm2732 = vcmp.ne.s32.totalorder %v2700, %v2709
        %vm2733 = vcmp.ne.s32.totalorder %v2701, %v2709
        %vm2734 = vcmp.ne.s32.totalorder %v2702, %v2709
        %vm2735 = vcmp.ne.s32.totalorder %v2703, %v2709
        %vm2736 = vcmp.ne.s32.totalorder %v2700, %v2712
        %vm2737 = vcmp.ne.s32.totalorder %v2701, %v2712
        %vm2738 = vcmp.ne.s32.totalorder %v2702, %v2712
        %vm2739 = vcmp.ne.s32.totalorder %v2703, %v2712
        %vm2740 = vcmp.ne.s32.totalorder %v2700, %v2715
        %vm2741 = vcmp.ne.s32.totalorder %v2701, %v2715
        %vm2742 = vcmp.ne.s32.totalorder %v2702, %v2715
        %vm2743 = vcmp.ne.s32.totalorder %v2703, %v2715
        %vm2744 = vcmp.ne.s32.totalorder %v2700, %v2718
        %vm2745 = vcmp.ne.s32.totalorder %v2701, %v2718
        %vm2746 = vcmp.ne.s32.totalorder %v2702, %v2718
        %vm2747 = vcmp.ne.s32.totalorder %v2703, %v2718
        %vm2748 = vcmp.ne.s32.totalorder %v2700, %v2721
        %vm2749 = vcmp.ne.s32.totalorder %v2701, %v2721
        %vm2750 = vcmp.ne.s32.totalorder %v2702, %v2721
        %vm2751 = vcmp.ne.s32.totalorder %v2703, %v2721
        %vm2752 = vcmp.ne.s32.totalorder %v2700, %v2724
        %vm2753 = vcmp.ne.s32.totalorder %v2701, %v2724
        %vm2754 = vcmp.ne.s32.totalorder %v2702, %v2724
        %vm2755 = vcmp.ne.s32.totalorder %v2703, %v2724
        %vm2756 = vcmp.ne.s32.totalorder %v2700, %v2727
        %vm2757 = vcmp.ne.s32.totalorder %v2701, %v2727
        %vm2758 = vcmp.ne.s32.totalorder %v2702, %v2727
        %vm2759 = vcmp.ne.s32.totalorder %v2703, %v2727
        %v2760 = vsel %vm2728, 1, 0
        %v2761 = vsel %vm2729, 1, 0
        %v2762 = vsel %vm2730, 1, 0
        %v2763 = vsel %vm2731, 1, 0
        %v2764 = vsel %vm2732, 1, 0
        %v2765 = vsel %vm2733, 1, 0
        %v2766 = vsel %vm2734, 1, 0
        %v2767 = vsel %vm2735, 1, 0
        %v2768 = vsel %vm2736, 1, 0
        %v2769 = vsel %vm2737, 1, 0
        %v2770 = vsel %vm2738, 1, 0
        %v2771 = vsel %vm2739, 1, 0
        %v2772 = vsel %vm2740, 1, 0
        %v2773 = vsel %vm2741, 1, 0
        %v2774 = vsel %vm2742, 1, 0
        %v2775 = vsel %vm2743, 1, 0
        %v2776 = vsel %vm2744, 1, 0
        %v2777 = vsel %vm2745, 1, 0
        %v2778 = vsel %vm2746, 1, 0
        %v2779 = vsel %vm2747, 1, 0
        %v2780 = vsel %vm2748, 1, 0
        %v2781 = vsel %vm2749, 1, 0
        %v2782 = vsel %vm2750, 1, 0
        %v2783 = vsel %vm2751, 1, 0
        %v2784 = vsel %vm2752, 1, 0
        %v2785 = vsel %vm2753, 1, 0
        %v2786 = vsel %vm2754, 1, 0
        %v2787 = vsel %vm2755, 1, 0
        %v2788 = vsel %vm2756, 1, 0
        %v2789 = vsel %vm2757, 1, 0
        %v2790 = vsel %vm2758, 1, 0
        %v2791 = vsel %vm2759, 1, 0
        %v2792 = vcvt.s32.f32 %v2760
        %v2793 = vcvt.s32.f32 %v2761
        %v2794 = vcvt.s32.f32 %v2762
        %v2795 = vcvt.s32.f32 %v2763
        %v2796 = vcvt.s32.f32 %v2764
        %v2797 = vcvt.s32.f32 %v2765
        %v2798 = vcvt.s32.f32 %v2766
        %v2799 = vcvt.s32.f32 %v2767
        %v2800 = vcvt.s32.f32 %v2768
        %v2801 = vcvt.s32.f32 %v2769
        %v2802 = vcvt.s32.f32 %v2770
        %v2803 = vcvt.s32.f32 %v2771
        %v2804 = vcvt.s32.f32 %v2772
        %v2805 = vcvt.s32.f32 %v2773
        %v2806 = vcvt.s32.f32 %v2774
        %v2807 = vcvt.s32.f32 %v2775
        %v2808 = vcvt.s32.f32 %v2776
        %v2809 = vcvt.s32.f32 %v2777
        %v2810 = vcvt.s32.f32 %v2778
        %v2811 = vcvt.s32.f32 %v2779
        %v2812 = vcvt.s32.f32 %v2780
        %v2813 = vcvt.s32.f32 %v2781
        %v2814 = vcvt.s32.f32 %v2782
        %v2815 = vcvt.s32.f32 %v2783
        %v2816 = vcvt.s32.f32 %v2784
        %v2817 = vcvt.s32.f32 %v2785
        %v2818 = vcvt.s32.f32 %v2786
        %v2819 = vcvt.s32.f32 %v2787
        %v2820 = vcvt.s32.f32 %v2788
        %v2821 = vcvt.s32.f32 %v2789
        %v2822 = vcvt.s32.f32 %v2790
        %v2823 = vcvt.s32.f32 %v2791
        %v2824 = vmul.f32 %v2571, %v2792
        %v2825 = vmul.f32 %v2572, %v2793
        %v2826 = vmul.f32 %v2573, %v2794
        %v2827 = vmul.f32 %v2574, %v2795
        %v2828 = vmul.f32 %v2575, %v2796
        %v2829 = vmul.f32 %v2576, %v2797
        %v2830 = vmul.f32 %v2577, %v2798
        %v2831 = vmul.f32 %v2578, %v2799
        %v2832 = vmul.f32 %v2579, %v2800
        %v2833 = vmul.f32 %v2580, %v2801
        %v2834 = vmul.f32 %v2581, %v2802
        %v2835 = vmul.f32 %v2582, %v2803
        %v2836 = vmul.f32 %v2583, %v2804
        %v2837 = vmul.f32 %v2584, %v2805
        %v2838 = vmul.f32 %v2585, %v2806
        %v2839 = vmul.f32 %v2586, %v2807
        %v2840 = vmul.f32 %v2587, %v2808
        %v2841 = vmul.f32 %v2588, %v2809
        %v2842 = vmul.f32 %v2589, %v2810
        %v2843 = vmul.f32 %v2590, %v2811
        %v2844 = vmul.f32 %v2591, %v2812
        %v2845 = vmul.f32 %v2592, %v2813
        %v2846 = vmul.f32 %v2593, %v2814
        %v2847 = vmul.f32 %v2594, %v2815
        %v2848 = vmul.f32 %v2595, %v2816
        %v2849 = vmul.f32 %v2596, %v2817
        %v2850 = vmul.f32 %v2597, %v2818
        %v2851 = vmul.f32 %v2598, %v2819
        %v2852 = vmul.f32 %v2599, %v2820
        %v2853 = vmul.f32 %v2600, %v2821
        %v2854 = vmul.f32 %v2601, %v2822
        %v2855 = vmul.f32 %v2602, %v2823
        %v2856 = vmax.f32 %v2824, %v2667
        %v2857 = vmax.f32 %v2825, %v2668
        %v2858 = vmax.f32 %v2826, %v2669
        %v2859 = vmax.f32 %v2827, %v2670
        %v2860 = vmax.f32 %v2828, %v2671
        %v2861 = vmax.f32 %v2829, %v2672
        %v2862 = vmax.f32 %v2830, %v2673
        %v2863 = vmax.f32 %v2831, %v2674
        %v2864 = vmax.f32 %v2832, %v2675
        %v2865 = vmax.f32 %v2833, %v2676
        %v2866 = vmax.f32 %v2834, %v2677
        %v2867 = vmax.f32 %v2835, %v2678
        %v2868 = vmax.f32 %v2836, %v2679
        %v2869 = vmax.f32 %v2837, %v2680
        %v2870 = vmax.f32 %v2838, %v2681
        %v2871 = vmax.f32 %v2839, %v2682
        %v2872 = vmax.f32 %v2840, %v2683
        %v2873 = vmax.f32 %v2841, %v2684
        %v2874 = vmax.f32 %v2842, %v2685
        %v2875 = vmax.f32 %v2843, %v2686
        %v2876 = vmax.f32 %v2844, %v2687
        %v2877 = vmax.f32 %v2845, %v2688
        %v2878 = vmax.f32 %v2846, %v2689
        %v2879 = vmax.f32 %v2847, %v2690
        %v2880 = vmax.f32 %v2848, %v2691
        %v2881 = vmax.f32 %v2849, %v2692
        %v2882 = vmax.f32 %v2850, %v2693
        %v2883 = vmax.f32 %v2851, %v2694
        %v2884 = vmax.f32 %v2852, %v2695
        %v2885 = vmax.f32 %v2853, %v2696
        %v2886 = vmax.f32 %v2854, %v2697
        %v2887 = vmax.f32 %v2855, %v2698
        %v2888 = vmul.f32 %v2856, %v2792
        %v2889 = vmul.f32 %v2857, %v2793
        %v2890 = vmul.f32 %v2858, %v2794
        %v2891 = vmul.f32 %v2859, %v2795
        %v2892 = vmul.f32 %v2860, %v2796
        %v2893 = vmul.f32 %v2861, %v2797
        %v2894 = vmul.f32 %v2862, %v2798
        %v2895 = vmul.f32 %v2863, %v2799
        %v2896 = vmul.f32 %v2864, %v2800
        %v2897 = vmul.f32 %v2865, %v2801
        %v2898 = vmul.f32 %v2866, %v2802
        %v2899 = vmul.f32 %v2867, %v2803
        %v2900 = vmul.f32 %v2868, %v2804
        %v2901 = vmul.f32 %v2869, %v2805
        %v2902 = vmul.f32 %v2870, %v2806
        %v2903 = vmul.f32 %v2871, %v2807
        %v2904 = vmul.f32 %v2872, %v2808
        %v2905 = vmul.f32 %v2873, %v2809
        %v2906 = vmul.f32 %v2874, %v2810
        %v2907 = vmul.f32 %v2875, %v2811
        %v2908 = vmul.f32 %v2876, %v2812
        %v2909 = vmul.f32 %v2877, %v2813
        %v2910 = vmul.f32 %v2878, %v2814
        %v2911 = vmul.f32 %v2879, %v2815
        %v2912 = vmul.f32 %v2880, %v2816
        %v2913 = vmul.f32 %v2881, %v2817
        %v2914 = vmul.f32 %v2882, %v2818
        %v2915 = vmul.f32 %v2883, %v2819
        %v2916 = vmul.f32 %v2884, %v2820
        %v2917 = vmul.f32 %v2885, %v2821
        %v2918 = vmul.f32 %v2886, %v2822
        %v2919 = vmul.f32 %v2887, %v2823
        %v2920 = vld [vmem:[%s322] sm:$0xff]
        %v2921 = vld [vmem:[%s322 + $0x8] sm:$0xff]
        %v2922 = vld [vmem:[%s322 + $0x10] sm:$0xff]
        %v2923 = vld [vmem:[%s322 + $0x18] sm:$0xff]
        %v2924 = vld [vmem:[%s322 + $0x20] sm:$0xff]
        %v2925 = vld [vmem:[%s322 + $0x28] sm:$0xff]
        %v2926 = vld [vmem:[%s322 + $0x30] sm:$0xff]
        %v2927 = vld [vmem:[%s322 + $0x38] sm:$0xff]
        %v2928 = vld [vmem:[%s2] sm:$0xff]
        %v2929 = vld [vmem:[%s2 + $0x8] sm:$0xff]
        %v2930 = vld [vmem:[%s2 + $0x10] sm:$0xff]
        %v2931 = vld [vmem:[%s2 + $0x18] sm:$0xff]
        %v2932 = vld [vmem:[%s2 + $0x20] sm:$0xff]
        %v2933 = vld [vmem:[%s2 + $0x28] sm:$0xff]
        %v2934 = vld [vmem:[%s2 + $0x30] sm:$0xff]
        %v2935 = vld [vmem:[%s2 + $0x38] sm:$0xff]
        %v2936 = vld [vmem:[%s2 + $0x40] sm:$0xff]
        %v2937 = vld [vmem:[%s2 + $0x48] sm:$0xff]
        %v2938 = vld [vmem:[%s2 + $0x50] sm:$0xff]
        %v2939 = vld [vmem:[%s2 + $0x58] sm:$0xff]
        %v2940 = vld [vmem:[%s2 + $0x60] sm:$0xff]
        %v2941 = vld [vmem:[%s2 + $0x68] sm:$0xff]
        %v2942 = vld [vmem:[%s2 + $0x70] sm:$0xff]
        %v2943 = vld [vmem:[%s2 + $0x78] sm:$0xff]
        %v2944 = vld [vmem:[%s2 + $0x80] sm:$0xff]
        %v2945 = vld [vmem:[%s2 + $0x88] sm:$0xff]
        %v2946 = vld [vmem:[%s2 + $0x90] sm:$0xff]
        %v2947 = vld [vmem:[%s2 + $0x98] sm:$0xff]
        %v2948 = vld [vmem:[%s2 + $0xa0] sm:$0xff]
        %v2949 = vld [vmem:[%s2 + $0xa8] sm:$0xff]
        %v2950 = vld [vmem:[%s2 + $0xb0] sm:$0xff]
        %v2951 = vld [vmem:[%s2 + $0xb8] sm:$0xff]
        %v2952 = vld [vmem:[%s2 + $0xc0] sm:$0xff]
        %v2953 = vld [vmem:[%s2 + $0xc8] sm:$0xff]
        %v2954 = vld [vmem:[%s2 + $0xd0] sm:$0xff]
        %v2955 = vld [vmem:[%s2 + $0xd8] sm:$0xff]
        %v2956 = vld [vmem:[%s2 + $0xe0] sm:$0xff]
        %v2957 = vld [vmem:[%s2 + $0xe8] sm:$0xff]
        %v2958 = vld [vmem:[%s2 + $0xf0] sm:$0xff]
        %v2959 = vld [vmem:[%s2 + $0xf8] sm:$0xff]
        %vm2960 = vcmask 523264
        %v2962 = vsel %vm2960, %v2920, 0
        %v2965 = vsel %vm2960, %v2921, 0
        %v2968 = vsel %vm2960, %v2922, 0
        %v2971 = vsel %vm2960, %v2923, 0
        %v2974 = vsel %vm2960, %v2924, 0
        %v2977 = vsel %vm2960, %v2925, 0
        %v2980 = vsel %vm2960, %v2926, 0
        %v2983 = vsel %vm2960, %v2927, 0
        %2985 = vmatprep.subr.mxu0 0.0
        %2986 = vmatpush1.msra.mxu0 0.0
        %2987 = vmatprep.subr.mxu0 0.0
        %2988 = vmatpush1.msra.mxu0 0.0
        %2989 = vmatprep.subr.mxu0 0.0
        %2990 = vmatpush1.msra.mxu0 0.0
        %2991 = vmatprep.subr.mxu0 0.0
        %2992 = vmatpush1.msra.mxu0 0.0
        %2993 = vmatprep.subr.mxu0 0.0
        %2994 = vmatpush1.msra.mxu0 0.0
        %2995 = vmatprep.subr.mxu0 0.0
        %2996 = vmatpush1.msra.mxu0 0.0
        %2997 = vmatprep.subr.mxu0 0.0
        %2998 = vmatpush1.msra.mxu0 0.0
        %2999 = vmatprep.subr.mxu0 0.0
        %3000 = vmatpush1.msra.mxu0 0.0
        %3001 = vmatprep.subr.mxu0 %v2957
        %3002 = vmatpush1.msra.mxu0 %v2956
        %3003 = vmatprep.subr.mxu0 %v2953
        %3004 = vmatpush1.msra.mxu0 %v2952
        %3005 = vmatprep.subr.mxu0 %v2949
        %3006 = vmatpush1.msra.mxu0 %v2948
        %3007 = vmatprep.subr.mxu0 %v2945
        %3008 = vmatpush1.msra.mxu0 %v2944
        %3009 = vmatprep.subr.mxu0 %v2941
        %3010 = vmatpush1.msra.mxu0 %v2940
        %3011 = vmatprep.subr.mxu0 %v2937
        %3012 = vmatpush1.msra.mxu0 %v2936
        %3013 = vmatprep.subr.mxu0 %v2933
        %3014 = vmatpush1.msra.mxu0 %v2932
        %3015 = vmatprep.subr.mxu0 %v2929
        %3016 = vmatpush1.msra.mxu0 %v2928
        %3017 = vmatprep.subr.mxu0 0.0
        %3018 = vmatpush2.msra.mxu0 0.0
        %3019 = vmatprep.subr.mxu0 0.0
        %3020 = vmatpush2.msra.mxu0 0.0
        %3021 = vmatprep.subr.mxu0 0.0
        %3022 = vmatpush2.msra.mxu0 0.0
        %3023 = vmatprep.subr.mxu0 0.0
        %3024 = vmatpush2.msra.mxu0 0.0
        %3025 = vmatprep.subr.mxu0 0.0
        %3026 = vmatpush2.msra.mxu0 0.0
        %3027 = vmatprep.subr.mxu0 0.0
        %3028 = vmatpush2.msra.mxu0 0.0
        %3029 = vmatprep.subr.mxu0 0.0
        %3030 = vmatpush2.msra.mxu0 0.0
        %3031 = vmatprep.subr.mxu0 0.0
        %3032 = vmatpush2.msra.mxu0 0.0
        %3033 = vmatprep.subr.mxu0 0.0
        %3034 = vmatpush2.msra.mxu0 0.0
        %3035 = vmatprep.subr.mxu0 0.0
        %3036 = vmatpush2.msra.mxu0 0.0
        %3037 = vmatprep.subr.mxu0 0.0
        %3038 = vmatpush2.msra.mxu0 0.0
        %3039 = vmatprep.subr.mxu0 0.0
        %3040 = vmatpush2.msra.mxu0 0.0
        %3041 = vmatprep.subr.mxu0 0.0
        %3042 = vmatpush2.msra.mxu0 0.0
        %3043 = vmatprep.subr.mxu0 0.0
        %3044 = vmatpush2.msra.mxu0 0.0
        %3045 = vmatprep.subr.mxu0 0.0
        %3046 = vmatpush2.msra.mxu0 0.0
        %3047 = vmatprep.subr.mxu0 0.0
        %3048 = vmatpush2.msra.mxu0 0.0
        %3049 = vmatprep.mubr.f32.mxu0 0.0
        %3050 = vmatmul.mubr.f32.gmra.mxu0 %v2962
        %v3051 = vpop.f32.mrf.mxu0
        %v3052 = vadd.f32 0.0, %v3051
        %v3053 = vpop.f32.mrf.mxu0
        %v3054 = vadd.f32 0.0, %v3053
        %3055 = vmatprep.mubr.f32.mxu0 0.0
        %3056 = vmatmul.mubr.f32.gmra.mxu0 %v2965
        %v3057 = vpop.f32.mrf.mxu0
        %v3058 = vadd.f32 0.0, %v3057
        %v3059 = vpop.f32.mrf.mxu0
        %v3060 = vadd.f32 0.0, %v3059
        %3061 = vmatprep.mubr.f32.mxu0 0.0
        %3062 = vmatmul.mubr.f32.gmra.mxu0 %v2968
        %v3063 = vpop.f32.mrf.mxu0
        %v3064 = vadd.f32 0.0, %v3063
        %v3065 = vpop.f32.mrf.mxu0
        %v3066 = vadd.f32 0.0, %v3065
        %3067 = vmatprep.mubr.f32.mxu0 0.0
        %3068 = vmatmul.mubr.f32.gmra.mxu0 %v2971
        %v3069 = vpop.f32.mrf.mxu0
        %v3070 = vadd.f32 0.0, %v3069
        %v3071 = vpop.f32.mrf.mxu0
        %v3072 = vadd.f32 0.0, %v3071
        %3073 = vmatprep.mubr.f32.mxu0 0.0
        %3074 = vmatmul.mubr.f32.gmra.mxu0 %v2974
        %v3075 = vpop.f32.mrf.mxu0
        %v3076 = vadd.f32 0.0, %v3075
        %v3077 = vpop.f32.mrf.mxu0
        %v3078 = vadd.f32 0.0, %v3077
        %3079 = vmatprep.mubr.f32.mxu0 0.0
        %3080 = vmatmul.mubr.f32.gmra.mxu0 %v2977
        %v3081 = vpop.f32.mrf.mxu0
        %v3082 = vadd.f32 0.0, %v3081
        %v3083 = vpop.f32.mrf.mxu0
        %v3084 = vadd.f32 0.0, %v3083
        %3085 = vmatprep.mubr.f32.mxu0 0.0
        %3086 = vmatmul.mubr.f32.gmra.mxu0 %v2980
        %v3087 = vpop.f32.mrf.mxu0
        %v3088 = vadd.f32 0.0, %v3087
        %v3089 = vpop.f32.mrf.mxu0
        %v3090 = vadd.f32 0.0, %v3089
        %3091 = vmatprep.mubr.f32.mxu0 0.0
        %3092 = vmatmul.mubr.f32.gmra.mxu0 %v2983
        %v3093 = vpop.f32.mrf.mxu0
        %v3094 = vadd.f32 0.0, %v3093
        %v3095 = vpop.f32.mrf.mxu0
        %v3096 = vadd.f32 0.0, %v3095
        %3097 = vdwg.mxu0
        %3098 = vmatprep.subr.mxu0 0.0
        %3099 = vmatpush1.msra.mxu0 0.0
        %3100 = vmatprep.subr.mxu0 0.0
        %3101 = vmatpush1.msra.mxu0 0.0
        %3102 = vmatprep.subr.mxu0 0.0
        %3103 = vmatpush1.msra.mxu0 0.0
        %3104 = vmatprep.subr.mxu0 0.0
        %3105 = vmatpush1.msra.mxu0 0.0
        %3106 = vmatprep.subr.mxu0 0.0
        %3107 = vmatpush1.msra.mxu0 0.0
        %3108 = vmatprep.subr.mxu0 0.0
        %3109 = vmatpush1.msra.mxu0 0.0
        %3110 = vmatprep.subr.mxu0 0.0
        %3111 = vmatpush1.msra.mxu0 0.0
        %3112 = vmatprep.subr.mxu0 0.0
        %3113 = vmatpush1.msra.mxu0 0.0
        %3114 = vmatprep.subr.mxu0 %v2959
        %3115 = vmatpush1.msra.mxu0 %v2958
        %3116 = vmatprep.subr.mxu0 %v2955
        %3117 = vmatpush1.msra.mxu0 %v2954
        %3118 = vmatprep.subr.mxu0 %v2951
        %3119 = vmatpush1.msra.mxu0 %v2950
        %3120 = vmatprep.subr.mxu0 %v2947
        %3121 = vmatpush1.msra.mxu0 %v2946
        %3122 = vmatprep.subr.mxu0 %v2943
        %3123 = vmatpush1.msra.mxu0 %v2942
        %3124 = vmatprep.subr.mxu0 %v2939
        %3125 = vmatpush1.msra.mxu0 %v2938
        %3126 = vmatprep.subr.mxu0 %v2935
        %3127 = vmatpush1.msra.mxu0 %v2934
        %3128 = vmatprep.subr.mxu0 %v2931
        %3129 = vmatpush1.msra.mxu0 %v2930
        %3130 = vmatprep.subr.mxu0 0.0
        %3131 = vmatpush2.msra.mxu0 0.0
        %3132 = vmatprep.subr.mxu0 0.0
        %3133 = vmatpush2.msra.mxu0 0.0
        %3134 = vmatprep.subr.mxu0 0.0
        %3135 = vmatpush2.msra.mxu0 0.0
        %3136 = vmatprep.subr.mxu0 0.0
        %3137 = vmatpush2.msra.mxu0 0.0
        %3138 = vmatprep.subr.mxu0 0.0
        %3139 = vmatpush2.msra.mxu0 0.0
        %3140 = vmatprep.subr.mxu0 0.0
        %3141 = vmatpush2.msra.mxu0 0.0
        %3142 = vmatprep.subr.mxu0 0.0
        %3143 = vmatpush2.msra.mxu0 0.0
        %3144 = vmatprep.subr.mxu0 0.0
        %3145 = vmatpush2.msra.mxu0 0.0
        %3146 = vmatprep.subr.mxu0 0.0
        %3147 = vmatpush2.msra.mxu0 0.0
        %3148 = vmatprep.subr.mxu0 0.0
        %3149 = vmatpush2.msra.mxu0 0.0
        %3150 = vmatprep.subr.mxu0 0.0
        %3151 = vmatpush2.msra.mxu0 0.0
        %3152 = vmatprep.subr.mxu0 0.0
        %3153 = vmatpush2.msra.mxu0 0.0
        %3154 = vmatprep.subr.mxu0 0.0
        %3155 = vmatpush2.msra.mxu0 0.0
        %3156 = vmatprep.subr.mxu0 0.0
        %3157 = vmatpush2.msra.mxu0 0.0
        %3158 = vmatprep.subr.mxu0 0.0
        %3159 = vmatpush2.msra.mxu0 0.0
        %3160 = vmatprep.subr.mxu0 0.0
        %3161 = vmatpush2.msra.mxu0 0.0
        %3162 = vmatprep.mubr.f32.mxu0 0.0
        %3163 = vmatmul.mubr.f32.gmra.mxu0 %v2962
        %v3164 = vpop.f32.mrf.mxu0
        %v3165 = vadd.f32 0.0, %v3164
        %v3166 = vpop.f32.mrf.mxu0
        %v3167 = vadd.f32 0.0, %v3166
        %3168 = vmatprep.mubr.f32.mxu0 0.0
        %3169 = vmatmul.mubr.f32.gmra.mxu0 %v2965
        %v3170 = vpop.f32.mrf.mxu0
        %v3171 = vadd.f32 0.0, %v3170
        %v3172 = vpop.f32.mrf.mxu0
        %v3173 = vadd.f32 0.0, %v3172
        %3174 = vmatprep.mubr.f32.mxu0 0.0
        %3175 = vmatmul.mubr.f32.gmra.mxu0 %v2968
        %v3176 = vpop.f32.mrf.mxu0
        %v3177 = vadd.f32 0.0, %v3176
        %v3178 = vpop.f32.mrf.mxu0
        %v3179 = vadd.f32 0.0, %v3178
        %3180 = vmatprep.mubr.f32.mxu0 0.0
        %3181 = vmatmul.mubr.f32.gmra.mxu0 %v2971
        %v3182 = vpop.f32.mrf.mxu0
        %v3183 = vadd.f32 0.0, %v3182
        %v3184 = vpop.f32.mrf.mxu0
        %v3185 = vadd.f32 0.0, %v3184
        %3186 = vmatprep.mubr.f32.mxu0 0.0
        %3187 = vmatmul.mubr.f32.gmra.mxu0 %v2974
        %v3188 = vpop.f32.mrf.mxu0
        %v3189 = vadd.f32 0.0, %v3188
        %v3190 = vpop.f32.mrf.mxu0
        %v3191 = vadd.f32 0.0, %v3190
        %3192 = vmatprep.mubr.f32.mxu0 0.0
        %3193 = vmatmul.mubr.f32.gmra.mxu0 %v2977
        %v3194 = vpop.f32.mrf.mxu0
        %v3195 = vadd.f32 0.0, %v3194
        %v3196 = vpop.f32.mrf.mxu0
        %v3197 = vadd.f32 0.0, %v3196
        %3198 = vmatprep.mubr.f32.mxu0 0.0
        %3199 = vmatmul.mubr.f32.gmra.mxu0 %v2980
        %v3200 = vpop.f32.mrf.mxu0
        %v3201 = vadd.f32 0.0, %v3200
        %v3202 = vpop.f32.mrf.mxu0
        %v3203 = vadd.f32 0.0, %v3202
        %3204 = vmatprep.mubr.f32.mxu0 0.0
        %3205 = vmatmul.mubr.f32.gmra.mxu0 %v2983
        %v3206 = vpop.f32.mrf.mxu0
        %v3207 = vadd.f32 0.0, %v3206
        %v3208 = vpop.f32.mrf.mxu0
        %v3209 = vadd.f32 0.0, %v3208
        %3210 = vdwg.mxu0
        %v3211 = vmul.f32 %v3052, 14.285714
        %v3212 = vmul.f32 %v3054, 14.285714
        %v3213 = vmul.f32 %v3165, 14.285714
        %v3214 = vmul.f32 %v3167, 14.285714
        %v3215 = vmul.f32 %v3058, 14.285714
        %v3216 = vmul.f32 %v3060, 14.285714
        %v3217 = vmul.f32 %v3171, 14.285714
        %v3218 = vmul.f32 %v3173, 14.285714
        %v3219 = vmul.f32 %v3064, 14.285714
        %v3220 = vmul.f32 %v3066, 14.285714
        %v3221 = vmul.f32 %v3177, 14.285714
        %v3222 = vmul.f32 %v3179, 14.285714
        %v3223 = vmul.f32 %v3070, 14.285714
        %v3224 = vmul.f32 %v3072, 14.285714
        %v3225 = vmul.f32 %v3183, 14.285714
        %v3226 = vmul.f32 %v3185, 14.285714
        %v3227 = vmul.f32 %v3076, 14.285714
        %v3228 = vmul.f32 %v3078, 14.285714
        %v3229 = vmul.f32 %v3189, 14.285714
        %v3230 = vmul.f32 %v3191, 14.285714
        %v3231 = vmul.f32 %v3082, 14.285714
        %v3232 = vmul.f32 %v3084, 14.285714
        %v3233 = vmul.f32 %v3195, 14.285714
        %v3234 = vmul.f32 %v3197, 14.285714
        %v3235 = vmul.f32 %v3088, 14.285714
        %v3236 = vmul.f32 %v3090, 14.285714
        %v3237 = vmul.f32 %v3201, 14.285714
        %v3238 = vmul.f32 %v3203, 14.285714
        %v3239 = vmul.f32 %v3094, 14.285714
        %v3240 = vmul.f32 %v3096, 14.285714
        %v3241 = vmul.f32 %v3207, 14.285714
        %v3242 = vmul.f32 %v3209, 14.285714
        %v3243 = vmax.f32 %v3211, %v3212
        %v3244 = vmax.f32 %v3243, %v3213
        %v3245 = vmax.f32 %v3244, %v3214
        %3246 = vmax.xlane.f32.xlu0 %v3245
        %v3247 = vpop.xlane.xlu0 %3246
        %v3248 = vmax.f32 %v3215, %v3216
        %v3249 = vmax.f32 %v3248, %v3217
        %v3250 = vmax.f32 %v3249, %v3218
        %3251 = vmax.xlane.f32.xlu0 %v3250
        %v3252 = vpop.xlane.xlu0 %3251
        %v3253 = vmax.f32 %v3219, %v3220
        %v3254 = vmax.f32 %v3253, %v3221
        %v3255 = vmax.f32 %v3254, %v3222
        %3256 = vmax.xlane.f32.xlu0 %v3255
        %v3257 = vpop.xlane.xlu0 %3256
        %v3258 = vmax.f32 %v3223, %v3224
        %v3259 = vmax.f32 %v3258, %v3225
        %v3260 = vmax.f32 %v3259, %v3226
        %3261 = vmax.xlane.f32.xlu0 %v3260
        %v3262 = vpop.xlane.xlu0 %3261
        %v3263 = vmax.f32 %v3227, %v3228
        %v3264 = vmax.f32 %v3263, %v3229
        %v3265 = vmax.f32 %v3264, %v3230
        %3266 = vmax.xlane.f32.xlu0 %v3265
        %v3267 = vpop.xlane.xlu0 %3266
        %v3268 = vmax.f32 %v3231, %v3232
        %v3269 = vmax.f32 %v3268, %v3233
        %v3270 = vmax.f32 %v3269, %v3234
        %3271 = vmax.xlane.f32.xlu0 %v3270
        %v3272 = vpop.xlane.xlu0 %3271
        %v3273 = vmax.f32 %v3235, %v3236
        %v3274 = vmax.f32 %v3273, %v3237
        %v3275 = vmax.f32 %v3274, %v3238
        %3276 = vmax.xlane.f32.xlu0 %v3275
        %v3277 = vpop.xlane.xlu0 %3276
        %v3278 = vmax.f32 %v3239, %v3240
        %v3279 = vmax.f32 %v3278, %v3241
        %v3280 = vmax.f32 %v3279, %v3242
        %3281 = vmax.xlane.f32.xlu0 %v3280
        %v3282 = vpop.xlane.xlu0 %3281
        %v3283 = vsub.f32 %v3211, %v3247
        %v3284 = vsub.f32 %v3212, %v3247
        %v3285 = vsub.f32 %v3213, %v3247
        %v3286 = vsub.f32 %v3214, %v3247
        %v3287 = vsub.f32 %v3215, %v3252
        %v3288 = vsub.f32 %v3216, %v3252
        %v3289 = vsub.f32 %v3217, %v3252
        %v3290 = vsub.f32 %v3218, %v3252
        %v3291 = vsub.f32 %v3219, %v3257
        %v3292 = vsub.f32 %v3220, %v3257
        %v3293 = vsub.f32 %v3221, %v3257
        %v3294 = vsub.f32 %v3222, %v3257
        %v3295 = vsub.f32 %v3223, %v3262
        %v3296 = vsub.f32 %v3224, %v3262
        %v3297 = vsub.f32 %v3225, %v3262
        %v3298 = vsub.f32 %v3226, %v3262
        %v3299 = vsub.f32 %v3227, %v3267
        %v3300 = vsub.f32 %v3228, %v3267
        %v3301 = vsub.f32 %v3229, %v3267
        %v3302 = vsub.f32 %v3230, %v3267
        %v3303 = vsub.f32 %v3231, %v3272
        %v3304 = vsub.f32 %v3232, %v3272
        %v3305 = vsub.f32 %v3233, %v3272
        %v3306 = vsub.f32 %v3234, %v3272
        %v3307 = vsub.f32 %v3235, %v3277
        %v3308 = vsub.f32 %v3236, %v3277
        %v3309 = vsub.f32 %v3237, %v3277
        %v3310 = vsub.f32 %v3238, %v3277
        %v3311 = vsub.f32 %v3239, %v3282
        %v3312 = vsub.f32 %v3240, %v3282
        %v3313 = vsub.f32 %v3241, %v3282
        %v3314 = vsub.f32 %v3242, %v3282
        %v3315 = vmul.f32 %v3283, 1.442695
        %v3316 = vpow.pop %v3315
        %v3317 = vmul.f32 %v3284, 1.442695
        %v3318 = vpow.pop %v3317
        %v3319 = vmul.f32 %v3285, 1.442695
        %v3320 = vpow.pop %v3319
        %v3321 = vmul.f32 %v3286, 1.442695
        %v3322 = vpow.pop %v3321
        %v3323 = vmul.f32 %v3287, 1.442695
        %v3324 = vpow.pop %v3323
        %v3325 = vmul.f32 %v3288, 1.442695
        %v3326 = vpow.pop %v3325
        %v3327 = vmul.f32 %v3289, 1.442695
        %v3328 = vpow.pop %v3327
        %v3329 = vmul.f32 %v3290, 1.442695
        %v3330 = vpow.pop %v3329
        %v3331 = vmul.f32 %v3291, 1.442695
        %v3332 = vpow.pop %v3331
        %v3333 = vmul.f32 %v3292, 1.442695
        %v3334 = vpow.pop %v3333
        %v3335 = vmul.f32 %v3293, 1.442695
        %v3336 = vpow.pop %v3335
        %v3337 = vmul.f32 %v3294, 1.442695
        %v3338 = vpow.pop %v3337
        %v3339 = vmul.f32 %v3295, 1.442695
        %v3340 = vpow.pop %v3339
        %v3341 = vmul.f32 %v3296, 1.442695
        %v3342 = vpow.pop %v3341
        %v3343 = vmul.f32 %v3297, 1.442695
        %v3344 = vpow.pop %v3343
        %v3345 = vmul.f32 %v3298, 1.442695
        %v3346 = vpow.pop %v3345
        %v3347 = vmul.f32 %v3299, 1.442695
        %v3348 = vpow.pop %v3347
        %v3349 = vmul.f32 %v3300, 1.442695
        %v3350 = vpow.pop %v3349
        %v3351 = vmul.f32 %v3301, 1.442695
        %v3352 = vpow.pop %v3351
        %v3353 = vmul.f32 %v3302, 1.442695
        %v3354 = vpow.pop %v3353
        %v3355 = vmul.f32 %v3303, 1.442695
        %v3356 = vpow.pop %v3355
        %v3357 = vmul.f32 %v3304, 1.442695
        %v3358 = vpow.pop %v3357
        %v3359 = vmul.f32 %v3305, 1.442695
        %v3360 = vpow.pop %v3359
        %v3361 = vmul.f32 %v3306, 1.442695
        %v3362 = vpow.pop %v3361
        %v3363 = vmul.f32 %v3307, 1.442695
        %v3364 = vpow.pop %v3363
        %v3365 = vmul.f32 %v3308, 1.442695
        %v3366 = vpow.pop %v3365
        %v3367 = vmul.f32 %v3309, 1.442695
        %v3368 = vpow.pop %v3367
        %v3369 = vmul.f32 %v3310, 1.442695
        %v3370 = vpow.pop %v3369
        %v3371 = vmul.f32 %v3311, 1.442695
        %v3372 = vpow.pop %v3371
        %v3373 = vmul.f32 %v3312, 1.442695
        %v3374 = vpow.pop %v3373
        %v3375 = vmul.f32 %v3313, 1.442695
        %v3376 = vpow.pop %v3375
        %v3377 = vmul.f32 %v3314, 1.442695
        %v3378 = vpow.pop %v3377
        %v3379 = vmul.f32 %v3316, %v2888
        %v3380 = vmul.f32 %v3318, %v2889
        %v3381 = vmul.f32 %v3320, %v2890
        %v3382 = vmul.f32 %v3322, %v2891
        %v3383 = vmul.f32 %v3324, %v2892
        %v3384 = vmul.f32 %v3326, %v2893
        %v3385 = vmul.f32 %v3328, %v2894
        %v3386 = vmul.f32 %v3330, %v2895
        %v3387 = vmul.f32 %v3332, %v2896
        %v3388 = vmul.f32 %v3334, %v2897
        %v3389 = vmul.f32 %v3336, %v2898
        %v3390 = vmul.f32 %v3338, %v2899
        %v3391 = vmul.f32 %v3340, %v2900
        %v3392 = vmul.f32 %v3342, %v2901
        %v3393 = vmul.f32 %v3344, %v2902
        %v3394 = vmul.f32 %v3346, %v2903
        %v3395 = vmul.f32 %v3348, %v2904
        %v3396 = vmul.f32 %v3350, %v2905
        %v3397 = vmul.f32 %v3352, %v2906
        %v3398 = vmul.f32 %v3354, %v2907
        %v3399 = vmul.f32 %v3356, %v2908
        %v3400 = vmul.f32 %v3358, %v2909
        %v3401 = vmul.f32 %v3360, %v2910
        %v3402 = vmul.f32 %v3362, %v2911
        %v3403 = vmul.f32 %v3364, %v2912
        %v3404 = vmul.f32 %v3366, %v2913
        %v3405 = vmul.f32 %v3368, %v2914
        %v3406 = vmul.f32 %v3370, %v2915
        %v3407 = vmul.f32 %v3372, %v2916
        %v3408 = vmul.f32 %v3374, %v2917
        %v3409 = vmul.f32 %v3376, %v2918
        %v3410 = vmul.f32 %v3378, %v2919
        %v3411 = vadd.f32 %v3379, %v3380
        %v3412 = vadd.f32 %v3411, %v3381
        %v3413 = vadd.f32 %v3412, %v3382
        %3414 = vadd.xlane.f32.xlu0 %v3413
        %v3415 = vpop.xlane.xlu0 %3414
        %v3416 = vadd.f32 %v3383, %v3384
        %v3417 = vadd.f32 %v3416, %v3385
        %v3418 = vadd.f32 %v3417, %v3386
        %3419 = vadd.xlane.f32.xlu0 %v3418
        %v3420 = vpop.xlane.xlu0 %3419
        %v3421 = vadd.f32 %v3387, %v3388
        %v3422 = vadd.f32 %v3421, %v3389
        %v3423 = vadd.f32 %v3422, %v3390
        %3424 = vadd.xlane.f32.xlu0 %v3423
        %v3425 = vpop.xlane.xlu0 %3424
        %v3426 = vadd.f32 %v3391, %v3392
        %v3427 = vadd.f32 %v3426, %v3393
        %v3428 = vadd.f32 %v3427, %v3394
        %3429 = vadd.xlane.f32.xlu0 %v3428
        %v3430 = vpop.xlane.xlu0 %3429
        %v3431 = vadd.f32 %v3395, %v3396
        %v3432 = vadd.f32 %v3431, %v3397
        %v3433 = vadd.f32 %v3432, %v3398
        %3434 = vadd.xlane.f32.xlu0 %v3433
        %v3435 = vpop.xlane.xlu0 %3434
        %v3436 = vadd.f32 %v3399, %v3400
        %v3437 = vadd.f32 %v3436, %v3401
        %v3438 = vadd.f32 %v3437, %v3402
        %3439 = vadd.xlane.f32.xlu0 %v3438
        %v3440 = vpop.xlane.xlu0 %3439
        %v3441 = vadd.f32 %v3403, %v3404
        %v3442 = vadd.f32 %v3441, %v3405
        %v3443 = vadd.f32 %v3442, %v3406
        %3444 = vadd.xlane.f32.xlu0 %v3443
        %v3445 = vpop.xlane.xlu0 %3444
        %v3446 = vadd.f32 %v3407, %v3408
        %v3447 = vadd.f32 %v3446, %v3409
        %v3448 = vadd.f32 %v3447, %v3410
        %3449 = vadd.xlane.f32.xlu0 %v3448
        %v3450 = vpop.xlane.xlu0 %3449
        %v3451 = vmax.f32 %v3415, 1e-30
        %v3452 = vmax.f32 %v3420, 1e-30
        %v3453 = vmax.f32 %v3425, 1e-30
        %v3454 = vmax.f32 %v3430, 1e-30
        %v3455 = vmax.f32 %v3435, 1e-30
        %v3456 = vmax.f32 %v3440, 1e-30
        %v3457 = vmax.f32 %v3445, 1e-30
        %v3458 = vmax.f32 %v3450, 1e-30
        %v3459 = vlog2.pop %v3451
        %v3460 = vmul.f32 %v3459, 0.6931472
        %v3461 = vlog2.pop %v3452
        %v3462 = vmul.f32 %v3461, 0.6931472
        %v3463 = vlog2.pop %v3453
        %v3464 = vmul.f32 %v3463, 0.6931472
        %v3465 = vlog2.pop %v3454
        %v3466 = vmul.f32 %v3465, 0.6931472
        %v3467 = vlog2.pop %v3455
        %v3468 = vmul.f32 %v3467, 0.6931472
        %v3469 = vlog2.pop %v3456
        %v3470 = vmul.f32 %v3469, 0.6931472
        %v3471 = vlog2.pop %v3457
        %v3472 = vmul.f32 %v3471, 0.6931472
        %v3473 = vlog2.pop %v3458
        %v3474 = vmul.f32 %v3473, 0.6931472
        %v3475 = vsub.f32 %v3283, %v3460
        %v3476 = vsub.f32 %v3284, %v3460
        %v3477 = vsub.f32 %v3285, %v3460
        %v3478 = vsub.f32 %v3286, %v3460
        %v3479 = vsub.f32 %v3287, %v3462
        %v3480 = vsub.f32 %v3288, %v3462
        %v3481 = vsub.f32 %v3289, %v3462
        %v3482 = vsub.f32 %v3290, %v3462
        %v3483 = vsub.f32 %v3291, %v3464
        %v3484 = vsub.f32 %v3292, %v3464
        %v3485 = vsub.f32 %v3293, %v3464
        %v3486 = vsub.f32 %v3294, %v3464
        %v3487 = vsub.f32 %v3295, %v3466
        %v3488 = vsub.f32 %v3296, %v3466
        %v3489 = vsub.f32 %v3297, %v3466
        %v3490 = vsub.f32 %v3298, %v3466
        %v3491 = vsub.f32 %v3299, %v3468
        %v3492 = vsub.f32 %v3300, %v3468
        %v3493 = vsub.f32 %v3301, %v3468
        %v3494 = vsub.f32 %v3302, %v3468
        %v3495 = vsub.f32 %v3303, %v3470
        %v3496 = vsub.f32 %v3304, %v3470
        %v3497 = vsub.f32 %v3305, %v3470
        %v3498 = vsub.f32 %v3306, %v3470
        %v3499 = vsub.f32 %v3307, %v3472
        %v3500 = vsub.f32 %v3308, %v3472
        %v3501 = vsub.f32 %v3309, %v3472
        %v3502 = vsub.f32 %v3310, %v3472
        %v3503 = vsub.f32 %v3311, %v3474
        %v3504 = vsub.f32 %v3312, %v3474
        %v3505 = vsub.f32 %v3313, %v3474
        %v3506 = vsub.f32 %v3314, %v3474
        %v3507 = vadd.f32 %v2824, %v2825
        %v3508 = vadd.f32 %v3507, %v2826
        %v3509 = vadd.f32 %v3508, %v2827
        %3510 = vadd.xlane.f32.xlu0 %v3509
        %v3511 = vpop.xlane.xlu0 %3510
        %v3512 = vadd.f32 %v2828, %v2829
        %v3513 = vadd.f32 %v3512, %v2830
        %v3514 = vadd.f32 %v3513, %v2831
        %3515 = vadd.xlane.f32.xlu0 %v3514
        %v3516 = vpop.xlane.xlu0 %3515
        %v3517 = vadd.f32 %v2832, %v2833
        %v3518 = vadd.f32 %v3517, %v2834
        %v3519 = vadd.f32 %v3518, %v2835
        %3520 = vadd.xlane.f32.xlu0 %v3519
        %v3521 = vpop.xlane.xlu0 %3520
        %v3522 = vadd.f32 %v2836, %v2837
        %v3523 = vadd.f32 %v3522, %v2838
        %v3524 = vadd.f32 %v3523, %v2839
        %3525 = vadd.xlane.f32.xlu0 %v3524
        %v3526 = vpop.xlane.xlu0 %3525
        %v3527 = vadd.f32 %v2840, %v2841
        %v3528 = vadd.f32 %v3527, %v2842
        %v3529 = vadd.f32 %v3528, %v2843
        %3530 = vadd.xlane.f32.xlu0 %v3529
        %v3531 = vpop.xlane.xlu0 %3530
        %v3532 = vadd.f32 %v2844, %v2845
        %v3533 = vadd.f32 %v3532, %v2846
        %v3534 = vadd.f32 %v3533, %v2847
        %3535 = vadd.xlane.f32.xlu0 %v3534
        %v3536 = vpop.xlane.xlu0 %3535
        %v3537 = vadd.f32 %v2848, %v2849
        %v3538 = vadd.f32 %v3537, %v2850
        %v3539 = vadd.f32 %v3538, %v2851
        %3540 = vadd.xlane.f32.xlu0 %v3539
        %v3541 = vpop.xlane.xlu0 %3540
        %v3542 = vadd.f32 %v2852, %v2853
        %v3543 = vadd.f32 %v3542, %v2854
        %v3544 = vadd.f32 %v3543, %v2855
        %3545 = vadd.xlane.f32.xlu0 %v3544
        %v3546 = vpop.xlane.xlu0 %3545
        %vm3547 = vcmp.gt.f32.partialorder %v3511, 0.0
        %vm3548 = vcmp.gt.f32.partialorder %v3516, 0.0
        %vm3549 = vcmp.gt.f32.partialorder %v3521, 0.0
        %vm3550 = vcmp.gt.f32.partialorder %v3526, 0.0
        %vm3551 = vcmp.gt.f32.partialorder %v3531, 0.0
        %vm3552 = vcmp.gt.f32.partialorder %v3536, 0.0
        %vm3553 = vcmp.gt.f32.partialorder %v3541, 0.0
        %vm3554 = vcmp.gt.f32.partialorder %v3546, 0.0
        %v3555 = vsel %vm3547, 1, 0
        %v3556 = vsel %vm3548, 1, 0
        %v3557 = vsel %vm3549, 1, 0
        %v3558 = vsel %vm3550, 1, 0
        %v3559 = vsel %vm3551, 1, 0
        %v3560 = vsel %vm3552, 1, 0
        %v3561 = vsel %vm3553, 1, 0
        %v3562 = vsel %vm3554, 1, 0
        %v3563 = vcvt.s32.f32 %v3555
        %v3564 = vcvt.s32.f32 %v3556
        %v3565 = vcvt.s32.f32 %v3557
        %v3566 = vcvt.s32.f32 %v3558
        %v3567 = vcvt.s32.f32 %v3559
        %v3568 = vcvt.s32.f32 %v3560
        %v3569 = vcvt.s32.f32 %v3561
        %v3570 = vcvt.s32.f32 %v3562
        %v3571 = vmul.f32 %v2824, %v3475
        %v3572 = vmul.f32 %v2825, %v3476
        %v3573 = vmul.f32 %v2826, %v3477
        %v3574 = vmul.f32 %v2827, %v3478
        %v3575 = vmul.f32 %v2828, %v3479
        %v3576 = vmul.f32 %v2829, %v3480
        %v3577 = vmul.f32 %v2830, %v3481
        %v3578 = vmul.f32 %v2831, %v3482
        %v3579 = vmul.f32 %v2832, %v3483
        %v3580 = vmul.f32 %v2833, %v3484
        %v3581 = vmul.f32 %v2834, %v3485
        %v3582 = vmul.f32 %v2835, %v3486
        %v3583 = vmul.f32 %v2836, %v3487
        %v3584 = vmul.f32 %v2837, %v3488
        %v3585 = vmul.f32 %v2838, %v3489
        %v3586 = vmul.f32 %v2839, %v3490
        %v3587 = vmul.f32 %v2840, %v3491
        %v3588 = vmul.f32 %v2841, %v3492
        %v3589 = vmul.f32 %v2842, %v3493
        %v3590 = vmul.f32 %v2843, %v3494
        %v3591 = vmul.f32 %v2844, %v3495
        %v3592 = vmul.f32 %v2845, %v3496
        %v3593 = vmul.f32 %v2846, %v3497
        %v3594 = vmul.f32 %v2847, %v3498
        %v3595 = vmul.f32 %v2848, %v3499
        %v3596 = vmul.f32 %v2849, %v3500
        %v3597 = vmul.f32 %v2850, %v3501
        %v3598 = vmul.f32 %v2851, %v3502
        %v3599 = vmul.f32 %v2852, %v3503
        %v3600 = vmul.f32 %v2853, %v3504
        %v3601 = vmul.f32 %v2854, %v3505
        %v3602 = vmul.f32 %v2855, %v3506
        %v3603 = vadd.f32 %v3571, %v3572
        %v3604 = vadd.f32 %v3603, %v3573
        %v3605 = vadd.f32 %v3604, %v3574
        %3606 = vadd.xlane.f32.xlu0 %v3605
        %v3607 = vpop.xlane.xlu0 %3606
        %v3608 = vadd.f32 %v3575, %v3576
        %v3609 = vadd.f32 %v3608, %v3577
        %v3610 = vadd.f32 %v3609, %v3578
        %3611 = vadd.xlane.f32.xlu0 %v3610
        %v3612 = vpop.xlane.xlu0 %3611
        %v3613 = vadd.f32 %v3579, %v3580
        %v3614 = vadd.f32 %v3613, %v3581
        %v3615 = vadd.f32 %v3614, %v3582
        %3616 = vadd.xlane.f32.xlu0 %v3615
        %v3617 = vpop.xlane.xlu0 %3616
        %v3618 = vadd.f32 %v3583, %v3584
        %v3619 = vadd.f32 %v3618, %v3585
        %v3620 = vadd.f32 %v3619, %v3586
        %3621 = vadd.xlane.f32.xlu0 %v3620
        %v3622 = vpop.xlane.xlu0 %3621
        %v3623 = vadd.f32 %v3587, %v3588
        %v3624 = vadd.f32 %v3623, %v3589
        %v3625 = vadd.f32 %v3624, %v3590
        %3626 = vadd.xlane.f32.xlu0 %v3625
        %v3627 = vpop.xlane.xlu0 %3626
        %v3628 = vadd.f32 %v3591, %v3592
        %v3629 = vadd.f32 %v3628, %v3593
        %v3630 = vadd.f32 %v3629, %v3594
        %3631 = vadd.xlane.f32.xlu0 %v3630
        %v3632 = vpop.xlane.xlu0 %3631
        %v3633 = vadd.f32 %v3595, %v3596
        %v3634 = vadd.f32 %v3633, %v3597
        %v3635 = vadd.f32 %v3634, %v3598
        %3636 = vadd.xlane.f32.xlu0 %v3635
        %v3637 = vpop.xlane.xlu0 %3636
        %v3638 = vadd.f32 %v3599, %v3600
        %v3639 = vadd.f32 %v3638, %v3601
        %v3640 = vadd.f32 %v3639, %v3602
        %3641 = vadd.xlane.f32.xlu0 %v3640
        %v3642 = vpop.xlane.xlu0 %3641
        %v3643 = vmax.f32 %v3511, 1.0
        %v3644 = vmax.f32 %v3516, 1.0
        %v3645 = vmax.f32 %v3521, 1.0
        %v3646 = vmax.f32 %v3526, 1.0
        %v3647 = vmax.f32 %v3531, 1.0
        %v3648 = vmax.f32 %v3536, 1.0
        %v3649 = vmax.f32 %v3541, 1.0
        %v3650 = vmax.f32 %v3546, 1.0
        %v3651 = vrcp.pop %v3643
        %v3652 = vmul.f32 %v3607, %v3651
        %v3653 = vrcp.pop %v3644
        %v3654 = vmul.f32 %v3612, %v3653
        %v3655 = vrcp.pop %v3645
        %v3656 = vmul.f32 %v3617, %v3655
        %v3657 = vrcp.pop %v3646
        %v3658 = vmul.f32 %v3622, %v3657
        %v3659 = vrcp.pop %v3647
        %v3660 = vmul.f32 %v3627, %v3659
        %v3661 = vrcp.pop %v3648
        %v3662 = vmul.f32 %v3632, %v3661
        %v3663 = vrcp.pop %v3649
        %v3664 = vmul.f32 %v3637, %v3663
        %v3665 = vrcp.pop %v3650
        %v3666 = vmul.f32 %v3642, %v3665
        %v3667 = vsel %vm3547, %v3652, 0.0
        %v3668 = vsel %vm3548, %v3654, 0.0
        %v3669 = vsel %vm3549, %v3656, 0.0
        %v3670 = vsel %vm3550, %v3658, 0.0
        %v3671 = vsel %vm3551, %v3660, 0.0
        %v3672 = vsel %vm3552, %v3662, 0.0
        %v3673 = vsel %vm3553, %v3664, 0.0
        %v3674 = vsel %vm3554, %v3666, 0.0
        %vm3675 = vcmask 7168
        %v3676 = vsel %vm3675, %v3563, 0.0
        %v3677 = vsel %vm3675, %v3564, 0.0
        %v3678 = vadd.f32 %v3676, %v3677
        %v3679 = vsel %vm3675, %v3565, 0.0
        %v3680 = vadd.f32 %v3678, %v3679
        %v3681 = vsel %vm3675, %v3566, 0.0
        %v3682 = vadd.f32 %v3680, %v3681
        %v3683 = vsel %vm3675, %v3567, 0.0
        %v3684 = vadd.f32 %v3682, %v3683
        %v3685 = vsel %vm3675, %v3568, 0.0
        %v3686 = vadd.f32 %v3684, %v3685
        %v3687 = vsel %vm3675, %v3569, 0.0
        %v3688 = vadd.f32 %v3686, %v3687
        %v3689 = vsel %vm3675, %v3570, 0.0
        %v3690 = vadd.f32 %v3688, %v3689
        %3691 = vadd.xlane.f32.xlu0 %v3690
        %v3692 = vpop.xlane.xlu0 %3691
        %v3693 = vrot.slane %v3692, 4
        %v3694 = vadd.f32 %v3692, %v3693
        %v3695 = vrot.slane %v3694, 2
        %v3696 = vadd.f32 %v3694, %v3695
        %v3697 = vrot.slane %v3696, 1
        %v3698 = vadd.f32 %v3696, %v3697
        %s3699 = vtos %v3698
        %v3700 = vstv %s3699
        %v3701 = vmax.f32 %v3700, 1.0
        %v3702 = vld [vmem:[#allocation2] sm:$0x1]
        %v3703 = vsel %vm3675, %v3667, 0.0
        %v3704 = vsel %vm3675, %v3668, 0.0
        %v3705 = vadd.f32 %v3703, %v3704
        %v3706 = vsel %vm3675, %v3669, 0.0
        %v3707 = vadd.f32 %v3705, %v3706
        %v3708 = vsel %vm3675, %v3670, 0.0
        %v3709 = vadd.f32 %v3707, %v3708
        %v3710 = vsel %vm3675, %v3671, 0.0
        %v3711 = vadd.f32 %v3709, %v3710
        %v3712 = vsel %vm3675, %v3672, 0.0
        %v3713 = vadd.f32 %v3711, %v3712
        %v3714 = vsel %vm3675, %v3673, 0.0
        %v3715 = vadd.f32 %v3713, %v3714
        %v3716 = vsel %vm3675, %v3674, 0.0
        %v3717 = vadd.f32 %v3715, %v3716
        %3718 = vadd.xlane.f32.xlu0 %v3717
        %v3719 = vpop.xlane.xlu0 %3718
        %v3720 = vrot.slane %v3719, 4
        %v3721 = vadd.f32 %v3719, %v3720
        %v3722 = vrot.slane %v3721, 2
        %v3723 = vadd.f32 %v3721, %v3722
        %v3724 = vrot.slane %v3723, 1
        %v3725 = vadd.f32 %v3723, %v3724
        %s3726 = vtos %v3725
        %v3727 = vstv %s3726
        %v3728 = vmul.f32 %v3727, -1.0
        %v3729 = vrcp.pop %v3701
        %v3730 = vmul.f32 %v3728, %v3729
        %v3731 = vadd.f32 %v3702, %v3730
        %vm3732 = vcmask 0
        %3733 = vst.msk [vmem:[#allocation2] sm:$0x1] %vm3732, %v3731
        %v3734 = vld [vmem:[#allocation4] sm:$0x1]
        %v3735 = vadd.f32 %v3509, %v2828
        %v3736 = vadd.f32 %v3735, %v2829
        %v3737 = vadd.f32 %v3736, %v2830
        %v3738 = vadd.f32 %v3737, %v2831
        %v3739 = vadd.f32 %v3738, %v2832
        %v3740 = vadd.f32 %v3739, %v2833
        %v3741 = vadd.f32 %v3740, %v2834
        %v3742 = vadd.f32 %v3741, %v2835
        %v3743 = vadd.f32 %v3742, %v2836
        %v3744 = vadd.f32 %v3743, %v2837
        %v3745 = vadd.f32 %v3744, %v2838
        %v3746 = vadd.f32 %v3745, %v2839
        %v3747 = vadd.f32 %v3746, %v2840
        %v3748 = vadd.f32 %v3747, %v2841
        %v3749 = vadd.f32 %v3748, %v2842
        %v3750 = vadd.f32 %v3749, %v2843
        %v3751 = vadd.f32 %v3750, %v2844
        %v3752 = vadd.f32 %v3751, %v2845
        %v3753 = vadd.f32 %v3752, %v2846
        %v3754 = vadd.f32 %v3753, %v2847
        %v3755 = vadd.f32 %v3754, %v2848
        %v3756 = vadd.f32 %v3755, %v2849
        %v3757 = vadd.f32 %v3756, %v2850
        %v3758 = vadd.f32 %v3757, %v2851
        %v3759 = vadd.f32 %v3758, %v2852
        %v3760 = vadd.f32 %v3759, %v2853
        %v3761 = vadd.f32 %v3760, %v2854
        %v3762 = vadd.f32 %v3761, %v2855
        %3763 = vadd.xlane.f32.xlu0 %v3762
        %v3764 = vpop.xlane.xlu0 %3763
        %v3765 = vrot.slane %v3764, 4
        %v3766 = vadd.f32 %v3764, %v3765
        %v3767 = vrot.slane %v3766, 2
        %v3768 = vadd.f32 %v3766, %v3767
        %v3769 = vrot.slane %v3768, 1
        %v3770 = vadd.f32 %v3768, %v3769
        %s3771 = vtos %v3770
        %v3772 = vstv %s3771
        %v3773 = vmul.f32 %v3772, 0.015625
        %v3774 = vadd.f32 %v3734, %v3773
        %3775 = vst.msk [vmem:[#allocation4] sm:$0x1] %vm3732, %v3774
        %v3776 = vld [vmem:[#allocation6] sm:$0x1]
        %v3777 = vadd.f32 %v2667, %v2668
        %v3778 = vadd.f32 %v3777, %v2669
        %v3779 = vadd.f32 %v3778, %v2670
        %v3780 = vadd.f32 %v3779, %v2671
        %v3781 = vadd.f32 %v3780, %v2672
        %v3782 = vadd.f32 %v3781, %v2673
        %v3783 = vadd.f32 %v3782, %v2674
        %v3784 = vadd.f32 %v3783, %v2675
        %v3785 = vadd.f32 %v3784, %v2676
        %v3786 = vadd.f32 %v3785, %v2677
        %v3787 = vadd.f32 %v3786, %v2678
        %v3788 = vadd.f32 %v3787, %v2679
        %v3789 = vadd.f32 %v3788, %v2680
        %v3790 = vadd.f32 %v3789, %v2681
        %v3791 = vadd.f32 %v3790, %v2682
        %v3792 = vadd.f32 %v3791, %v2683
        %v3793 = vadd.f32 %v3792, %v2684
        %v3794 = vadd.f32 %v3793, %v2685
        %v3795 = vadd.f32 %v3794, %v2686
        %v3796 = vadd.f32 %v3795, %v2687
        %v3797 = vadd.f32 %v3796, %v2688
        %v3798 = vadd.f32 %v3797, %v2689
        %v3799 = vadd.f32 %v3798, %v2690
        %v3800 = vadd.f32 %v3799, %v2691
        %v3801 = vadd.f32 %v3800, %v2692
        %v3802 = vadd.f32 %v3801, %v2693
        %v3803 = vadd.f32 %v3802, %v2694
        %v3804 = vadd.f32 %v3803, %v2695
        %v3805 = vadd.f32 %v3804, %v2696
        %v3806 = vadd.f32 %v3805, %v2697
        %v3807 = vadd.f32 %v3806, %v2698
        %3808 = vadd.xlane.f32.xlu0 %v3807
        %v3809 = vpop.xlane.xlu0 %3808
        %v3810 = vrot.slane %v3809, 4
        %v3811 = vadd.f32 %v3809, %v3810
        %v3812 = vrot.slane %v3811, 2
        %v3813 = vadd.f32 %v3811, %v3812
        %v3814 = vrot.slane %v3813, 1
        %v3815 = vadd.f32 %v3813, %v3814
        %s3816 = vtos %v3815
        %v3817 = vstv %s3816
        %v3818 = vmul.f32 %v3817, 0.015625
        %v3819 = vadd.f32 %v3776, %v3818
        %3820 = vst.msk [vmem:[#allocation6] sm:$0x1] %vm3732, %v3819
        %p3821 = scmp.eq.s32.totalorder %s22, 1
        // Predicated region
        $region49: #{tpu_custom_call.1} parent=43 // pred_check
          %p3822 = pneg %p3821
        $region50: #{tpu_custom_call.1} parent=43 // pred_check_branch
          %3824 = sbr.rel (%p3822) target = $region52
        $region51: #{tpu_custom_call.1} parent=43 // pred_region
          %v3825 = vld [vmem:[#allocation2] sm:$0x1]
          %v3826 = vmul.f32 %v3825, 0.5
          %3827 = vst.msk [vmem:[#allocation2] sm:$0x1] %vm3732, %v3826
          %v3828 = vld [vmem:[#allocation4] sm:$0x1]
          %v3829 = vmul.f32 %v3828, 0.5
          %3830 = vst.msk [vmem:[#allocation4] sm:$0x1] %vm3732, %v3829
          %v3831 = vld [vmem:[#allocation6] sm:$0x1]
          %v3832 = vmul.f32 %v3831, 0.5
          %3833 = vst.msk [vmem:[#allocation6] sm:$0x1] %vm3732, %v3832
        $region52: #{tpu_custom_call.1} parent=43 // pred_fallthru
          _
        // Predicated region
        $region53: #{tpu_custom_call.1} parent=43 // pred_check
          %p3834 = pneg %p176
        $region54: #{tpu_custom_call.1} parent=43 // pred_check_branch
          %3836 = sbr.rel (%p3834) target = $region56
        $region55: #{tpu_custom_call.1} parent=43 // pred_region
          %s3838 = ssub.s32 16, 16
          %3839 = vsyncadd [#allocation3], %s3838
          %s3841 = sshll.u32 [#allocation2], 4
          %s3842 = int_to_ptr.vmem [resolvable:$true] %s3841
          %3844 = dma.vmem_to_hbm [thread:$0]  %s3842, 16, %s6, [#allocation3]
        $region56: #{tpu_custom_call.1} parent=43 // pred_fallthru
          _
        // Predicated region
        $region57: #{tpu_custom_call.1} parent=43 // pred_check
          %p3845 = pneg %p197
        $region58: #{tpu_custom_call.1} parent=43 // pred_check_branch
          %3847 = sbr.rel (%p3845) target = $region60
        $region59: #{tpu_custom_call.1} parent=43 // pred_region
          %s3849 = ssub.s32 16, 16
          %3850 = vsyncadd [#allocation5], %s3849
          %s3852 = sshll.u32 [#allocation4], 4
          %s3853 = int_to_ptr.vmem [resolvable:$true] %s3852
          %3855 = dma.vmem_to_hbm [thread:$0]  %s3853, 16, %s7, [#allocation5]
        $region60: #{tpu_custom_call.1} parent=43 // pred_fallthru
          _
        // Predicated region
        $region61: #{tpu_custom_call.1} parent=43 // pred_check
          %p3856 = pneg %p218
        $region62: #{tpu_custom_call.1} parent=43 // pred_check_branch
          %3858 = sbr.rel (%p3856) target = $region64
        $region63: #{tpu_custom_call.1} parent=43 // pred_region
          %s3860 = ssub.s32 16, 16
          %3861 = vsyncadd [#allocation5], %s3860
          %s3863 = sshll.u32 [#allocation6], 4
          %s3864 = int_to_ptr.vmem [resolvable:$true] %s3863
          %3866 = dma.vmem_to_hbm [thread:$0]  %s3864, 16, %s8, [#allocation5]
        $region64: #{tpu_custom_call.1} parent=43 // pred_fallthru
          _
        // Predicated region
        $region65: #{tpu_custom_call.1} parent=43 // pred_check
          %p3867 = pneg %p176
        $region66: #{tpu_custom_call.1} parent=43 // pred_check_branch
          %3869 = sbr.rel (%p3867) target = $region68
        $region67: #{tpu_custom_call.1} parent=43 // pred_region
          %3870 = dma.done [#allocation3], 16
        $region68: #{tpu_custom_call.1} parent=43 // pred_fallthru
          _
        // Predicated region
        $region69: #{tpu_custom_call.1} parent=43 // pred_check
          %p3871 = pneg %p197
        $region70: #{tpu_custom_call.1} parent=43 // pred_check_branch
          %3873 = sbr.rel (%p3871) target = $region72
        $region71: #{tpu_custom_call.1} parent=43 // pred_region
          %3874 = dma.done [#allocation5], 16
        $region72: #{tpu_custom_call.1} parent=43 // pred_fallthru
          _
        // Predicated region
        $region73: #{tpu_custom_call.1} parent=43 // pred_check
          %p3875 = pneg %p218
        $region74: #{tpu_custom_call.1} parent=43 // pred_check_branch
          %3877 = sbr.rel (%p3875) target = $region76
        $region75: #{tpu_custom_call.1} parent=43 // pred_region
          %3878 = dma.done [#allocation5], 16
        $region76: #{tpu_custom_call.1} parent=43 // pred_fallthru
          _
      $region44: #{tpu_custom_call.1} parent=5 // pred_fallthru
        _
      %p3879 = scmp.le.s32.totalorder 2, %s17
      // Predicated region
      $region77: #{tpu_custom_call.1} parent=5 // pred_check
        %p3880 = pneg %p3879
      $region78: #{tpu_custom_call.1} parent=5 // pred_check_branch
        %3882 = sbr.rel (%p3880) target = $region80
      $region79: #{tpu_custom_call.1} parent=5 // pred_region
        %s3883 = ssub.s32 %s17, 2
      $region80: #{tpu_custom_call.1} parent=5 // pred_fallthru
        _
    $region6: #{tpu_custom_call.1} parent=1 // loop_footer
      %s21 = sadd.s32 1, %s17
    $region7: #{tpu_custom_call.1} parent=1 // loop_footer_branch
      %16 = sbr.rel target = $region3
    $region8: #{tpu_custom_call.1} parent=1 // loop_exit
      _
    %3884 = vsyncpa [#allocation3], 1
    %s3885 = scalar_lea.sflag [#allocation3], 1
    %3886 = vsyncpa %s3885, 1
    %3887 = vsyncpa [#allocation5], 1

</llo_original>
